<compile_context>
chip_gen: v5e
topology: v5e:2x2
jax: 0.10.0
libtpu: 0.0.40
codegen_flags: <defaults>
</compile_context>

<pallas_src>
import functools

import jax
import jax.numpy as jnp
from jax import lax
from jax.experimental import pallas as pl
from jax.experimental.pallas import tpu as pltpu


def _round_up(x, m):
    return (x + m - 1) // m * m


# --------------------------------------------------------------------------
# Fused kernel: multi-layer GRU + length-select + l2norm + fc (single block).
# --------------------------------------------------------------------------
def _make_text_encoder_kernel(num_layers, T, B_pad, H_pad):
    L = num_layers

    def kernel(*refs):
        emb_ref = refs[0]                 # (T*B_pad, E_pad) f32, time-major rows
        len_ref = refs[1]                 # (B_pad, 1) int32
        layer_refs = refs[2:2 + 4 * L]    # per layer: w_ih_t, w_hh_t, b_ih, b_hh
        fcw_ref = refs[2 + 4 * L]         # (H_pad, O_pad)
        fcb_ref = refs[3 + 4 * L]         # (1, O_pad)
        out_ref = refs[4 + 4 * L]         # (B_pad, O_pad)
        seq_sc = refs[5 + 4 * L]          # (T*B_pad, H_pad) VMEM scratch (layer outputs)
        gi_sc = refs[6 + 4 * L]           # (T*B_pad, 3*H_pad) VMEM scratch (hoisted gi)

        lengths = len_ref[...]                                   # (B_pad, 1) int32
        out_h = jnp.zeros((B_pad, H_pad), jnp.float32)           # selected last-valid h

        for l in range(L):
            wih = layer_refs[4 * l][...]       # (in_pad, 3*H_pad), gate slabs of width H_pad
            whh = layer_refs[4 * l + 1][...]   # (H_pad, 3*H_pad)
            bih = layer_refs[4 * l + 2][...]   # (1, 3*H_pad)
            bhh = layer_refs[4 * l + 3][...]   # (1, 3*H_pad)

            # Hoisted input projection: ONE big MXU matmul over all T timesteps.
            x_all = emb_ref[...] if l == 0 else seq_sc[...]
            gi_sc[...] = jnp.dot(x_all, wih, preferred_element_type=jnp.float32) + bih

            h = jnp.zeros((B_pad, H_pad), jnp.float32)
            last_layer = (l == L - 1)
            for t in range(T):                                   # static, fully unrolled
                gi = gi_sc[pl.ds(t * B_pad, B_pad), :]           # static sublane-aligned slice
                gh = jnp.dot(h, whh, preferred_element_type=jnp.float32) + bhh
                # gate order [r, z, n]; each slab is 128-lane aligned (width H_pad).
                r = jax.nn.sigmoid(gi[:, 0:H_pad] + gh[:, 0:H_pad])
                z = jax.nn.sigmoid(gi[:, H_pad:2 * H_pad] + gh[:, H_pad:2 * H_pad])
                n = jnp.tanh(gi[:, 2 * H_pad:3 * H_pad] + r * gh[:, 2 * H_pad:3 * H_pad])
                h = (1.0 - z) * n + z * h
                if not last_layer:
                    seq_sc[pl.ds(t * B_pad, B_pad), :] = h       # input for next layer's gi
                else:
                    # select h at the last valid step: t == lengths[b] - 1
                    out_h = jnp.where(lengths == (t + 1), h, out_h)

        # l2norm (rsqrt on EUP, eps avoids NaN on all-zero rows) + fc, lane-dense output.
        ssq = jnp.sum(out_h * out_h, axis=-1, keepdims=True)
        xn = out_h * lax.rsqrt(ssq + 1e-12)
        y = jnp.dot(xn, fcw_ref[...], preferred_element_type=jnp.float32) + fcb_ref[...]
        out_ref[...] = y.astype(out_ref.dtype)

    return kernel


def text_encoder_fused(emb_flat, lengths2d, gru_layers, fc_w_t, fc_b,
                       *, T, B_pad, H_pad, O_pad):
    num_layers = len(gru_layers)
    inputs = [emb_flat, lengths2d]
    for lw in gru_layers:
        inputs += [lw["w_ih_t"], lw["w_hh_t"], lw["b_ih"], lw["b_hh"]]
    inputs += [fc_w_t, fc_b]

    kernel = _make_text_encoder_kernel(num_layers, T, B_pad, H_pad)
    return pl.pallas_call(
        kernel,
        out_shape=jax.ShapeDtypeStruct((B_pad, O_pad), jnp.float32),
        in_specs=[pl.BlockSpec(memory_space=pltpu.MemorySpace.VMEM)] * len(inputs),
        out_specs=pl.BlockSpec(memory_space=pltpu.MemorySpace.VMEM),
        scratch_shapes=[
            pltpu.VMEM((T * B_pad, H_pad), jnp.float32),      # layer-output sequence
            pltpu.VMEM((T * B_pad, 3 * H_pad), jnp.float32),  # hoisted gi for current layer
        ],
    )(*inputs)


# --------------------------------------------------------------------------
# Full TextEncoder forward.
# --------------------------------------------------------------------------
@functools.partial(jax.jit, static_argnames=("output_size", "use_abs"))
def text_encoder_forward(params, x_ids, lengths, *, output_size, use_abs=False):
    """
    params : dict with pre-padded/pre-transposed weights (see init_params)
    x_ids  : (B, T) int32 token ids (batch_first, like PyTorch)
    lengths: (B,) int32 valid lengths
    """
    B, T = x_ids.shape
    B_pad = _round_up(max(B, 8), 8)
    embed = params["embed"]                       # (vocab, E_pad)
    E_pad = embed.shape[1]
    H_pad = params["gru"][0]["w_hh_t"].shape[0]
    O_pad = params["fc_w_t"].shape[1]

    if B_pad != B:
        # TODO(synk): zero-length rows (length 0) are never selected -> output row is fc bias
        # of a zero vector; PyTorch's pack_padded_sequence would reject length 0.
        x_ids = jnp.pad(x_ids, ((0, B_pad - B), (0, 0)))
        lengths = jnp.pad(lengths, (0, B_pad - B))

    # Embedding lookup (glue), time-major, flattened to (T*B_pad, E_pad): row = t*B_pad + b.
    emb_flat = embed[x_ids.T].reshape(T * B_pad, E_pad)
    lengths2d = lengths.astype(jnp.int32).reshape(B_pad, 1)

    # TODO(synk): nn.Dropout is identity at inference; no RNG-driven dropout applied here.
    out_pad = text_encoder_fused(emb_flat, lengths2d, params["gru"],
                                 params["fc_w_t"], params["fc_b"],
                                 T=T, B_pad=B_pad, H_pad=H_pad, O_pad=O_pad)
    out = out_pad[:B, :output_size]
    if use_abs:
        out = jnp.abs(out)
    return out


# --------------------------------------------------------------------------
# Parameter init (matches the PyTorch module's init), stored pre-padded/transposed.
# --------------------------------------------------------------------------
def _pad_gate_weight_t(w, H, H_pad, in_dim, in_pad):
    """w: (3H, in_dim) torch layout, gates [r,z,n] -> (in_pad, 3*H_pad), gate slabs padded."""
    w3 = w.reshape(3, H, in_dim)
    w3 = jnp.pad(w3, ((0, 0), (0, H_pad - H), (0, in_pad - in_dim)))
    return jnp.transpose(w3, (2, 0, 1)).reshape(in_pad, 3 * H_pad)


def _pad_gate_bias(b, H, H_pad):
    b3 = jnp.pad(b.reshape(3, H), ((0, 0), (0, H_pad - H)))
    return b3.reshape(1, 3 * H_pad)


def init_params(key, vocab_size, embed_dim, hidden_size, output_size, num_layers):
    """Returns (padded params for the kernel, raw unpadded params for the reference)."""
    E_pad = _round_up(embed_dim, 128)
    H_pad = _round_up(hidden_size, 128)
    O_pad = _round_up(output_size, 128)

    keys = jax.random.split(key, 2 + 4 * num_layers)

    # embed.weight.uniform_(-0.1, 0.1)
    embed = jax.random.uniform(keys[0], (vocab_size, embed_dim),
                               minval=-0.1, maxval=0.1, dtype=jnp.float32)
    # fc: uniform(-r, r), bias zero
    r = (6.0 ** 0.5) / ((hidden_size + output_size) ** 0.5)
    fc_w = jax.random.uniform(keys[1], (output_size, hidden_size),
                              minval=-r, maxval=r, dtype=jnp.float32)
    fc_b = jnp.zeros((output_size,), jnp.float32)

    # GRU default init: U(-1/sqrt(H), 1/sqrt(H)), gate order [r, z, n]
    k = 1.0 / (hidden_size ** 0.5)
    gru_pad, gru_raw = [], []
    for l in range(num_layers):
        in_dim = embed_dim if l == 0 else hidden_size
        in_pad = E_pad if l == 0 else H_pad
        kk = keys[2 + 4 * l: 2 + 4 * (l + 1)]
        w_ih = jax.random.uniform(kk[0], (3 * hidden_size, in_dim),
                                  minval=-k, maxval=k, dtype=jnp.float32)
        w_hh = jax.random.uniform(kk[1], (3 * hidden_size, hidden_size),
                                  minval=-k, maxval=k, dtype=jnp.float32)
        b_ih = jax.random.uniform(kk[2], (3 * hidden_size,),
                                  minval=-k, maxval=k, dtype=jnp.float32)
        b_hh = jax.random.uniform(kk[3], (3 * hidden_size,),
                                  minval=-k, maxval=k, dtype=jnp.float32)
        gru_raw.append({"w_ih": w_ih, "w_hh": w_hh, "b_ih": b_ih, "b_hh": b_hh})
        gru_pad.append({
            "w_ih_t": _pad_gate_weight_t(w_ih, hidden_size, H_pad, in_dim, in_pad),
            "w_hh_t": _pad_gate_weight_t(w_hh, hidden_size, H_pad, hidden_size, H_pad),
            "b_ih": _pad_gate_bias(b_ih, hidden_size, H_pad),
            "b_hh": _pad_gate_bias(b_hh, hidden_size, H_pad),
        })

    params = {
        "embed": jnp.pad(embed, ((0, 0), (0, E_pad - embed_dim))),
        "gru": gru_pad,
        "fc_w_t": jnp.pad(fc_w.T, ((0, H_pad - hidden_size), (0, O_pad - output_size))),
        "fc_b": jnp.pad(fc_b.reshape(1, output_size), ((0, 0), (0, O_pad - output_size))),
    }
    raw = {"embed": embed, "gru": gru_raw, "fc_w": fc_w, "fc_b": fc_b}
    return params, raw


# --------------------------------------------------------------------------
# Pure-JAX reference (direct transcription of the PyTorch math, unpadded).
# --------------------------------------------------------------------------
def reference_forward(raw, x_ids, lengths, use_abs=False):
    emb = raw["embed"][x_ids]                       # (B, T, E)
    B, T, _ = emb.shape
    h_seq = jnp.transpose(emb, (1, 0, 2))           # (T, B, E)
    for layer in raw["gru"]:
        w_ih, w_hh = layer["w_ih"], layer["w_hh"]
        b_ih, b_hh = layer["b_ih"], layer["b_hh"]
        H = w_hh.shape[1]
        h = jnp.zeros((B, H), jnp.float32)
        outs = []
        for t in range(T):
            gi = h_seq[t] @ w_ih.T + b_ih
            gh = h @ w_hh.T + b_hh
            i_r, i_z, i_n = jnp.split(gi, 3, axis=-1)
            h_r, h_z, h_n = jnp.split(gh, 3, axis=-1)
            r = jax.nn.sigmoid(i_r + h_r)
            z = jax.nn.sigmoid(i_z + h_z)
            n = jnp.tanh(i_n + r * h_n)
            h = (1.0 - z) * n + z * h
            outs.append(h)
        h_seq = jnp.stack(outs, axis=0)
    padded = jnp.transpose(h_seq, (1, 0, 2))        # (B, T, H)
    out = padded[jnp.arange(B), lengths - 1]        # last valid step
    out = out * lax.rsqrt(jnp.sum(out * out, axis=-1, keepdims=True) + 1e-12)
    out = out @ raw["fc_w"].T + raw["fc_b"]
    if use_abs:
        out = jnp.abs(out)
    return out


if __name__ == "__main__":
    vocab_size, embed_dim, hidden_size, output_size = 50, 32, 32, 32
    num_layers = 2
    B, T = 2, 8

    key = jax.random.PRNGKey(0)
    pkey, xkey = jax.random.split(key)
    params, raw = init_params(pkey, vocab_size, embed_dim, hidden_size,
                              output_size, num_layers)

    x_ids = jax.random.randint(xkey, (B, T), 0, vocab_size, dtype=jnp.int32)
    lengths = jnp.array([8, 5], dtype=jnp.int32)

    out = text_encoder_forward(params, x_ids, lengths,
                               output_size=output_size, use_abs=False)
    jax.block_until_ready(out)
    assert out.shape == (B, output_size)

    ref = reference_forward(raw, x_ids, lengths, use_abs=False)
    err = float(jnp.max(jnp.abs(out - ref)))
    assert err < 1e-3, f"mismatch vs reference: {err}"

    print("KERNEL_OK")
</pallas_src>

<mosaic_0001>
module attributes {stable_mosaic.version = 11 : i64} {
  func.func @kernel(%arg0: memref<64x128xf32, #tpu.memory_space<vmem>>, %arg1: memref<8x1xi32, #tpu.memory_space<vmem>>, %arg2: memref<128x384xf32, #tpu.memory_space<vmem>>, %arg3: memref<128x384xf32, #tpu.memory_space<vmem>>, %arg4: memref<1x384xf32, #tpu.memory_space<vmem>>, %arg5: memref<1x384xf32, #tpu.memory_space<vmem>>, %arg6: memref<128x384xf32, #tpu.memory_space<vmem>>, %arg7: memref<128x384xf32, #tpu.memory_space<vmem>>, %arg8: memref<1x384xf32, #tpu.memory_space<vmem>>, %arg9: memref<1x384xf32, #tpu.memory_space<vmem>>, %arg10: memref<128x128xf32, #tpu.memory_space<vmem>>, %arg11: memref<1x128xf32, #tpu.memory_space<vmem>>, %arg12: memref<8x128xf32, #tpu.memory_space<vmem>>, %arg13: memref<64x128xf32, #tpu.memory_space<vmem>>, %arg14: memref<64x384xf32, #tpu.memory_space<vmem>>) attributes {dimension_semantics = [], scalar_prefetch = 0 : i64, scratch_operands = 2 : i64, tpu.core_type = #tpu.core_type<tc>} {
    %c0 = arith.constant 0 : index
    %c0_0 = arith.constant 0 : index
    %0 = vector.load %arg1[%c0, %c0_0] : memref<8x1xi32, #tpu.memory_space<vmem>>, vector<8x1xi32>
    %cst = arith.constant 0.000000e+00 : f32
    %1 = vector.broadcast %cst : f32 to vector<8x128xf32>
    %c0_1 = arith.constant 0 : index
    %c0_2 = arith.constant 0 : index
    %2 = vector.load %arg2[%c0_1, %c0_2] : memref<128x384xf32, #tpu.memory_space<vmem>>, vector<128x384xf32>
    %c0_3 = arith.constant 0 : index
    %c0_4 = arith.constant 0 : index
    %3 = vector.load %arg3[%c0_3, %c0_4] : memref<128x384xf32, #tpu.memory_space<vmem>>, vector<128x384xf32>
    %c0_5 = arith.constant 0 : index
    %c0_6 = arith.constant 0 : index
    %4 = vector.load %arg4[%c0_5, %c0_6] : memref<1x384xf32, #tpu.memory_space<vmem>>, vector<1x384xf32>
    %c0_7 = arith.constant 0 : index
    %c0_8 = arith.constant 0 : index
    %5 = vector.load %arg5[%c0_7, %c0_8] : memref<1x384xf32, #tpu.memory_space<vmem>>, vector<1x384xf32>
    %c0_9 = arith.constant 0 : index
    %c0_10 = arith.constant 0 : index
    %6 = vector.load %arg0[%c0_9, %c0_10] : memref<64x128xf32, #tpu.memory_space<vmem>>, vector<64x128xf32>
    %cst_11 = arith.constant dense<0.000000e+00> : vector<64x384xf32>
    %7 = tpu.matmul %6, %2, %cst_11 {dimension_numbers = #tpu.dot_dimension_numbers<[1], [0], [0], [1], [0, 0, 1, 1], [], []>} : vector<64x128xf32>, vector<128x384xf32>, vector<64x384xf32> -> vector<64x384xf32>
    %8 = vector.broadcast %4 : vector<1x384xf32> to vector<64x384xf32>
    %9 = arith.addf %7, %8 : vector<64x384xf32>
    %c0_12 = arith.constant 0 : index
    %c0_13 = arith.constant 0 : index
    %10 = vector.load %arg14[%c0_12, %c0_13] : memref<64x384xf32, #tpu.memory_space<vmem>>, vector<64x384xf32>
    tpu.vector_store %arg14[%c0_12, %c0_13], %9 {strides = array<i32>} : memref<64x384xf32, #tpu.memory_space<vmem>>, vector<64x384xf32>,
    %cst_14 = arith.constant 0.000000e+00 : f32
    %11 = vector.broadcast %cst_14 : f32 to vector<8x128xf32>
    %c0_15 = arith.constant 0 : index
    %c0_16 = arith.constant 0 : index
    %12 = vector.load %arg14[%c0_15, %c0_16] : memref<64x384xf32, #tpu.memory_space<vmem>>, vector<8x384xf32>
    %cst_17 = arith.constant dense<0.000000e+00> : vector<8x384xf32>
    %13 = tpu.matmul %11, %3, %cst_17 {dimension_numbers = #tpu.dot_dimension_numbers<[1], [0], [0], [1], [0, 0, 1, 1], [], []>} : vector<8x128xf32>, vector<128x384xf32>, vector<8x384xf32> -> vector<8x384xf32>
    %14 = vector.broadcast %5 : vector<1x384xf32> to vector<8x384xf32>
    %15 = arith.addf %13, %14 : vector<8x384xf32>
    %16 = vector.extract_strided_slice %12 {offsets = [0, 0], sizes = [8, 128], strides = [1, 1]} : vector<8x384xf32> to vector<8x128xf32>
    %17 = vector.extract_strided_slice %15 {offsets = [0, 0], sizes = [8, 128], strides = [1, 1]} : vector<8x384xf32> to vector<8x128xf32>
    %18 = arith.addf %16, %17 : vector<8x128xf32>
    %19 = arith.negf %18 : vector<8x128xf32>
    %20 = math.exp %19 : vector<8x128xf32>
    %cst_18 = arith.constant 1.000000e+00 : f32
    %21 = vector.broadcast %cst_18 : f32 to vector<8x128xf32>
    %22 = arith.addf %21, %20 : vector<8x128xf32>
    %23 = arith.divf %21, %22 : vector<8x128xf32>
    %24 = vector.extract_strided_slice %12 {offsets = [0, 128], sizes = [8, 128], strides = [1, 1]} : vector<8x384xf32> to vector<8x128xf32>
    %25 = vector.extract_strided_slice %15 {offsets = [0, 128], sizes = [8, 128], strides = [1, 1]} : vector<8x384xf32> to vector<8x128xf32>
    %26 = arith.addf %24, %25 : vector<8x128xf32>
    %27 = arith.negf %26 : vector<8x128xf32>
    %28 = math.exp %27 : vector<8x128xf32>
    %cst_19 = arith.constant 1.000000e+00 : f32
    %29 = vector.broadcast %cst_19 : f32 to vector<8x128xf32>
    %30 = arith.addf %29, %28 : vector<8x128xf32>
    %31 = arith.divf %29, %30 : vector<8x128xf32>
    %32 = vector.extract_strided_slice %12 {offsets = [0, 256], sizes = [8, 128], strides = [1, 1]} : vector<8x384xf32> to vector<8x128xf32>
    %33 = vector.extract_strided_slice %15 {offsets = [0, 256], sizes = [8, 128], strides = [1, 1]} : vector<8x384xf32> to vector<8x128xf32>
    %34 = arith.mulf %23, %33 : vector<8x128xf32>
    %35 = arith.addf %32, %34 : vector<8x128xf32>
    %36 = math.tanh %35 : vector<8x128xf32>
    %cst_20 = arith.constant 1.000000e+00 : f32
    %37 = vector.broadcast %cst_20 : f32 to vector<8x128xf32>
    %38 = arith.subf %37, %31 : vector<8x128xf32>
    %39 = arith.mulf %38, %36 : vector<8x128xf32>
    %40 = arith.mulf %31, %11 : vector<8x128xf32>
    %41 = arith.addf %39, %40 : vector<8x128xf32>
    %c0_21 = arith.constant 0 : index
    %c0_22 = arith.constant 0 : index
    %42 = vector.load %arg13[%c0_21, %c0_22] : memref<64x128xf32, #tpu.memory_space<vmem>>, vector<8x128xf32>
    tpu.vector_store %arg13[%c0_21, %c0_22], %41 {strides = array<i32>} : memref<64x128xf32, #tpu.memory_space<vmem>>, vector<8x128xf32>,
    %c8 = arith.constant 8 : index
    %c0_23 = arith.constant 0 : index
    %43 = vector.load %arg14[%c8, %c0_23] : memref<64x384xf32, #tpu.memory_space<vmem>>, vector<8x384xf32>
    %cst_24 = arith.constant dense<0.000000e+00> : vector<8x384xf32>
    %44 = tpu.matmul %41, %3, %cst_24 {dimension_numbers = #tpu.dot_dimension_numbers<[1], [0], [0], [1], [0, 0, 1, 1], [], []>} : vector<8x128xf32>, vector<128x384xf32>, vector<8x384xf32> -> vector<8x384xf32>
    %45 = vector.broadcast %5 : vector<1x384xf32> to vector<8x384xf32>
    %46 = arith.addf %44, %45 : vector<8x384xf32>
    %47 = vector.extract_strided_slice %43 {offsets = [0, 0], sizes = [8, 128], strides = [1, 1]} : vector<8x384xf32> to vector<8x128xf32>
    %48 = vector.extract_strided_slice %46 {offsets = [0, 0], sizes = [8, 128], strides = [1, 1]} : vector<8x384xf32> to vector<8x128xf32>
    %49 = arith.addf %47, %48 : vector<8x128xf32>
    %50 = arith.negf %49 : vector<8x128xf32>
    %51 = math.exp %50 : vector<8x128xf32>
    %cst_25 = arith.constant 1.000000e+00 : f32
    %52 = vector.broadcast %cst_25 : f32 to vector<8x128xf32>
    %53 = arith.addf %52, %51 : vector<8x128xf32>
    %54 = arith.divf %52, %53 : vector<8x128xf32>
    %55 = vector.extract_strided_slice %43 {offsets = [0, 128], sizes = [8, 128], strides = [1, 1]} : vector<8x384xf32> to vector<8x128xf32>
    %56 = vector.extract_strided_slice %46 {offsets = [0, 128], sizes = [8, 128], strides = [1, 1]} : vector<8x384xf32> to vector<8x128xf32>
    %57 = arith.addf %55, %56 : vector<8x128xf32>
    %58 = arith.negf %57 : vector<8x128xf32>
    %59 = math.exp %58 : vector<8x128xf32>
    %cst_26 = arith.constant 1.000000e+00 : f32
    %60 = vector.broadcast %cst_26 : f32 to vector<8x128xf32>
    %61 = arith.addf %60, %59 : vector<8x128xf32>
    %62 = arith.divf %60, %61 : vector<8x128xf32>
    %63 = vector.extract_strided_slice %43 {offsets = [0, 256], sizes = [8, 128], strides = [1, 1]} : vector<8x384xf32> to vector<8x128xf32>
    %64 = vector.extract_strided_slice %46 {offsets = [0, 256], sizes = [8, 128], strides = [1, 1]} : vector<8x384xf32> to vector<8x128xf32>
    %65 = arith.mulf %54, %64 : vector<8x128xf32>
    %66 = arith.addf %63, %65 : vector<8x128xf32>
    %67 = math.tanh %66 : vector<8x128xf32>
    %cst_27 = arith.constant 1.000000e+00 : f32
    %68 = vector.broadcast %cst_27 : f32 to vector<8x128xf32>
    %69 = arith.subf %68, %62 : vector<8x128xf32>
    %70 = arith.mulf %69, %67 : vector<8x128xf32>
    %71 = arith.mulf %62, %41 : vector<8x128xf32>
    %72 = arith.addf %70, %71 : vector<8x128xf32>
    %c8_28 = arith.constant 8 : index
    %c0_29 = arith.constant 0 : index
    %73 = vector.load %arg13[%c8_28, %c0_29] : memref<64x128xf32, #tpu.memory_space<vmem>>, vector<8x128xf32>
    tpu.vector_store %arg13[%c8_28, %c0_29], %72 {strides = array<i32>} : memref<64x128xf32, #tpu.memory_space<vmem>>, vector<8x128xf32>,
    %c16 = arith.constant 16 : index
    %c0_30 = arith.constant 0 : index
    %74 = vector.load %arg14[%c16, %c0_30] : memref<64x384xf32, #tpu.memory_space<vmem>>, vector<8x384xf32>
    %cst_31 = arith.constant dense<0.000000e+00> : vector<8x384xf32>
    %75 = tpu.matmul %72, %3, %cst_31 {dimension_numbers = #tpu.dot_dimension_numbers<[1], [0], [0], [1], [0, 0, 1, 1], [], []>} : vector<8x128xf32>, vector<128x384xf32>, vector<8x384xf32> -> vector<8x384xf32>
    %76 = vector.broadcast %5 : vector<1x384xf32> to vector<8x384xf32>
    %77 = arith.addf %75, %76 : vector<8x384xf32>
    %78 = vector.extract_strided_slice %74 {offsets = [0, 0], sizes = [8, 128], strides = [1, 1]} : vector<8x384xf32> to vector<8x128xf32>
    %79 = vector.extract_strided_slice %77 {offsets = [0, 0], sizes = [8, 128], strides = [1, 1]} : vector<8x384xf32> to vector<8x128xf32>
    %80 = arith.addf %78, %79 : vector<8x128xf32>
    %81 = arith.negf %80 : vector<8x128xf32>
    %82 = math.exp %81 : vector<8x128xf32>
    %cst_32 = arith.constant 1.000000e+00 : f32
    %83 = vector.broadcast %cst_32 : f32 to vector<8x128xf32>
    %84 = arith.addf %83, %82 : vector<8x128xf32>
    %85 = arith.divf %83, %84 : vector<8x128xf32>
    %86 = vector.extract_strided_slice %74 {offsets = [0, 128], sizes = [8, 128], strides = [1, 1]} : vector<8x384xf32> to vector<8x128xf32>
    %87 = vector.extract_strided_slice %77 {offsets = [0, 128], sizes = [8, 128], strides = [1, 1]} : vector<8x384xf32> to vector<8x128xf32>
    %88 = arith.addf %86, %87 : vector<8x128xf32>
    %89 = arith.negf %88 : vector<8x128xf32>
    %90 = math.exp %89 : vector<8x128xf32>
    %cst_33 = arith.constant 1.000000e+00 : f32
    %91 = vector.broadcast %cst_33 : f32 to vector<8x128xf32>
    %92 = arith.addf %91, %90 : vector<8x128xf32>
    %93 = arith.divf %91, %92 : vector<8x128xf32>
    %94 = vector.extract_strided_slice %74 {offsets = [0, 256], sizes = [8, 128], strides = [1, 1]} : vector<8x384xf32> to vector<8x128xf32>
    %95 = vector.extract_strided_slice %77 {offsets = [0, 256], sizes = [8, 128], strides = [1, 1]} : vector<8x384xf32> to vector<8x128xf32>
    %96 = arith.mulf %85, %95 : vector<8x128xf32>
    %97 = arith.addf %94, %96 : vector<8x128xf32>
    %98 = math.tanh %97 : vector<8x128xf32>
    %cst_34 = arith.constant 1.000000e+00 : f32
    %99 = vector.broadcast %cst_34 : f32 to vector<8x128xf32>
    %100 = arith.subf %99, %93 : vector<8x128xf32>
    %101 = arith.mulf %100, %98 : vector<8x128xf32>
    %102 = arith.mulf %93, %72 : vector<8x128xf32>
    %103 = arith.addf %101, %102 : vector<8x128xf32>
    %c16_35 = arith.constant 16 : index
    %c0_36 = arith.constant 0 : index
    %104 = vector.load %arg13[%c16_35, %c0_36] : memref<64x128xf32, #tpu.memory_space<vmem>>, vector<8x128xf32>
    tpu.vector_store %arg13[%c16_35, %c0_36], %103 {strides = array<i32>} : memref<64x128xf32, #tpu.memory_space<vmem>>, vector<8x128xf32>,
    %c24 = arith.constant 24 : index
    %c0_37 = arith.constant 0 : index
    %105 = vector.load %arg14[%c24, %c0_37] : memref<64x384xf32, #tpu.memory_space<vmem>>, vector<8x384xf32>
    %cst_38 = arith.constant dense<0.000000e+00> : vector<8x384xf32>
    %106 = tpu.matmul %103, %3, %cst_38 {dimension_numbers = #tpu.dot_dimension_numbers<[1], [0], [0], [1], [0, 0, 1, 1], [], []>} : vector<8x128xf32>, vector<128x384xf32>, vector<8x384xf32> -> vector<8x384xf32>
    %107 = vector.broadcast %5 : vector<1x384xf32> to vector<8x384xf32>
    %108 = arith.addf %106, %107 : vector<8x384xf32>
    %109 = vector.extract_strided_slice %105 {offsets = [0, 0], sizes = [8, 128], strides = [1, 1]} : vector<8x384xf32> to vector<8x128xf32>
    %110 = vector.extract_strided_slice %108 {offsets = [0, 0], sizes = [8, 128], strides = [1, 1]} : vector<8x384xf32> to vector<8x128xf32>
    %111 = arith.addf %109, %110 : vector<8x128xf32>
    %112 = arith.negf %111 : vector<8x128xf32>
    %113 = math.exp %112 : vector<8x128xf32>
    %cst_39 = arith.constant 1.000000e+00 : f32
    %114 = vector.broadcast %cst_39 : f32 to vector<8x128xf32>
    %115 = arith.addf %114, %113 : vector<8x128xf32>
    %116 = arith.divf %114, %115 : vector<8x128xf32>
    %117 = vector.extract_strided_slice %105 {offsets = [0, 128], sizes = [8, 128], strides = [1, 1]} : vector<8x384xf32> to vector<8x128xf32>
    %118 = vector.extract_strided_slice %108 {offsets = [0, 128], sizes = [8, 128], strides = [1, 1]} : vector<8x384xf32> to vector<8x128xf32>
    %119 = arith.addf %117, %118 : vector<8x128xf32>
    %120 = arith.negf %119 : vector<8x128xf32>
    %121 = math.exp %120 : vector<8x128xf32>
    %cst_40 = arith.constant 1.000000e+00 : f32
    %122 = vector.broadcast %cst_40 : f32 to vector<8x128xf32>
    %123 = arith.addf %122, %121 : vector<8x128xf32>
    %124 = arith.divf %122, %123 : vector<8x128xf32>
    %125 = vector.extract_strided_slice %105 {offsets = [0, 256], sizes = [8, 128], strides = [1, 1]} : vector<8x384xf32> to vector<8x128xf32>
    %126 = vector.extract_strided_slice %108 {offsets = [0, 256], sizes = [8, 128], strides = [1, 1]} : vector<8x384xf32> to vector<8x128xf32>
    %127 = arith.mulf %116, %126 : vector<8x128xf32>
    %128 = arith.addf %125, %127 : vector<8x128xf32>
    %129 = math.tanh %128 : vector<8x128xf32>
    %cst_41 = arith.constant 1.000000e+00 : f32
    %130 = vector.broadcast %cst_41 : f32 to vector<8x128xf32>
    %131 = arith.subf %130, %124 : vector<8x128xf32>
    %132 = arith.mulf %131, %129 : vector<8x128xf32>
    %133 = arith.mulf %124, %103 : vector<8x128xf32>
    %134 = arith.addf %132, %133 : vector<8x128xf32>
    %c24_42 = arith.constant 24 : index
    %c0_43 = arith.constant 0 : index
    %135 = vector.load %arg13[%c24_42, %c0_43] : memref<64x128xf32, #tpu.memory_space<vmem>>, vector<8x128xf32>
    tpu.vector_store %arg13[%c24_42, %c0_43], %134 {strides = array<i32>} : memref<64x128xf32, #tpu.memory_space<vmem>>, vector<8x128xf32>,
    %c32 = arith.constant 32 : index
    %c0_44 = arith.constant 0 : index
    %136 = vector.load %arg14[%c32, %c0_44] : memref<64x384xf32, #tpu.memory_space<vmem>>, vector<8x384xf32>
    %cst_45 = arith.constant dense<0.000000e+00> : vector<8x384xf32>
    %137 = tpu.matmul %134, %3, %cst_45 {dimension_numbers = #tpu.dot_dimension_numbers<[1], [0], [0], [1], [0, 0, 1, 1], [], []>} : vector<8x128xf32>, vector<128x384xf32>, vector<8x384xf32> -> vector<8x384xf32>
    %138 = vector.broadcast %5 : vector<1x384xf32> to vector<8x384xf32>
    %139 = arith.addf %137, %138 : vector<8x384xf32>
    %140 = vector.extract_strided_slice %136 {offsets = [0, 0], sizes = [8, 128], strides = [1, 1]} : vector<8x384xf32> to vector<8x128xf32>
    %141 = vector.extract_strided_slice %139 {offsets = [0, 0], sizes = [8, 128], strides = [1, 1]} : vector<8x384xf32> to vector<8x128xf32>
    %142 = arith.addf %140, %141 : vector<8x128xf32>
    %143 = arith.negf %142 : vector<8x128xf32>
    %144 = math.exp %143 : vector<8x128xf32>
    %cst_46 = arith.constant 1.000000e+00 : f32
    %145 = vector.broadcast %cst_46 : f32 to vector<8x128xf32>
    %146 = arith.addf %145, %144 : vector<8x128xf32>
    %147 = arith.divf %145, %146 : vector<8x128xf32>
    %148 = vector.extract_strided_slice %136 {offsets = [0, 128], sizes = [8, 128], strides = [1, 1]} : vector<8x384xf32> to vector<8x128xf32>
    %149 = vector.extract_strided_slice %139 {offsets = [0, 128], sizes = [8, 128], strides = [1, 1]} : vector<8x384xf32> to vector<8x128xf32>
    %150 = arith.addf %148, %149 : vector<8x128xf32>
    %151 = arith.negf %150 : vector<8x128xf32>
    %152 = math.exp %151 : vector<8x128xf32>
    %cst_47 = arith.constant 1.000000e+00 : f32
    %153 = vector.broadcast %cst_47 : f32 to vector<8x128xf32>
    %154 = arith.addf %153, %152 : vector<8x128xf32>
    %155 = arith.divf %153, %154 : vector<8x128xf32>
    %156 = vector.extract_strided_slice %136 {offsets = [0, 256], sizes = [8, 128], strides = [1, 1]} : vector<8x384xf32> to vector<8x128xf32>
    %157 = vector.extract_strided_slice %139 {offsets = [0, 256], sizes = [8, 128], strides = [1, 1]} : vector<8x384xf32> to vector<8x128xf32>
    %158 = arith.mulf %147, %157 : vector<8x128xf32>
    %159 = arith.addf %156, %158 : vector<8x128xf32>
    %160 = math.tanh %159 : vector<8x128xf32>
    %cst_48 = arith.constant 1.000000e+00 : f32
    %161 = vector.broadcast %cst_48 : f32 to vector<8x128xf32>
    %162 = arith.subf %161, %155 : vector<8x128xf32>
    %163 = arith.mulf %162, %160 : vector<8x128xf32>
    %164 = arith.mulf %155, %134 : vector<8x128xf32>
    %165 = arith.addf %163, %164 : vector<8x128xf32>
    %c32_49 = arith.constant 32 : index
    %c0_50 = arith.constant 0 : index
    %166 = vector.load %arg13[%c32_49, %c0_50] : memref<64x128xf32, #tpu.memory_space<vmem>>, vector<8x128xf32>
    tpu.vector_store %arg13[%c32_49, %c0_50], %165 {strides = array<i32>} : memref<64x128xf32, #tpu.memory_space<vmem>>, vector<8x128xf32>,
    %c40 = arith.constant 40 : index
    %c0_51 = arith.constant 0 : index
    %167 = vector.load %arg14[%c40, %c0_51] : memref<64x384xf32, #tpu.memory_space<vmem>>, vector<8x384xf32>
    %cst_52 = arith.constant dense<0.000000e+00> : vector<8x384xf32>
    %168 = tpu.matmul %165, %3, %cst_52 {dimension_numbers = #tpu.dot_dimension_numbers<[1], [0], [0], [1], [0, 0, 1, 1], [], []>} : vector<8x128xf32>, vector<128x384xf32>, vector<8x384xf32> -> vector<8x384xf32>
    %169 = vector.broadcast %5 : vector<1x384xf32> to vector<8x384xf32>
    %170 = arith.addf %168, %169 : vector<8x384xf32>
    %171 = vector.extract_strided_slice %167 {offsets = [0, 0], sizes = [8, 128], strides = [1, 1]} : vector<8x384xf32> to vector<8x128xf32>
    %172 = vector.extract_strided_slice %170 {offsets = [0, 0], sizes = [8, 128], strides = [1, 1]} : vector<8x384xf32> to vector<8x128xf32>
    %173 = arith.addf %171, %172 : vector<8x128xf32>
    %174 = arith.negf %173 : vector<8x128xf32>
    %175 = math.exp %174 : vector<8x128xf32>
    %cst_53 = arith.constant 1.000000e+00 : f32
    %176 = vector.broadcast %cst_53 : f32 to vector<8x128xf32>
    %177 = arith.addf %176, %175 : vector<8x128xf32>
    %178 = arith.divf %176, %177 : vector<8x128xf32>
    %179 = vector.extract_strided_slice %167 {offsets = [0, 128], sizes = [8, 128], strides = [1, 1]} : vector<8x384xf32> to vector<8x128xf32>
    %180 = vector.extract_strided_slice %170 {offsets = [0, 128], sizes = [8, 128], strides = [1, 1]} : vector<8x384xf32> to vector<8x128xf32>
    %181 = arith.addf %179, %180 : vector<8x128xf32>
    %182 = arith.negf %181 : vector<8x128xf32>
    %183 = math.exp %182 : vector<8x128xf32>
    %cst_54 = arith.constant 1.000000e+00 : f32
    %184 = vector.broadcast %cst_54 : f32 to vector<8x128xf32>
    %185 = arith.addf %184, %183 : vector<8x128xf32>
    %186 = arith.divf %184, %185 : vector<8x128xf32>
    %187 = vector.extract_strided_slice %167 {offsets = [0, 256], sizes = [8, 128], strides = [1, 1]} : vector<8x384xf32> to vector<8x128xf32>
    %188 = vector.extract_strided_slice %170 {offsets = [0, 256], sizes = [8, 128], strides = [1, 1]} : vector<8x384xf32> to vector<8x128xf32>
    %189 = arith.mulf %178, %188 : vector<8x128xf32>
    %190 = arith.addf %187, %189 : vector<8x128xf32>
    %191 = math.tanh %190 : vector<8x128xf32>
    %cst_55 = arith.constant 1.000000e+00 : f32
    %192 = vector.broadcast %cst_55 : f32 to vector<8x128xf32>
    %193 = arith.subf %192, %186 : vector<8x128xf32>
    %194 = arith.mulf %193, %191 : vector<8x128xf32>
    %195 = arith.mulf %186, %165 : vector<8x128xf32>
    %196 = arith.addf %194, %195 : vector<8x128xf32>
    %c40_56 = arith.constant 40 : index
    %c0_57 = arith.constant 0 : index
    %197 = vector.load %arg13[%c40_56, %c0_57] : memref<64x128xf32, #tpu.memory_space<vmem>>, vector<8x128xf32>
    tpu.vector_store %arg13[%c40_56, %c0_57], %196 {strides = array<i32>} : memref<64x128xf32, #tpu.memory_space<vmem>>, vector<8x128xf32>,
    %c48 = arith.constant 48 : index
    %c0_58 = arith.constant 0 : index
    %198 = vector.load %arg14[%c48, %c0_58] : memref<64x384xf32, #tpu.memory_space<vmem>>, vector<8x384xf32>
    %cst_59 = arith.constant dense<0.000000e+00> : vector<8x384xf32>
    %199 = tpu.matmul %196, %3, %cst_59 {dimension_numbers = #tpu.dot_dimension_numbers<[1], [0], [0], [1], [0, 0, 1, 1], [], []>} : vector<8x128xf32>, vector<128x384xf32>, vector<8x384xf32> -> vector<8x384xf32>
    %200 = vector.broadcast %5 : vector<1x384xf32> to vector<8x384xf32>
    %201 = arith.addf %199, %200 : vector<8x384xf32>
    %202 = vector.extract_strided_slice %198 {offsets = [0, 0], sizes = [8, 128], strides = [1, 1]} : vector<8x384xf32> to vector<8x128xf32>
    %203 = vector.extract_strided_slice %201 {offsets = [0, 0], sizes = [8, 128], strides = [1, 1]} : vector<8x384xf32> to vector<8x128xf32>
    %204 = arith.addf %202, %203 : vector<8x128xf32>
    %205 = arith.negf %204 : vector<8x128xf32>
    %206 = math.exp %205 : vector<8x128xf32>
    %cst_60 = arith.constant 1.000000e+00 : f32
    %207 = vector.broadcast %cst_60 : f32 to vector<8x128xf32>
    %208 = arith.addf %207, %206 : vector<8x128xf32>
    %209 = arith.divf %207, %208 : vector<8x128xf32>
    %210 = vector.extract_strided_slice %198 {offsets = [0, 128], sizes = [8, 128], strides = [1, 1]} : vector<8x384xf32> to vector<8x128xf32>
    %211 = vector.extract_strided_slice %201 {offsets = [0, 128], sizes = [8, 128], strides = [1, 1]} : vector<8x384xf32> to vector<8x128xf32>
    %212 = arith.addf %210, %211 : vector<8x128xf32>
    %213 = arith.negf %212 : vector<8x128xf32>
    %214 = math.exp %213 : vector<8x128xf32>
    %cst_61 = arith.constant 1.000000e+00 : f32
    %215 = vector.broadcast %cst_61 : f32 to vector<8x128xf32>
    %216 = arith.addf %215, %214 : vector<8x128xf32>
    %217 = arith.divf %215, %216 : vector<8x128xf32>
    %218 = vector.extract_strided_slice %198 {offsets = [0, 256], sizes = [8, 128], strides = [1, 1]} : vector<8x384xf32> to vector<8x128xf32>
    %219 = vector.extract_strided_slice %201 {offsets = [0, 256], sizes = [8, 128], strides = [1, 1]} : vector<8x384xf32> to vector<8x128xf32>
    %220 = arith.mulf %209, %219 : vector<8x128xf32>
    %221 = arith.addf %218, %220 : vector<8x128xf32>
    %222 = math.tanh %221 : vector<8x128xf32>
    %cst_62 = arith.constant 1.000000e+00 : f32
    %223 = vector.broadcast %cst_62 : f32 to vector<8x128xf32>
    %224 = arith.subf %223, %217 : vector<8x128xf32>
    %225 = arith.mulf %224, %222 : vector<8x128xf32>
    %226 = arith.mulf %217, %196 : vector<8x128xf32>
    %227 = arith.addf %225, %226 : vector<8x128xf32>
    %c48_63 = arith.constant 48 : index
    %c0_64 = arith.constant 0 : index
    %228 = vector.load %arg13[%c48_63, %c0_64] : memref<64x128xf32, #tpu.memory_space<vmem>>, vector<8x128xf32>
    tpu.vector_store %arg13[%c48_63, %c0_64], %227 {strides = array<i32>} : memref<64x128xf32, #tpu.memory_space<vmem>>, vector<8x128xf32>,
    %c56 = arith.constant 56 : index
    %c0_65 = arith.constant 0 : index
    %229 = vector.load %arg14[%c56, %c0_65] : memref<64x384xf32, #tpu.memory_space<vmem>>, vector<8x384xf32>
    %cst_66 = arith.constant dense<0.000000e+00> : vector<8x384xf32>
    %230 = tpu.matmul %227, %3, %cst_66 {dimension_numbers = #tpu.dot_dimension_numbers<[1], [0], [0], [1], [0, 0, 1, 1], [], []>} : vector<8x128xf32>, vector<128x384xf32>, vector<8x384xf32> -> vector<8x384xf32>
    %231 = vector.broadcast %5 : vector<1x384xf32> to vector<8x384xf32>
    %232 = arith.addf %230, %231 : vector<8x384xf32>
    %233 = vector.extract_strided_slice %229 {offsets = [0, 0], sizes = [8, 128], strides = [1, 1]} : vector<8x384xf32> to vector<8x128xf32>
    %234 = vector.extract_strided_slice %232 {offsets = [0, 0], sizes = [8, 128], strides = [1, 1]} : vector<8x384xf32> to vector<8x128xf32>
    %235 = arith.addf %233, %234 : vector<8x128xf32>
    %236 = arith.negf %235 : vector<8x128xf32>
    %237 = math.exp %236 : vector<8x128xf32>
    %cst_67 = arith.constant 1.000000e+00 : f32
    %238 = vector.broadcast %cst_67 : f32 to vector<8x128xf32>
    %239 = arith.addf %238, %237 : vector<8x128xf32>
    %240 = arith.divf %238, %239 : vector<8x128xf32>
    %241 = vector.extract_strided_slice %229 {offsets = [0, 128], sizes = [8, 128], strides = [1, 1]} : vector<8x384xf32> to vector<8x128xf32>
    %242 = vector.extract_strided_slice %232 {offsets = [0, 128], sizes = [8, 128], strides = [1, 1]} : vector<8x384xf32> to vector<8x128xf32>
    %243 = arith.addf %241, %242 : vector<8x128xf32>
    %244 = arith.negf %243 : vector<8x128xf32>
    %245 = math.exp %244 : vector<8x128xf32>
    %cst_68 = arith.constant 1.000000e+00 : f32
    %246 = vector.broadcast %cst_68 : f32 to vector<8x128xf32>
    %247 = arith.addf %246, %245 : vector<8x128xf32>
    %248 = arith.divf %246, %247 : vector<8x128xf32>
    %249 = vector.extract_strided_slice %229 {offsets = [0, 256], sizes = [8, 128], strides = [1, 1]} : vector<8x384xf32> to vector<8x128xf32>
    %250 = vector.extract_strided_slice %232 {offsets = [0, 256], sizes = [8, 128], strides = [1, 1]} : vector<8x384xf32> to vector<8x128xf32>
    %251 = arith.mulf %240, %250 : vector<8x128xf32>
    %252 = arith.addf %249, %251 : vector<8x128xf32>
    %253 = math.tanh %252 : vector<8x128xf32>
    %cst_69 = arith.constant 1.000000e+00 : f32
    %254 = vector.broadcast %cst_69 : f32 to vector<8x128xf32>
    %255 = arith.subf %254, %248 : vector<8x128xf32>
    %256 = arith.mulf %255, %253 : vector<8x128xf32>
    %257 = arith.mulf %248, %227 : vector<8x128xf32>
    %258 = arith.addf %256, %257 : vector<8x128xf32>
    %c56_70 = arith.constant 56 : index
    %c0_71 = arith.constant 0 : index
    %259 = vector.load %arg13[%c56_70, %c0_71] : memref<64x128xf32, #tpu.memory_space<vmem>>, vector<8x128xf32>
    tpu.vector_store %arg13[%c56_70, %c0_71], %258 {strides = array<i32>} : memref<64x128xf32, #tpu.memory_space<vmem>>, vector<8x128xf32>,
    %c0_72 = arith.constant 0 : index
    %c0_73 = arith.constant 0 : index
    %260 = vector.load %arg6[%c0_72, %c0_73] : memref<128x384xf32, #tpu.memory_space<vmem>>, vector<128x384xf32>
    %c0_74 = arith.constant 0 : index
    %c0_75 = arith.constant 0 : index
    %261 = vector.load %arg7[%c0_74, %c0_75] : memref<128x384xf32, #tpu.memory_space<vmem>>, vector<128x384xf32>
    %c0_76 = arith.constant 0 : index
    %c0_77 = arith.constant 0 : index
    %262 = vector.load %arg8[%c0_76, %c0_77] : memref<1x384xf32, #tpu.memory_space<vmem>>, vector<1x384xf32>
    %c0_78 = arith.constant 0 : index
    %c0_79 = arith.constant 0 : index
    %263 = vector.load %arg9[%c0_78, %c0_79] : memref<1x384xf32, #tpu.memory_space<vmem>>, vector<1x384xf32>
    %c0_80 = arith.constant 0 : index
    %c0_81 = arith.constant 0 : index
    %264 = vector.load %arg13[%c0_80, %c0_81] : memref<64x128xf32, #tpu.memory_space<vmem>>, vector<64x128xf32>
    %cst_82 = arith.constant dense<0.000000e+00> : vector<64x384xf32>
    %265 = tpu.matmul %264, %260, %cst_82 {dimension_numbers = #tpu.dot_dimension_numbers<[1], [0], [0], [1], [0, 0, 1, 1], [], []>} : vector<64x128xf32>, vector<128x384xf32>, vector<64x384xf32> -> vector<64x384xf32>
    %266 = vector.broadcast %262 : vector<1x384xf32> to vector<64x384xf32>
    %267 = arith.addf %265, %266 : vector<64x384xf32>
    %c0_83 = arith.constant 0 : index
    %c0_84 = arith.constant 0 : index
    %268 = vector.load %arg14[%c0_83, %c0_84] : memref<64x384xf32, #tpu.memory_space<vmem>>, vector<64x384xf32>
    tpu.vector_store %arg14[%c0_83, %c0_84], %267 {strides = array<i32>} : memref<64x384xf32, #tpu.memory_space<vmem>>, vector<64x384xf32>,
    %cst_85 = arith.constant 0.000000e+00 : f32
    %269 = vector.broadcast %cst_85 : f32 to vector<8x128xf32>
    %c0_86 = arith.constant 0 : index
    %c0_87 = arith.constant 0 : index
    %270 = vector.load %arg14[%c0_86, %c0_87] : memref<64x384xf32, #tpu.memory_space<vmem>>, vector<8x384xf32>
    %cst_88 = arith.constant dense<0.000000e+00> : vector<8x384xf32>
    %271 = tpu.matmul %269, %261, %cst_88 {dimension_numbers = #tpu.dot_dimension_numbers<[1], [0], [0], [1], [0, 0, 1, 1], [], []>} : vector<8x128xf32>, vector<128x384xf32>, vector<8x384xf32> -> vector<8x384xf32>
    %272 = vector.broadcast %263 : vector<1x384xf32> to vector<8x384xf32>
    %273 = arith.addf %271, %272 : vector<8x384xf32>
    %274 = vector.extract_strided_slice %270 {offsets = [0, 0], sizes = [8, 128], strides = [1, 1]} : vector<8x384xf32> to vector<8x128xf32>
    %275 = vector.extract_strided_slice %273 {offsets = [0, 0], sizes = [8, 128], strides = [1, 1]} : vector<8x384xf32> to vector<8x128xf32>
    %276 = arith.addf %274, %275 : vector<8x128xf32>
    %277 = arith.negf %276 : vector<8x128xf32>
    %278 = math.exp %277 : vector<8x128xf32>
    %cst_89 = arith.constant 1.000000e+00 : f32
    %279 = vector.broadcast %cst_89 : f32 to vector<8x128xf32>
    %280 = arith.addf %279, %278 : vector<8x128xf32>
    %281 = arith.divf %279, %280 : vector<8x128xf32>
    %282 = vector.extract_strided_slice %270 {offsets = [0, 128], sizes = [8, 128], strides = [1, 1]} : vector<8x384xf32> to vector<8x128xf32>
    %283 = vector.extract_strided_slice %273 {offsets = [0, 128], sizes = [8, 128], strides = [1, 1]} : vector<8x384xf32> to vector<8x128xf32>
    %284 = arith.addf %282, %283 : vector<8x128xf32>
    %285 = arith.negf %284 : vector<8x128xf32>
    %286 = math.exp %285 : vector<8x128xf32>
    %cst_90 = arith.constant 1.000000e+00 : f32
    %287 = vector.broadcast %cst_90 : f32 to vector<8x128xf32>
    %288 = arith.addf %287, %286 : vector<8x128xf32>
    %289 = arith.divf %287, %288 : vector<8x128xf32>
    %290 = vector.extract_strided_slice %270 {offsets = [0, 256], sizes = [8, 128], strides = [1, 1]} : vector<8x384xf32> to vector<8x128xf32>
    %291 = vector.extract_strided_slice %273 {offsets = [0, 256], sizes = [8, 128], strides = [1, 1]} : vector<8x384xf32> to vector<8x128xf32>
    %292 = arith.mulf %281, %291 : vector<8x128xf32>
    %293 = arith.addf %290, %292 : vector<8x128xf32>
    %294 = math.tanh %293 : vector<8x128xf32>
    %cst_91 = arith.constant 1.000000e+00 : f32
    %295 = vector.broadcast %cst_91 : f32 to vector<8x128xf32>
    %296 = arith.subf %295, %289 : vector<8x128xf32>
    %297 = arith.mulf %296, %294 : vector<8x128xf32>
    %298 = arith.mulf %289, %269 : vector<8x128xf32>
    %299 = arith.addf %297, %298 : vector<8x128xf32>
    %c1_i32 = arith.constant 1 : i32
    %300 = vector.broadcast %c1_i32 : i32 to vector<8x1xi32>
    %301 = arith.cmpi eq, %0, %300 : vector<8x1xi32>
    %302 = vector.shape_cast %301 : vector<8x1xi1> to vector<8x1xi1>
    %303 = vector.broadcast %302 : vector<8x1xi1> to vector<8x128xi1>
    %304 = arith.select %303, %299, %1 : vector<8x128xi1>, vector<8x128xf32>
    %c8_92 = arith.constant 8 : index
    %c0_93 = arith.constant 0 : index
    %305 = vector.load %arg14[%c8_92, %c0_93] : memref<64x384xf32, #tpu.memory_space<vmem>>, vector<8x384xf32>
    %cst_94 = arith.constant dense<0.000000e+00> : vector<8x384xf32>
    %306 = tpu.matmul %299, %261, %cst_94 {dimension_numbers = #tpu.dot_dimension_numbers<[1], [0], [0], [1], [0, 0, 1, 1], [], []>} : vector<8x128xf32>, vector<128x384xf32>, vector<8x384xf32> -> vector<8x384xf32>
    %307 = vector.broadcast %263 : vector<1x384xf32> to vector<8x384xf32>
    %308 = arith.addf %306, %307 : vector<8x384xf32>
    %309 = vector.extract_strided_slice %305 {offsets = [0, 0], sizes = [8, 128], strides = [1, 1]} : vector<8x384xf32> to vector<8x128xf32>
    %310 = vector.extract_strided_slice %308 {offsets = [0, 0], sizes = [8, 128], strides = [1, 1]} : vector<8x384xf32> to vector<8x128xf32>
    %311 = arith.addf %309, %310 : vector<8x128xf32>
    %312 = arith.negf %311 : vector<8x128xf32>
    %313 = math.exp %312 : vector<8x128xf32>
    %cst_95 = arith.constant 1.000000e+00 : f32
    %314 = vector.broadcast %cst_95 : f32 to vector<8x128xf32>
    %315 = arith.addf %314, %313 : vector<8x128xf32>
    %316 = arith.divf %314, %315 : vector<8x128xf32>
    %317 = vector.extract_strided_slice %305 {offsets = [0, 128], sizes = [8, 128], strides = [1, 1]} : vector<8x384xf32> to vector<8x128xf32>
    %318 = vector.extract_strided_slice %308 {offsets = [0, 128], sizes = [8, 128], strides = [1, 1]} : vector<8x384xf32> to vector<8x128xf32>
    %319 = arith.addf %317, %318 : vector<8x128xf32>
    %320 = arith.negf %319 : vector<8x128xf32>
    %321 = math.exp %320 : vector<8x128xf32>
    %cst_96 = arith.constant 1.000000e+00 : f32
    %322 = vector.broadcast %cst_96 : f32 to vector<8x128xf32>
    %323 = arith.addf %322, %321 : vector<8x128xf32>
    %324 = arith.divf %322, %323 : vector<8x128xf32>
    %325 = vector.extract_strided_slice %305 {offsets = [0, 256], sizes = [8, 128], strides = [1, 1]} : vector<8x384xf32> to vector<8x128xf32>
    %326 = vector.extract_strided_slice %308 {offsets = [0, 256], sizes = [8, 128], strides = [1, 1]} : vector<8x384xf32> to vector<8x128xf32>
    %327 = arith.mulf %316, %326 : vector<8x128xf32>
    %328 = arith.addf %325, %327 : vector<8x128xf32>
    %329 = math.tanh %328 : vector<8x128xf32>
    %cst_97 = arith.constant 1.000000e+00 : f32
    %330 = vector.broadcast %cst_97 : f32 to vector<8x128xf32>
    %331 = arith.subf %330, %324 : vector<8x128xf32>
    %332 = arith.mulf %331, %329 : vector<8x128xf32>
    %333 = arith.mulf %324, %299 : vector<8x128xf32>
    %334 = arith.addf %332, %333 : vector<8x128xf32>
    %c2_i32 = arith.constant 2 : i32
    %335 = vector.broadcast %c2_i32 : i32 to vector<8x1xi32>
    %336 = arith.cmpi eq, %0, %335 : vector<8x1xi32>
    %337 = vector.shape_cast %336 : vector<8x1xi1> to vector<8x1xi1>
    %338 = vector.broadcast %337 : vector<8x1xi1> to vector<8x128xi1>
    %339 = arith.select %338, %334, %304 : vector<8x128xi1>, vector<8x128xf32>
    %c16_98 = arith.constant 16 : index
    %c0_99 = arith.constant 0 : index
    %340 = vector.load %arg14[%c16_98, %c0_99] : memref<64x384xf32, #tpu.memory_space<vmem>>, vector<8x384xf32>
    %cst_100 = arith.constant dense<0.000000e+00> : vector<8x384xf32>
    %341 = tpu.matmul %334, %261, %cst_100 {dimension_numbers = #tpu.dot_dimension_numbers<[1], [0], [0], [1], [0, 0, 1, 1], [], []>} : vector<8x128xf32>, vector<128x384xf32>, vector<8x384xf32> -> vector<8x384xf32>
    %342 = vector.broadcast %263 : vector<1x384xf32> to vector<8x384xf32>
    %343 = arith.addf %341, %342 : vector<8x384xf32>
    %344 = vector.extract_strided_slice %340 {offsets = [0, 0], sizes = [8, 128], strides = [1, 1]} : vector<8x384xf32> to vector<8x128xf32>
    %345 = vector.extract_strided_slice %343 {offsets = [0, 0], sizes = [8, 128], strides = [1, 1]} : vector<8x384xf32> to vector<8x128xf32>
    %346 = arith.addf %344, %345 : vector<8x128xf32>
    %347 = arith.negf %346 : vector<8x128xf32>
    %348 = math.exp %347 : vector<8x128xf32>
    %cst_101 = arith.constant 1.000000e+00 : f32
    %349 = vector.broadcast %cst_101 : f32 to vector<8x128xf32>
    %350 = arith.addf %349, %348 : vector<8x128xf32>
    %351 = arith.divf %349, %350 : vector<8x128xf32>
    %352 = vector.extract_strided_slice %340 {offsets = [0, 128], sizes = [8, 128], strides = [1, 1]} : vector<8x384xf32> to vector<8x128xf32>
    %353 = vector.extract_strided_slice %343 {offsets = [0, 128], sizes = [8, 128], strides = [1, 1]} : vector<8x384xf32> to vector<8x128xf32>
    %354 = arith.addf %352, %353 : vector<8x128xf32>
    %355 = arith.negf %354 : vector<8x128xf32>
    %356 = math.exp %355 : vector<8x128xf32>
    %cst_102 = arith.constant 1.000000e+00 : f32
    %357 = vector.broadcast %cst_102 : f32 to vector<8x128xf32>
    %358 = arith.addf %357, %356 : vector<8x128xf32>
    %359 = arith.divf %357, %358 : vector<8x128xf32>
    %360 = vector.extract_strided_slice %340 {offsets = [0, 256], sizes = [8, 128], strides = [1, 1]} : vector<8x384xf32> to vector<8x128xf32>
    %361 = vector.extract_strided_slice %343 {offsets = [0, 256], sizes = [8, 128], strides = [1, 1]} : vector<8x384xf32> to vector<8x128xf32>
    %362 = arith.mulf %351, %361 : vector<8x128xf32>
    %363 = arith.addf %360, %362 : vector<8x128xf32>
    %364 = math.tanh %363 : vector<8x128xf32>
    %cst_103 = arith.constant 1.000000e+00 : f32
    %365 = vector.broadcast %cst_103 : f32 to vector<8x128xf32>
    %366 = arith.subf %365, %359 : vector<8x128xf32>
    %367 = arith.mulf %366, %364 : vector<8x128xf32>
    %368 = arith.mulf %359, %334 : vector<8x128xf32>
    %369 = arith.addf %367, %368 : vector<8x128xf32>
    %c3_i32 = arith.constant 3 : i32
    %370 = vector.broadcast %c3_i32 : i32 to vector<8x1xi32>
    %371 = arith.cmpi eq, %0, %370 : vector<8x1xi32>
    %372 = vector.shape_cast %371 : vector<8x1xi1> to vector<8x1xi1>
    %373 = vector.broadcast %372 : vector<8x1xi1> to vector<8x128xi1>
    %374 = arith.select %373, %369, %339 : vector<8x128xi1>, vector<8x128xf32>
    %c24_104 = arith.constant 24 : index
    %c0_105 = arith.constant 0 : index
    %375 = vector.load %arg14[%c24_104, %c0_105] : memref<64x384xf32, #tpu.memory_space<vmem>>, vector<8x384xf32>
    %cst_106 = arith.constant dense<0.000000e+00> : vector<8x384xf32>
    %376 = tpu.matmul %369, %261, %cst_106 {dimension_numbers = #tpu.dot_dimension_numbers<[1], [0], [0], [1], [0, 0, 1, 1], [], []>} : vector<8x128xf32>, vector<128x384xf32>, vector<8x384xf32> -> vector<8x384xf32>
    %377 = vector.broadcast %263 : vector<1x384xf32> to vector<8x384xf32>
    %378 = arith.addf %376, %377 : vector<8x384xf32>
    %379 = vector.extract_strided_slice %375 {offsets = [0, 0], sizes = [8, 128], strides = [1, 1]} : vector<8x384xf32> to vector<8x128xf32>
    %380 = vector.extract_strided_slice %378 {offsets = [0, 0], sizes = [8, 128], strides = [1, 1]} : vector<8x384xf32> to vector<8x128xf32>
    %381 = arith.addf %379, %380 : vector<8x128xf32>
    %382 = arith.negf %381 : vector<8x128xf32>
    %383 = math.exp %382 : vector<8x128xf32>
    %cst_107 = arith.constant 1.000000e+00 : f32
    %384 = vector.broadcast %cst_107 : f32 to vector<8x128xf32>
    %385 = arith.addf %384, %383 : vector<8x128xf32>
    %386 = arith.divf %384, %385 : vector<8x128xf32>
    %387 = vector.extract_strided_slice %375 {offsets = [0, 128], sizes = [8, 128], strides = [1, 1]} : vector<8x384xf32> to vector<8x128xf32>
    %388 = vector.extract_strided_slice %378 {offsets = [0, 128], sizes = [8, 128], strides = [1, 1]} : vector<8x384xf32> to vector<8x128xf32>
    %389 = arith.addf %387, %388 : vector<8x128xf32>
    %390 = arith.negf %389 : vector<8x128xf32>
    %391 = math.exp %390 : vector<8x128xf32>
    %cst_108 = arith.constant 1.000000e+00 : f32
    %392 = vector.broadcast %cst_108 : f32 to vector<8x128xf32>
    %393 = arith.addf %392, %391 : vector<8x128xf32>
    %394 = arith.divf %392, %393 : vector<8x128xf32>
    %395 = vector.extract_strided_slice %375 {offsets = [0, 256], sizes = [8, 128], strides = [1, 1]} : vector<8x384xf32> to vector<8x128xf32>
    %396 = vector.extract_strided_slice %378 {offsets = [0, 256], sizes = [8, 128], strides = [1, 1]} : vector<8x384xf32> to vector<8x128xf32>
    %397 = arith.mulf %386, %396 : vector<8x128xf32>
    %398 = arith.addf %395, %397 : vector<8x128xf32>
    %399 = math.tanh %398 : vector<8x128xf32>
    %cst_109 = arith.constant 1.000000e+00 : f32
    %400 = vector.broadcast %cst_109 : f32 to vector<8x128xf32>
    %401 = arith.subf %400, %394 : vector<8x128xf32>
    %402 = arith.mulf %401, %399 : vector<8x128xf32>
    %403 = arith.mulf %394, %369 : vector<8x128xf32>
    %404 = arith.addf %402, %403 : vector<8x128xf32>
    %c4_i32 = arith.constant 4 : i32
    %405 = vector.broadcast %c4_i32 : i32 to vector<8x1xi32>
    %406 = arith.cmpi eq, %0, %405 : vector<8x1xi32>
    %407 = vector.shape_cast %406 : vector<8x1xi1> to vector<8x1xi1>
    %408 = vector.broadcast %407 : vector<8x1xi1> to vector<8x128xi1>
    %409 = arith.select %408, %404, %374 : vector<8x128xi1>, vector<8x128xf32>
    %c32_110 = arith.constant 32 : index
    %c0_111 = arith.constant 0 : index
    %410 = vector.load %arg14[%c32_110, %c0_111] : memref<64x384xf32, #tpu.memory_space<vmem>>, vector<8x384xf32>
    %cst_112 = arith.constant dense<0.000000e+00> : vector<8x384xf32>
    %411 = tpu.matmul %404, %261, %cst_112 {dimension_numbers = #tpu.dot_dimension_numbers<[1], [0], [0], [1], [0, 0, 1, 1], [], []>} : vector<8x128xf32>, vector<128x384xf32>, vector<8x384xf32> -> vector<8x384xf32>
    %412 = vector.broadcast %263 : vector<1x384xf32> to vector<8x384xf32>
    %413 = arith.addf %411, %412 : vector<8x384xf32>
    %414 = vector.extract_strided_slice %410 {offsets = [0, 0], sizes = [8, 128], strides = [1, 1]} : vector<8x384xf32> to vector<8x128xf32>
    %415 = vector.extract_strided_slice %413 {offsets = [0, 0], sizes = [8, 128], strides = [1, 1]} : vector<8x384xf32> to vector<8x128xf32>
    %416 = arith.addf %414, %415 : vector<8x128xf32>
    %417 = arith.negf %416 : vector<8x128xf32>
    %418 = math.exp %417 : vector<8x128xf32>
    %cst_113 = arith.constant 1.000000e+00 : f32
    %419 = vector.broadcast %cst_113 : f32 to vector<8x128xf32>
    %420 = arith.addf %419, %418 : vector<8x128xf32>
    %421 = arith.divf %419, %420 : vector<8x128xf32>
    %422 = vector.extract_strided_slice %410 {offsets = [0, 128], sizes = [8, 128], strides = [1, 1]} : vector<8x384xf32> to vector<8x128xf32>
    %423 = vector.extract_strided_slice %413 {offsets = [0, 128], sizes = [8, 128], strides = [1, 1]} : vector<8x384xf32> to vector<8x128xf32>
    %424 = arith.addf %422, %423 : vector<8x128xf32>
    %425 = arith.negf %424 : vector<8x128xf32>
    %426 = math.exp %425 : vector<8x128xf32>
    %cst_114 = arith.constant 1.000000e+00 : f32
    %427 = vector.broadcast %cst_114 : f32 to vector<8x128xf32>
    %428 = arith.addf %427, %426 : vector<8x128xf32>
    %429 = arith.divf %427, %428 : vector<8x128xf32>
    %430 = vector.extract_strided_slice %410 {offsets = [0, 256], sizes = [8, 128], strides = [1, 1]} : vector<8x384xf32> to vector<8x128xf32>
    %431 = vector.extract_strided_slice %413 {offsets = [0, 256], sizes = [8, 128], strides = [1, 1]} : vector<8x384xf32> to vector<8x128xf32>
    %432 = arith.mulf %421, %431 : vector<8x128xf32>
    %433 = arith.addf %430, %432 : vector<8x128xf32>
    %434 = math.tanh %433 : vector<8x128xf32>
    %cst_115 = arith.constant 1.000000e+00 : f32
    %435 = vector.broadcast %cst_115 : f32 to vector<8x128xf32>
    %436 = arith.subf %435, %429 : vector<8x128xf32>
    %437 = arith.mulf %436, %434 : vector<8x128xf32>
    %438 = arith.mulf %429, %404 : vector<8x128xf32>
    %439 = arith.addf %437, %438 : vector<8x128xf32>
    %c5_i32 = arith.constant 5 : i32
    %440 = vector.broadcast %c5_i32 : i32 to vector<8x1xi32>
    %441 = arith.cmpi eq, %0, %440 : vector<8x1xi32>
    %442 = vector.shape_cast %441 : vector<8x1xi1> to vector<8x1xi1>
    %443 = vector.broadcast %442 : vector<8x1xi1> to vector<8x128xi1>
    %444 = arith.select %443, %439, %409 : vector<8x128xi1>, vector<8x128xf32>
    %c40_116 = arith.constant 40 : index
    %c0_117 = arith.constant 0 : index
    %445 = vector.load %arg14[%c40_116, %c0_117] : memref<64x384xf32, #tpu.memory_space<vmem>>, vector<8x384xf32>
    %cst_118 = arith.constant dense<0.000000e+00> : vector<8x384xf32>
    %446 = tpu.matmul %439, %261, %cst_118 {dimension_numbers = #tpu.dot_dimension_numbers<[1], [0], [0], [1], [0, 0, 1, 1], [], []>} : vector<8x128xf32>, vector<128x384xf32>, vector<8x384xf32> -> vector<8x384xf32>
    %447 = vector.broadcast %263 : vector<1x384xf32> to vector<8x384xf32>
    %448 = arith.addf %446, %447 : vector<8x384xf32>
    %449 = vector.extract_strided_slice %445 {offsets = [0, 0], sizes = [8, 128], strides = [1, 1]} : vector<8x384xf32> to vector<8x128xf32>
    %450 = vector.extract_strided_slice %448 {offsets = [0, 0], sizes = [8, 128], strides = [1, 1]} : vector<8x384xf32> to vector<8x128xf32>
    %451 = arith.addf %449, %450 : vector<8x128xf32>
    %452 = arith.negf %451 : vector<8x128xf32>
    %453 = math.exp %452 : vector<8x128xf32>
    %cst_119 = arith.constant 1.000000e+00 : f32
    %454 = vector.broadcast %cst_119 : f32 to vector<8x128xf32>
    %455 = arith.addf %454, %453 : vector<8x128xf32>
    %456 = arith.divf %454, %455 : vector<8x128xf32>
    %457 = vector.extract_strided_slice %445 {offsets = [0, 128], sizes = [8, 128], strides = [1, 1]} : vector<8x384xf32> to vector<8x128xf32>
    %458 = vector.extract_strided_slice %448 {offsets = [0, 128], sizes = [8, 128], strides = [1, 1]} : vector<8x384xf32> to vector<8x128xf32>
    %459 = arith.addf %457, %458 : vector<8x128xf32>
    %460 = arith.negf %459 : vector<8x128xf32>
    %461 = math.exp %460 : vector<8x128xf32>
    %cst_120 = arith.constant 1.000000e+00 : f32
    %462 = vector.broadcast %cst_120 : f32 to vector<8x128xf32>
    %463 = arith.addf %462, %461 : vector<8x128xf32>
    %464 = arith.divf %462, %463 : vector<8x128xf32>
    %465 = vector.extract_strided_slice %445 {offsets = [0, 256], sizes = [8, 128], strides = [1, 1]} : vector<8x384xf32> to vector<8x128xf32>
    %466 = vector.extract_strided_slice %448 {offsets = [0, 256], sizes = [8, 128], strides = [1, 1]} : vector<8x384xf32> to vector<8x128xf32>
    %467 = arith.mulf %456, %466 : vector<8x128xf32>
    %468 = arith.addf %465, %467 : vector<8x128xf32>
    %469 = math.tanh %468 : vector<8x128xf32>
    %cst_121 = arith.constant 1.000000e+00 : f32
    %470 = vector.broadcast %cst_121 : f32 to vector<8x128xf32>
    %471 = arith.subf %470, %464 : vector<8x128xf32>
    %472 = arith.mulf %471, %469 : vector<8x128xf32>
    %473 = arith.mulf %464, %439 : vector<8x128xf32>
    %474 = arith.addf %472, %473 : vector<8x128xf32>
    %c6_i32 = arith.constant 6 : i32
    %475 = vector.broadcast %c6_i32 : i32 to vector<8x1xi32>
    %476 = arith.cmpi eq, %0, %475 : vector<8x1xi32>
    %477 = vector.shape_cast %476 : vector<8x1xi1> to vector<8x1xi1>
    %478 = vector.broadcast %477 : vector<8x1xi1> to vector<8x128xi1>
    %479 = arith.select %478, %474, %444 : vector<8x128xi1>, vector<8x128xf32>
    %c48_122 = arith.constant 48 : index
    %c0_123 = arith.constant 0 : index
    %480 = vector.load %arg14[%c48_122, %c0_123] : memref<64x384xf32, #tpu.memory_space<vmem>>, vector<8x384xf32>
    %cst_124 = arith.constant dense<0.000000e+00> : vector<8x384xf32>
    %481 = tpu.matmul %474, %261, %cst_124 {dimension_numbers = #tpu.dot_dimension_numbers<[1], [0], [0], [1], [0, 0, 1, 1], [], []>} : vector<8x128xf32>, vector<128x384xf32>, vector<8x384xf32> -> vector<8x384xf32>
    %482 = vector.broadcast %263 : vector<1x384xf32> to vector<8x384xf32>
    %483 = arith.addf %481, %482 : vector<8x384xf32>
    %484 = vector.extract_strided_slice %480 {offsets = [0, 0], sizes = [8, 128], strides = [1, 1]} : vector<8x384xf32> to vector<8x128xf32>
    %485 = vector.extract_strided_slice %483 {offsets = [0, 0], sizes = [8, 128], strides = [1, 1]} : vector<8x384xf32> to vector<8x128xf32>
    %486 = arith.addf %484, %485 : vector<8x128xf32>
    %487 = arith.negf %486 : vector<8x128xf32>
    %488 = math.exp %487 : vector<8x128xf32>
    %cst_125 = arith.constant 1.000000e+00 : f32
    %489 = vector.broadcast %cst_125 : f32 to vector<8x128xf32>
    %490 = arith.addf %489, %488 : vector<8x128xf32>
    %491 = arith.divf %489, %490 : vector<8x128xf32>
    %492 = vector.extract_strided_slice %480 {offsets = [0, 128], sizes = [8, 128], strides = [1, 1]} : vector<8x384xf32> to vector<8x128xf32>
    %493 = vector.extract_strided_slice %483 {offsets = [0, 128], sizes = [8, 128], strides = [1, 1]} : vector<8x384xf32> to vector<8x128xf32>
    %494 = arith.addf %492, %493 : vector<8x128xf32>
    %495 = arith.negf %494 : vector<8x128xf32>
    %496 = math.exp %495 : vector<8x128xf32>
    %cst_126 = arith.constant 1.000000e+00 : f32
    %497 = vector.broadcast %cst_126 : f32 to vector<8x128xf32>
    %498 = arith.addf %497, %496 : vector<8x128xf32>
    %499 = arith.divf %497, %498 : vector<8x128xf32>
    %500 = vector.extract_strided_slice %480 {offsets = [0, 256], sizes = [8, 128], strides = [1, 1]} : vector<8x384xf32> to vector<8x128xf32>
    %501 = vector.extract_strided_slice %483 {offsets = [0, 256], sizes = [8, 128], strides = [1, 1]} : vector<8x384xf32> to vector<8x128xf32>
    %502 = arith.mulf %491, %501 : vector<8x128xf32>
    %503 = arith.addf %500, %502 : vector<8x128xf32>
    %504 = math.tanh %503 : vector<8x128xf32>
    %cst_127 = arith.constant 1.000000e+00 : f32
    %505 = vector.broadcast %cst_127 : f32 to vector<8x128xf32>
    %506 = arith.subf %505, %499 : vector<8x128xf32>
    %507 = arith.mulf %506, %504 : vector<8x128xf32>
    %508 = arith.mulf %499, %474 : vector<8x128xf32>
    %509 = arith.addf %507, %508 : vector<8x128xf32>
    %c7_i32 = arith.constant 7 : i32
    %510 = vector.broadcast %c7_i32 : i32 to vector<8x1xi32>
    %511 = arith.cmpi eq, %0, %510 : vector<8x1xi32>
    %512 = vector.shape_cast %511 : vector<8x1xi1> to vector<8x1xi1>
    %513 = vector.broadcast %512 : vector<8x1xi1> to vector<8x128xi1>
    %514 = arith.select %513, %509, %479 : vector<8x128xi1>, vector<8x128xf32>
    %c56_128 = arith.constant 56 : index
    %c0_129 = arith.constant 0 : index
    %515 = vector.load %arg14[%c56_128, %c0_129] : memref<64x384xf32, #tpu.memory_space<vmem>>, vector<8x384xf32>
    %cst_130 = arith.constant dense<0.000000e+00> : vector<8x384xf32>
    %516 = tpu.matmul %509, %261, %cst_130 {dimension_numbers = #tpu.dot_dimension_numbers<[1], [0], [0], [1], [0, 0, 1, 1], [], []>} : vector<8x128xf32>, vector<128x384xf32>, vector<8x384xf32> -> vector<8x384xf32>
    %517 = vector.broadcast %263 : vector<1x384xf32> to vector<8x384xf32>
    %518 = arith.addf %516, %517 : vector<8x384xf32>
    %519 = vector.extract_strided_slice %515 {offsets = [0, 0], sizes = [8, 128], strides = [1, 1]} : vector<8x384xf32> to vector<8x128xf32>
    %520 = vector.extract_strided_slice %518 {offsets = [0, 0], sizes = [8, 128], strides = [1, 1]} : vector<8x384xf32> to vector<8x128xf32>
    %521 = arith.addf %519, %520 : vector<8x128xf32>
    %522 = arith.negf %521 : vector<8x128xf32>
    %523 = math.exp %522 : vector<8x128xf32>
    %cst_131 = arith.constant 1.000000e+00 : f32
    %524 = vector.broadcast %cst_131 : f32 to vector<8x128xf32>
    %525 = arith.addf %524, %523 : vector<8x128xf32>
    %526 = arith.divf %524, %525 : vector<8x128xf32>
    %527 = vector.extract_strided_slice %515 {offsets = [0, 128], sizes = [8, 128], strides = [1, 1]} : vector<8x384xf32> to vector<8x128xf32>
    %528 = vector.extract_strided_slice %518 {offsets = [0, 128], sizes = [8, 128], strides = [1, 1]} : vector<8x384xf32> to vector<8x128xf32>
    %529 = arith.addf %527, %528 : vector<8x128xf32>
    %530 = arith.negf %529 : vector<8x128xf32>
    %531 = math.exp %530 : vector<8x128xf32>
    %cst_132 = arith.constant 1.000000e+00 : f32
    %532 = vector.broadcast %cst_132 : f32 to vector<8x128xf32>
    %533 = arith.addf %532, %531 : vector<8x128xf32>
    %534 = arith.divf %532, %533 : vector<8x128xf32>
    %535 = vector.extract_strided_slice %515 {offsets = [0, 256], sizes = [8, 128], strides = [1, 1]} : vector<8x384xf32> to vector<8x128xf32>
    %536 = vector.extract_strided_slice %518 {offsets = [0, 256], sizes = [8, 128], strides = [1, 1]} : vector<8x384xf32> to vector<8x128xf32>
    %537 = arith.mulf %526, %536 : vector<8x128xf32>
    %538 = arith.addf %535, %537 : vector<8x128xf32>
    %539 = math.tanh %538 : vector<8x128xf32>
    %cst_133 = arith.constant 1.000000e+00 : f32
    %540 = vector.broadcast %cst_133 : f32 to vector<8x128xf32>
    %541 = arith.subf %540, %534 : vector<8x128xf32>
    %542 = arith.mulf %541, %539 : vector<8x128xf32>
    %543 = arith.mulf %534, %509 : vector<8x128xf32>
    %544 = arith.addf %542, %543 : vector<8x128xf32>
    %c8_i32 = arith.constant 8 : i32
    %545 = vector.broadcast %c8_i32 : i32 to vector<8x1xi32>
    %546 = arith.cmpi eq, %0, %545 : vector<8x1xi32>
    %547 = vector.shape_cast %546 : vector<8x1xi1> to vector<8x1xi1>
    %548 = vector.broadcast %547 : vector<8x1xi1> to vector<8x128xi1>
    %549 = arith.select %548, %544, %514 : vector<8x128xi1>, vector<8x128xf32>
    %550 = arith.mulf %549, %549 : vector<8x128xf32>
    %cst_134 = arith.constant dense<0.000000e+00> : vector<8xf32>
    %551 = vector.multi_reduction <add>, %550, %cst_134 [1] : vector<8x128xf32> to vector<8xf32>
    %552 = vector.shape_cast %551 : vector<8xf32> to vector<8x1xf32>
    %cst_135 = arith.constant 9.99999996E-13 : f32
    %553 = vector.broadcast %cst_135 : f32 to vector<8x1xf32>
    %554 = arith.addf %552, %553 : vector<8x1xf32>
    %555 = math.rsqrt %554 : vector<8x1xf32>
    %556 = vector.broadcast %555 : vector<8x1xf32> to vector<8x128xf32>
    %557 = arith.mulf %549, %556 : vector<8x128xf32>
    %c0_136 = arith.constant 0 : index
    %c0_137 = arith.constant 0 : index
    %558 = vector.load %arg10[%c0_136, %c0_137] : memref<128x128xf32, #tpu.memory_space<vmem>>, vector<128x128xf32>
    %cst_138 = arith.constant dense<0.000000e+00> : vector<8x128xf32>
    %559 = tpu.matmul %557, %558, %cst_138 {dimension_numbers = #tpu.dot_dimension_numbers<[1], [0], [0], [1], [0, 0, 1, 1], [], []>} : vector<8x128xf32>, vector<128x128xf32>, vector<8x128xf32> -> vector<8x128xf32>
    %c0_139 = arith.constant 0 : index
    %c0_140 = arith.constant 0 : index
    %560 = vector.load %arg11[%c0_139, %c0_140] : memref<1x128xf32, #tpu.memory_space<vmem>>, vector<1x128xf32>
    %561 = vector.broadcast %560 : vector<1x128xf32> to vector<8x128xf32>
    %562 = arith.addf %559, %561 : vector<8x128xf32>
    %c0_141 = arith.constant 0 : index
    %c0_142 = arith.constant 0 : index
    %563 = vector.load %arg12[%c0_141, %c0_142] : memref<8x128xf32, #tpu.memory_space<vmem>>, vector<8x128xf32>
    tpu.vector_store %arg12[%c0_141, %c0_142], %562 {strides = array<i32>} : memref<8x128xf32, #tpu.memory_space<vmem>>, vector<8x128xf32>,
    return
  }
}

</mosaic_0001>

<llo_original>
// kernel: text_encoder_forward.1
$region0: #{text_encoder_forward.1}
  #allocation0 [shape = 'u32[]', space=smem, size = 0x4, offset = 0x4, fixed_abs, tag = 'smem constant byte address 0x4 - core index']
  #allocation1 [shape = 'u32[72,128]{1,0:T(1,128)}', space=vmem, size = 0x9000, scoped, tag = 'internal scratch']
  #allocation2 [shape = 'f32[64,128]{1,0:T(8,128)}', space=vmem, size = 0x8000, scoped, tag = 'scratch operand']
  #allocation3 [shape = 'f32[64,384]{1,0:T(8,128)}', space=vmem, size = 0x18000, scoped, tag = 'scratch operand']
  %s0 = inlined_call_operand.vmem [shape: f32[64,128], index: 0, kind: input, shape index: {}]
  %s1 = inlined_call_operand.vmem [shape: s32[8,1], index: 1, kind: input, shape index: {}]
  %s2 = inlined_call_operand.vmem [shape: f32[128,384], index: 2, kind: input, shape index: {}]
  %s3 = inlined_call_operand.hbm [shape: f32[128,384], index: 3, kind: input, shape index: {}]
  %s4 = inlined_call_operand.vmem [shape: f32[1,384], index: 4, kind: input, shape index: {}]
  %s5 = inlined_call_operand.vmem [shape: f32[1,384], index: 5, kind: input, shape index: {}]
  %s6 = inlined_call_operand.hbm [shape: f32[128,384], index: 6, kind: input, shape index: {}]
  %s7 = inlined_call_operand.hbm [shape: f32[128,384], index: 7, kind: input, shape index: {}]
  %s8 = inlined_call_operand.vmem [shape: f32[1,384], index: 8, kind: input, shape index: {}]
  %s9 = inlined_call_operand.vmem [shape: f32[1,384], index: 9, kind: input, shape index: {}]
  %s10 = inlined_call_operand.vmem [shape: f32[128,128], index: 10, kind: input, shape index: {}]
  %s11 = inlined_call_operand.vmem [shape: f32[1,128], index: 11, kind: input, shape index: {}]
  %s12 = inlined_call_operand.vmem [shape: f32[8,128], index: 12, kind: output, shape index: {}]
  %s13 = sld [smem:[#allocation0]]
  $region70: #{text_encoder_forward.1} parent=0
    _
  %s15 = ssub.s32 1, %s13
  %s16 = scalar_select 0, %s15, %s13
  $region1: #{text_encoder_forward.1} parent=0
    #allocation4 [shape = 'u8[196608]{0}', space=vmem, size = 0x30000, scoped, tag = 'input window, operand 3, single buffered']
    #allocation5 [shape = 's32[1]{0}', space=sflag, size = 0x4, scoped, tag = 'scoped memory for text_encoder_forward.1']
    #allocation6 [shape = 'u8[196608]{0}', space=vmem, size = 0x30000, scoped, tag = 'input window, operand 6, single buffered']
    #allocation7 [shape = 's32[1]{0}', space=sflag, size = 0x4, scoped, tag = 'scoped memory for text_encoder_forward.1']
    #allocation8 [shape = 'u8[196608]{0}', space=vmem, size = 0x30000, scoped, tag = 'input window, operand 7, single buffered']
    %17 = vsyncpa [#allocation5], 0
    %18 = vsyncpa [#allocation7], 0
    // Predicated region
    $region2: #{text_encoder_forward.1} parent=1 // pred_check
      _
    $region3: #{text_encoder_forward.1} parent=1 // pred_check_branch
      %20 = sbr.rel (0) target = $region5
    $region4: #{text_encoder_forward.1} parent=1 // pred_region
      _
    $region5: #{text_encoder_forward.1} parent=1 // pred_fallthru
      _
    // Predicated region
    $region6: #{text_encoder_forward.1} parent=1 // pred_check
      _
    $region7: #{text_encoder_forward.1} parent=1 // pred_check_branch
      %22 = sbr.rel (0) target = $region9
    $region8: #{text_encoder_forward.1} parent=1 // pred_region
      _
    $region9: #{text_encoder_forward.1} parent=1 // pred_fallthru
      _
    // Predicated region
    $region10: #{text_encoder_forward.1} parent=1 // pred_check
      _
    $region11: #{text_encoder_forward.1} parent=1 // pred_check_branch
      %24 = sbr.rel (0) target = $region13
    $region12: #{text_encoder_forward.1} parent=1 // pred_region
      _
    $region13: #{text_encoder_forward.1} parent=1 // pred_fallthru
      _
    // Predicated region
    $region14: #{text_encoder_forward.1} parent=1 // pred_check
      _
    $region15: #{text_encoder_forward.1} parent=1 // pred_check_branch
      %26 = sbr.rel (0) target = $region17
    $region16: #{text_encoder_forward.1} parent=1 // pred_region
      %28 = vsyncadd [#allocation5], 0
      %s29 = sshll.u32 %s3, 4
      %s30 = int_to_ptr.hbm [resolvable:$true] %s29
      %s31 = sshll.u32 [#allocation4], 4
      %s32 = int_to_ptr.vmem [resolvable:$true] %s31
      %37 = dma.hbm_to_vmem [thread:$0]  %s30, 6144, %s32, [#allocation5], 384, 384, 24
    $region17: #{text_encoder_forward.1} parent=1 // pred_fallthru
      _
    // Predicated region
    $region18: #{text_encoder_forward.1} parent=1 // pred_check
      _
    $region19: #{text_encoder_forward.1} parent=1 // pred_check_branch
      %39 = sbr.rel (0) target = $region21
    $region20: #{text_encoder_forward.1} parent=1 // pred_region
      _
    $region21: #{text_encoder_forward.1} parent=1 // pred_fallthru
      _
    // Predicated region
    $region22: #{text_encoder_forward.1} parent=1 // pred_check
      _
    $region23: #{text_encoder_forward.1} parent=1 // pred_check_branch
      %41 = sbr.rel (0) target = $region25
    $region24: #{text_encoder_forward.1} parent=1 // pred_region
      _
    $region25: #{text_encoder_forward.1} parent=1 // pred_fallthru
      _
    // Predicated region
    $region26: #{text_encoder_forward.1} parent=1 // pred_check
      _
    $region27: #{text_encoder_forward.1} parent=1 // pred_check_branch
      %43 = sbr.rel (0) target = $region29
    $region28: #{text_encoder_forward.1} parent=1 // pred_region
      %45 = vsyncadd [#allocation7], 0
      %s46 = sshll.u32 %s6, 4
      %s47 = int_to_ptr.hbm [resolvable:$true] %s46
      %s48 = sshll.u32 [#allocation6], 4
      %s49 = int_to_ptr.vmem [resolvable:$true] %s48
      %54 = dma.hbm_to_vmem [thread:$0]  %s47, 6144, %s49, [#allocation7], 384, 384, 24
    $region29: #{text_encoder_forward.1} parent=1 // pred_fallthru
      _
    // Predicated region
    $region30: #{text_encoder_forward.1} parent=1 // pred_check
      _
    $region31: #{text_encoder_forward.1} parent=1 // pred_check_branch
      %56 = sbr.rel (0) target = $region33
    $region32: #{text_encoder_forward.1} parent=1 // pred_region
      %58 = vsyncadd [#allocation7], 0
      %s59 = sshll.u32 %s7, 4
      %s60 = int_to_ptr.hbm [resolvable:$true] %s59
      %s61 = sshll.u32 [#allocation8], 4
      %s62 = int_to_ptr.vmem [resolvable:$true] %s61
      %67 = dma.hbm_to_vmem [thread:$0]  %s60, 6144, %s62, [#allocation7], 384, 384, 24
    $region33: #{text_encoder_forward.1} parent=1 // pred_fallthru
      _
    // Predicated region
    $region34: #{text_encoder_forward.1} parent=1 // pred_check
      _
    $region35: #{text_encoder_forward.1} parent=1 // pred_check_branch
      %69 = sbr.rel (0) target = $region37
    $region36: #{text_encoder_forward.1} parent=1 // pred_region
      _
    $region37: #{text_encoder_forward.1} parent=1 // pred_fallthru
      _
    // Predicated region
    $region38: #{text_encoder_forward.1} parent=1 // pred_check
      _
    $region39: #{text_encoder_forward.1} parent=1 // pred_check_branch
      %71 = sbr.rel (0) target = $region41
    $region40: #{text_encoder_forward.1} parent=1 // pred_region
      _
    $region41: #{text_encoder_forward.1} parent=1 // pred_fallthru
      _
    // Predicated region
    $region42: #{text_encoder_forward.1} parent=1 // pred_check
      _
    $region43: #{text_encoder_forward.1} parent=1 // pred_check_branch
      %73 = sbr.rel (0) target = $region45
    $region44: #{text_encoder_forward.1} parent=1 // pred_region
      _
    $region45: #{text_encoder_forward.1} parent=1 // pred_fallthru
      _
    // Predicated region
    $region46: #{text_encoder_forward.1} parent=1 // pred_check
      _
    $region47: #{text_encoder_forward.1} parent=1 // pred_check_branch
      %75 = sbr.rel (0) target = $region49
    $region48: #{text_encoder_forward.1} parent=1 // pred_region
      _
    $region49: #{text_encoder_forward.1} parent=1 // pred_fallthru
      _
    // Predicated region
    $region50: #{text_encoder_forward.1} parent=1 // pred_check
      _
    $region51: #{text_encoder_forward.1} parent=1 // pred_check_branch
      %77 = sbr.rel (0) target = $region53
    $region52: #{text_encoder_forward.1} parent=1 // pred_region
      %79 = dma.done [#allocation5], 6144
    $region53: #{text_encoder_forward.1} parent=1 // pred_fallthru
      _
    // Predicated region
    $region54: #{text_encoder_forward.1} parent=1 // pred_check
      _
    $region55: #{text_encoder_forward.1} parent=1 // pred_check_branch
      %81 = sbr.rel (0) target = $region57
    $region56: #{text_encoder_forward.1} parent=1 // pred_region
      %83 = dma.done [#allocation7], 6144
    $region57: #{text_encoder_forward.1} parent=1 // pred_fallthru
      _
    // Predicated region
    $region58: #{text_encoder_forward.1} parent=1 // pred_check
      _
    $region59: #{text_encoder_forward.1} parent=1 // pred_check_branch
      %85 = sbr.rel (0) target = $region61
    $region60: #{text_encoder_forward.1} parent=1 // pred_region
      %87 = dma.done [#allocation7], 6144
    $region61: #{text_encoder_forward.1} parent=1 // pred_fallthru
      _
    %v88 = vld [vmem:[%s1] sm:$0xff]
    %v89 = vld [vmem:[%s2] sm:$0xff]
    %v90 = vld [vmem:[%s2 + $0x8] sm:$0xff]
    %v91 = vld [vmem:[%s2 + $0x10] sm:$0xff]
    %v92 = vld [vmem:[%s2 + $0x18] sm:$0xff]
    %v93 = vld [vmem:[%s2 + $0x20] sm:$0xff]
    %v94 = vld [vmem:[%s2 + $0x28] sm:$0xff]
    %v95 = vld [vmem:[%s2 + $0x30] sm:$0xff]
    %v96 = vld [vmem:[%s2 + $0x38] sm:$0xff]
    %v97 = vld [vmem:[%s2 + $0x40] sm:$0xff]
    %v98 = vld [vmem:[%s2 + $0x48] sm:$0xff]
    %v99 = vld [vmem:[%s2 + $0x50] sm:$0xff]
    %v100 = vld [vmem:[%s2 + $0x58] sm:$0xff]
    %v101 = vld [vmem:[%s2 + $0x60] sm:$0xff]
    %v102 = vld [vmem:[%s2 + $0x68] sm:$0xff]
    %v103 = vld [vmem:[%s2 + $0x70] sm:$0xff]
    %v104 = vld [vmem:[%s2 + $0x78] sm:$0xff]
    %v105 = vld [vmem:[%s2 + $0x80] sm:$0xff]
    %v106 = vld [vmem:[%s2 + $0x88] sm:$0xff]
    %v107 = vld [vmem:[%s2 + $0x90] sm:$0xff]
    %v108 = vld [vmem:[%s2 + $0x98] sm:$0xff]
    %v109 = vld [vmem:[%s2 + $0xa0] sm:$0xff]
    %v110 = vld [vmem:[%s2 + $0xa8] sm:$0xff]
    %v111 = vld [vmem:[%s2 + $0xb0] sm:$0xff]
    %v112 = vld [vmem:[%s2 + $0xb8] sm:$0xff]
    %v113 = vld [vmem:[%s2 + $0xc0] sm:$0xff]
    %v114 = vld [vmem:[%s2 + $0xc8] sm:$0xff]
    %v115 = vld [vmem:[%s2 + $0xd0] sm:$0xff]
    %v116 = vld [vmem:[%s2 + $0xd8] sm:$0xff]
    %v117 = vld [vmem:[%s2 + $0xe0] sm:$0xff]
    %v118 = vld [vmem:[%s2 + $0xe8] sm:$0xff]
    %v119 = vld [vmem:[%s2 + $0xf0] sm:$0xff]
    %v120 = vld [vmem:[%s2 + $0xf8] sm:$0xff]
    %v121 = vld [vmem:[%s2 + $0x100] sm:$0xff]
    %v122 = vld [vmem:[%s2 + $0x108] sm:$0xff]
    %v123 = vld [vmem:[%s2 + $0x110] sm:$0xff]
    %v124 = vld [vmem:[%s2 + $0x118] sm:$0xff]
    %v125 = vld [vmem:[%s2 + $0x120] sm:$0xff]
    %v126 = vld [vmem:[%s2 + $0x128] sm:$0xff]
    %v127 = vld [vmem:[%s2 + $0x130] sm:$0xff]
    %v128 = vld [vmem:[%s2 + $0x138] sm:$0xff]
    %v129 = vld [vmem:[%s2 + $0x140] sm:$0xff]
    %v130 = vld [vmem:[%s2 + $0x148] sm:$0xff]
    %v131 = vld [vmem:[%s2 + $0x150] sm:$0xff]
    %v132 = vld [vmem:[%s2 + $0x158] sm:$0xff]
    %v133 = vld [vmem:[%s2 + $0x160] sm:$0xff]
    %v134 = vld [vmem:[%s2 + $0x168] sm:$0xff]
    %v135 = vld [vmem:[%s2 + $0x170] sm:$0xff]
    %v136 = vld [vmem:[%s2 + $0x178] sm:$0xff]
    %v137 = vld [vmem:[#allocation4] sm:$0xff]
    %v138 = vld [vmem:[#allocation4 + $0x8] sm:$0xff]
    %v139 = vld [vmem:[#allocation4 + $0x10] sm:$0xff]
    %v140 = vld [vmem:[#allocation4 + $0x18] sm:$0xff]
    %v141 = vld [vmem:[#allocation4 + $0x20] sm:$0xff]
    %v142 = vld [vmem:[#allocation4 + $0x28] sm:$0xff]
    %v143 = vld [vmem:[#allocation4 + $0x30] sm:$0xff]
    %v144 = vld [vmem:[#allocation4 + $0x38] sm:$0xff]
    %v145 = vld [vmem:[#allocation4 + $0x40] sm:$0xff]
    %v146 = vld [vmem:[#allocation4 + $0x48] sm:$0xff]
    %v147 = vld [vmem:[#allocation4 + $0x50] sm:$0xff]
    %v148 = vld [vmem:[#allocation4 + $0x58] sm:$0xff]
    %v149 = vld [vmem:[#allocation4 + $0x60] sm:$0xff]
    %v150 = vld [vmem:[#allocation4 + $0x68] sm:$0xff]
    %v151 = vld [vmem:[#allocation4 + $0x70] sm:$0xff]
    %v152 = vld [vmem:[#allocation4 + $0x78] sm:$0xff]
    %v153 = vld [vmem:[#allocation4 + $0x80] sm:$0xff]
    %v154 = vld [vmem:[#allocation4 + $0x88] sm:$0xff]
    %v155 = vld [vmem:[#allocation4 + $0x90] sm:$0xff]
    %v156 = vld [vmem:[#allocation4 + $0x98] sm:$0xff]
    %v157 = vld [vmem:[#allocation4 + $0xa0] sm:$0xff]
    %v158 = vld [vmem:[#allocation4 + $0xa8] sm:$0xff]
    %v159 = vld [vmem:[#allocation4 + $0xb0] sm:$0xff]
    %v160 = vld [vmem:[#allocation4 + $0xb8] sm:$0xff]
    %v161 = vld [vmem:[#allocation4 + $0xc0] sm:$0xff]
    %v162 = vld [vmem:[#allocation4 + $0xc8] sm:$0xff]
    %v163 = vld [vmem:[#allocation4 + $0xd0] sm:$0xff]
    %v164 = vld [vmem:[#allocation4 + $0xd8] sm:$0xff]
    %v165 = vld [vmem:[#allocation4 + $0xe0] sm:$0xff]
    %v166 = vld [vmem:[#allocation4 + $0xe8] sm:$0xff]
    %v167 = vld [vmem:[#allocation4 + $0xf0] sm:$0xff]
    %v168 = vld [vmem:[#allocation4 + $0xf8] sm:$0xff]
    %v169 = vld [vmem:[#allocation4 + $0x100] sm:$0xff]
    %v170 = vld [vmem:[#allocation4 + $0x108] sm:$0xff]
    %v171 = vld [vmem:[#allocation4 + $0x110] sm:$0xff]
    %v172 = vld [vmem:[#allocation4 + $0x118] sm:$0xff]
    %v173 = vld [vmem:[#allocation4 + $0x120] sm:$0xff]
    %v174 = vld [vmem:[#allocation4 + $0x128] sm:$0xff]
    %v175 = vld [vmem:[#allocation4 + $0x130] sm:$0xff]
    %v176 = vld [vmem:[#allocation4 + $0x138] sm:$0xff]
    %v177 = vld [vmem:[#allocation4 + $0x140] sm:$0xff]
    %v178 = vld [vmem:[#allocation4 + $0x148] sm:$0xff]
    %v179 = vld [vmem:[#allocation4 + $0x150] sm:$0xff]
    %v180 = vld [vmem:[#allocation4 + $0x158] sm:$0xff]
    %v181 = vld [vmem:[#allocation4 + $0x160] sm:$0xff]
    %v182 = vld [vmem:[#allocation4 + $0x168] sm:$0xff]
    %v183 = vld [vmem:[#allocation4 + $0x170] sm:$0xff]
    %v184 = vld [vmem:[#allocation4 + $0x178] sm:$0xff]
    %v185 = vld [vmem:[%s4] sm:$0x7]
    %v186 = vld [vmem:[%s5] sm:$0x7]
    %v187 = vld [vmem:[%s0] sm:$0xff]
    %v188 = vld [vmem:[%s0 + $0x8] sm:$0xff]
    %v189 = vld [vmem:[%s0 + $0x10] sm:$0xff]
    %v190 = vld [vmem:[%s0 + $0x18] sm:$0xff]
    %v191 = vld [vmem:[%s0 + $0x20] sm:$0xff]
    %v192 = vld [vmem:[%s0 + $0x28] sm:$0xff]
    %v193 = vld [vmem:[%s0 + $0x30] sm:$0xff]
    %v194 = vld [vmem:[%s0 + $0x38] sm:$0xff]
    %v196 = vperm.slane %v185, 0
    %v197 = vperm.slane %v185, 1
    %v198 = vperm.slane %v185, 2
    %202 = vmatpush.msra.mxu0 %v134
    %203 = vmatpush.msra.mxu0 %v131
    %204 = vmatpush.msra.mxu0 %v128
    %205 = vmatpush.msra.mxu0 %v125
    %206 = vmatpush.msra.mxu0 %v122
    %207 = vmatpush.msra.mxu0 %v119
    %208 = vmatpush.msra.mxu0 %v116
    %209 = vmatpush.msra.mxu0 %v113
    %210 = vmatpush.msra.mxu0 %v110
    %211 = vmatpush.msra.mxu0 %v107
    %212 = vmatpush.msra.mxu0 %v104
    %213 = vmatpush.msra.mxu0 %v101
    %214 = vmatpush.msra.mxu0 %v98
    %215 = vmatpush.msra.mxu0 %v95
    %216 = vmatpush.msra.mxu0 %v92
    %217 = vmatpush.msra.mxu0 %v89
    %218 = vmatmul.f32.gmra.mxu0 %v187
    %v219 = vpop.f32.mrf.mxu0
    %v220 = vadd.f32 %v196, %v219
    %221 = vmatmul.f32.gmra.mxu0 %v188
    %v222 = vpop.f32.mrf.mxu0
    %v223 = vadd.f32 %v196, %v222
    %224 = vmatmul.f32.gmra.mxu0 %v189
    %v225 = vpop.f32.mrf.mxu0
    %v226 = vadd.f32 %v196, %v225
    %227 = vmatmul.f32.gmra.mxu0 %v190
    %v228 = vpop.f32.mrf.mxu0
    %v229 = vadd.f32 %v196, %v228
    %230 = vmatmul.f32.gmra.mxu0 %v191
    %v231 = vpop.f32.mrf.mxu0
    %v232 = vadd.f32 %v196, %v231
    %233 = vmatmul.f32.gmra.mxu0 %v192
    %v234 = vpop.f32.mrf.mxu0
    %v235 = vadd.f32 %v196, %v234
    %236 = vmatmul.f32.gmra.mxu0 %v193
    %v237 = vpop.f32.mrf.mxu0
    %v238 = vadd.f32 %v196, %v237
    %239 = vmatmul.f32.gmra.mxu0 %v194
    %v240 = vpop.f32.mrf.mxu0
    %v241 = vadd.f32 %v196, %v240
    %242 = vdwg.mxu0
    %243 = vmatpush.msra.mxu0 %v135
    %244 = vmatpush.msra.mxu0 %v132
    %245 = vmatpush.msra.mxu0 %v129
    %246 = vmatpush.msra.mxu0 %v126
    %247 = vmatpush.msra.mxu0 %v123
    %248 = vmatpush.msra.mxu0 %v120
    %249 = vmatpush.msra.mxu0 %v117
    %250 = vmatpush.msra.mxu0 %v114
    %251 = vmatpush.msra.mxu0 %v111
    %252 = vmatpush.msra.mxu0 %v108
    %253 = vmatpush.msra.mxu0 %v105
    %254 = vmatpush.msra.mxu0 %v102
    %255 = vmatpush.msra.mxu0 %v99
    %256 = vmatpush.msra.mxu0 %v96
    %257 = vmatpush.msra.mxu0 %v93
    %258 = vmatpush.msra.mxu0 %v90
    %259 = vmatmul.f32.gmra.mxu0 %v187
    %v260 = vpop.f32.mrf.mxu0
    %v261 = vadd.f32 %v197, %v260
    %262 = vmatmul.f32.gmra.mxu0 %v188
    %v263 = vpop.f32.mrf.mxu0
    %v264 = vadd.f32 %v197, %v263
    %265 = vmatmul.f32.gmra.mxu0 %v189
    %v266 = vpop.f32.mrf.mxu0
    %v267 = vadd.f32 %v197, %v266
    %268 = vmatmul.f32.gmra.mxu0 %v190
    %v269 = vpop.f32.mrf.mxu0
    %v270 = vadd.f32 %v197, %v269
    %271 = vmatmul.f32.gmra.mxu0 %v191
    %v272 = vpop.f32.mrf.mxu0
    %v273 = vadd.f32 %v197, %v272
    %274 = vmatmul.f32.gmra.mxu0 %v192
    %v275 = vpop.f32.mrf.mxu0
    %v276 = vadd.f32 %v197, %v275
    %277 = vmatmul.f32.gmra.mxu0 %v193
    %v278 = vpop.f32.mrf.mxu0
    %v279 = vadd.f32 %v197, %v278
    %280 = vmatmul.f32.gmra.mxu0 %v194
    %v281 = vpop.f32.mrf.mxu0
    %v282 = vadd.f32 %v197, %v281
    %283 = vdwg.mxu0
    %284 = vmatpush.msra.mxu0 %v136
    %285 = vmatpush.msra.mxu0 %v133
    %286 = vmatpush.msra.mxu0 %v130
    %287 = vmatpush.msra.mxu0 %v127
    %288 = vmatpush.msra.mxu0 %v124
    %289 = vmatpush.msra.mxu0 %v121
    %290 = vmatpush.msra.mxu0 %v118
    %291 = vmatpush.msra.mxu0 %v115
    %292 = vmatpush.msra.mxu0 %v112
    %293 = vmatpush.msra.mxu0 %v109
    %294 = vmatpush.msra.mxu0 %v106
    %295 = vmatpush.msra.mxu0 %v103
    %296 = vmatpush.msra.mxu0 %v100
    %297 = vmatpush.msra.mxu0 %v97
    %298 = vmatpush.msra.mxu0 %v94
    %299 = vmatpush.msra.mxu0 %v91
    %300 = vmatmul.f32.gmra.mxu0 %v187
    %v301 = vpop.f32.mrf.mxu0
    %v302 = vadd.f32 %v198, %v301
    %303 = vmatmul.f32.gmra.mxu0 %v188
    %v304 = vpop.f32.mrf.mxu0
    %v305 = vadd.f32 %v198, %v304
    %306 = vmatmul.f32.gmra.mxu0 %v189
    %v307 = vpop.f32.mrf.mxu0
    %v308 = vadd.f32 %v198, %v307
    %309 = vmatmul.f32.gmra.mxu0 %v190
    %v310 = vpop.f32.mrf.mxu0
    %v311 = vadd.f32 %v198, %v310
    %312 = vmatmul.f32.gmra.mxu0 %v191
    %v313 = vpop.f32.mrf.mxu0
    %v314 = vadd.f32 %v198, %v313
    %315 = vmatmul.f32.gmra.mxu0 %v192
    %v316 = vpop.f32.mrf.mxu0
    %v317 = vadd.f32 %v198, %v316
    %318 = vmatmul.f32.gmra.mxu0 %v193
    %v319 = vpop.f32.mrf.mxu0
    %v320 = vadd.f32 %v198, %v319
    %321 = vmatmul.f32.gmra.mxu0 %v194
    %v322 = vpop.f32.mrf.mxu0
    %v323 = vadd.f32 %v198, %v322
    %324 = vdwg.mxu0
    %325 = vst [vmem:[#allocation3] sm:$0xff] %v220
    %326 = vst [vmem:[#allocation3 + $0x8] sm:$0xff] %v261
    %327 = vst [vmem:[#allocation3 + $0x10] sm:$0xff] %v302
    %328 = vst [vmem:[#allocation3 + $0x18] sm:$0xff] %v223
    %329 = vst [vmem:[#allocation3 + $0x20] sm:$0xff] %v264
    %330 = vst [vmem:[#allocation3 + $0x28] sm:$0xff] %v305
    %331 = vst [vmem:[#allocation3 + $0x30] sm:$0xff] %v226
    %332 = vst [vmem:[#allocation3 + $0x38] sm:$0xff] %v267
    %333 = vst [vmem:[#allocation3 + $0x40] sm:$0xff] %v308
    %334 = vst [vmem:[#allocation3 + $0x48] sm:$0xff] %v229
    %335 = vst [vmem:[#allocation3 + $0x50] sm:$0xff] %v270
    %336 = vst [vmem:[#allocation3 + $0x58] sm:$0xff] %v311
    %337 = vst [vmem:[#allocation3 + $0x60] sm:$0xff] %v232
    %338 = vst [vmem:[#allocation3 + $0x68] sm:$0xff] %v273
    %339 = vst [vmem:[#allocation3 + $0x70] sm:$0xff] %v314
    %340 = vst [vmem:[#allocation3 + $0x78] sm:$0xff] %v235
    %341 = vst [vmem:[#allocation3 + $0x80] sm:$0xff] %v276
    %342 = vst [vmem:[#allocation3 + $0x88] sm:$0xff] %v317
    %343 = vst [vmem:[#allocation3 + $0x90] sm:$0xff] %v238
    %344 = vst [vmem:[#allocation3 + $0x98] sm:$0xff] %v279
    %345 = vst [vmem:[#allocation3 + $0xa0] sm:$0xff] %v320
    %346 = vst [vmem:[#allocation3 + $0xa8] sm:$0xff] %v241
    %347 = vst [vmem:[#allocation3 + $0xb0] sm:$0xff] %v282
    %348 = vst [vmem:[#allocation3 + $0xb8] sm:$0xff] %v323
    %v349 = vld [vmem:[#allocation3] sm:$0xff]
    %v350 = vld [vmem:[#allocation3 + $0x8] sm:$0xff]
    %v351 = vld [vmem:[#allocation3 + $0x10] sm:$0xff]
    %v353 = vperm.slane %v186, 0
    %v354 = vperm.slane %v186, 1
    %v355 = vperm.slane %v186, 2
    %359 = vmatpush.msra.mxu0 %v182
    %360 = vmatpush.msra.mxu0 %v179
    %361 = vmatpush.msra.mxu0 %v176
    %362 = vmatpush.msra.mxu0 %v173
    %363 = vmatpush.msra.mxu0 %v170
    %364 = vmatpush.msra.mxu0 %v167
    %365 = vmatpush.msra.mxu0 %v164
    %366 = vmatpush.msra.mxu0 %v161
    %367 = vmatpush.msra.mxu0 %v158
    %368 = vmatpush.msra.mxu0 %v155
    %369 = vmatpush.msra.mxu0 %v152
    %370 = vmatpush.msra.mxu0 %v149
    %371 = vmatpush.msra.mxu0 %v146
    %372 = vmatpush.msra.mxu0 %v143
    %373 = vmatpush.msra.mxu0 %v140
    %374 = vmatpush.msra.mxu0 %v137
    %375 = vmatmul.f32.gmra.mxu0 0.0
    %v376 = vpop.f32.mrf.mxu0
    %v377 = vadd.f32 %v353, %v376
    %378 = vdwg.mxu0
    %379 = vmatpush.msra.mxu0 %v183
    %380 = vmatpush.msra.mxu0 %v180
    %381 = vmatpush.msra.mxu0 %v177
    %382 = vmatpush.msra.mxu0 %v174
    %383 = vmatpush.msra.mxu0 %v171
    %384 = vmatpush.msra.mxu0 %v168
    %385 = vmatpush.msra.mxu0 %v165
    %386 = vmatpush.msra.mxu0 %v162
    %387 = vmatpush.msra.mxu0 %v159
    %388 = vmatpush.msra.mxu0 %v156
    %389 = vmatpush.msra.mxu0 %v153
    %390 = vmatpush.msra.mxu0 %v150
    %391 = vmatpush.msra.mxu0 %v147
    %392 = vmatpush.msra.mxu0 %v144
    %393 = vmatpush.msra.mxu0 %v141
    %394 = vmatpush.msra.mxu0 %v138
    %395 = vmatmul.f32.gmra.mxu0 0.0
    %v396 = vpop.f32.mrf.mxu0
    %v397 = vadd.f32 %v354, %v396
    %398 = vdwg.mxu0
    %399 = vmatpush.msra.mxu0 %v184
    %400 = vmatpush.msra.mxu0 %v181
    %401 = vmatpush.msra.mxu0 %v178
    %402 = vmatpush.msra.mxu0 %v175
    %403 = vmatpush.msra.mxu0 %v172
    %404 = vmatpush.msra.mxu0 %v169
    %405 = vmatpush.msra.mxu0 %v166
    %406 = vmatpush.msra.mxu0 %v163
    %407 = vmatpush.msra.mxu0 %v160
    %408 = vmatpush.msra.mxu0 %v157
    %409 = vmatpush.msra.mxu0 %v154
    %410 = vmatpush.msra.mxu0 %v151
    %411 = vmatpush.msra.mxu0 %v148
    %412 = vmatpush.msra.mxu0 %v145
    %413 = vmatpush.msra.mxu0 %v142
    %414 = vmatpush.msra.mxu0 %v139
    %415 = vmatmul.f32.gmra.mxu0 0.0
    %v416 = vpop.f32.mrf.mxu0
    %v417 = vadd.f32 %v355, %v416
    %418 = vdwg.mxu0
    %v419 = vadd.f32 %v349, %v377
    %v420 = vxor.u32 %v419, 2147483648
    %v421 = vmul.f32 %v420, 1.442695
    %v422 = vpow.pop %v421
    %v423 = vadd.f32 %v422, 1.0
    %v424 = vrcp.pop %v423
    %v425 = vmul.f32 %v423, %v424
    %v426 = vsub.f32 1.0, %v425
    %v427 = vmul.f32 %v424, %v426
    %v428 = vadd.f32 %v424, %v427
    %vm429 = vweird.f32 %v423
    %vm430 = vweird.f32 %v424
    %vm431 = vmor %vm429, %vm430
    %v432 = vsel %vm431, %v424, %v428
    %v433 = vand.u32 2147483647, %v423
    %vm434 = vcmp.eq.f32.partialorder %v433, 8.507059e+37
    %v435 = vand.u32 %v423, 2147483648
    %v436 = vor.u32 1.1754944e-38, %v435
    %v437 = vsel %vm434, %v436, %v432
    %v438 = vmul.f32 1.0, %v437
    %v439 = vadd.f32 %v350, %v397
    %v440 = vxor.u32 %v439, 2147483648
    %v441 = vmul.f32 %v440, 1.442695
    %v442 = vpow.pop %v441
    %v443 = vadd.f32 %v442, 1.0
    %v444 = vrcp.pop %v443
    %v445 = vmul.f32 %v443, %v444
    %v446 = vsub.f32 1.0, %v445
    %v447 = vmul.f32 %v444, %v446
    %v448 = vadd.f32 %v444, %v447
    %vm449 = vweird.f32 %v443
    %vm450 = vweird.f32 %v444
    %vm451 = vmor %vm449, %vm450
    %v452 = vsel %vm451, %v444, %v448
    %v453 = vand.u32 2147483647, %v443
    %vm454 = vcmp.eq.f32.partialorder %v453, 8.507059e+37
    %v455 = vand.u32 %v443, 2147483648
    %v456 = vor.u32 1.1754944e-38, %v455
    %v457 = vsel %vm454, %v456, %v452
    %v458 = vmul.f32 1.0, %v457
    %v459 = vmul.f32 %v438, %v417
    %v460 = vadd.f32 %v351, %v459
    %v461 = vtanh.pop %v460
    %v462 = vsub.f32 1.0, %v458
    %v463 = vmul.f32 %v462, %v461
    %v464 = vmul.f32 %v458, 0.0
    %v465 = vadd.f32 %v463, %v464
    %466 = vst [vmem:[#allocation2] sm:$0xff] %v465
    %v467 = vld [vmem:[#allocation3 + $0x18] sm:$0xff]
    %v468 = vld [vmem:[#allocation3 + $0x20] sm:$0xff]
    %v469 = vld [vmem:[#allocation3 + $0x28] sm:$0xff]
    %470 = vmatpush.msra.mxu0 %v182
    %471 = vmatpush.msra.mxu0 %v179
    %472 = vmatpush.msra.mxu0 %v176
    %473 = vmatpush.msra.mxu0 %v173
    %474 = vmatpush.msra.mxu0 %v170
    %475 = vmatpush.msra.mxu0 %v167
    %476 = vmatpush.msra.mxu0 %v164
    %477 = vmatpush.msra.mxu0 %v161
    %478 = vmatpush.msra.mxu0 %v158
    %479 = vmatpush.msra.mxu0 %v155
    %480 = vmatpush.msra.mxu0 %v152
    %481 = vmatpush.msra.mxu0 %v149
    %482 = vmatpush.msra.mxu0 %v146
    %483 = vmatpush.msra.mxu0 %v143
    %484 = vmatpush.msra.mxu0 %v140
    %485 = vmatpush.msra.mxu0 %v137
    %486 = vmatmul.f32.gmra.mxu0 %v465
    %v487 = vpop.f32.mrf.mxu0
    %v488 = vadd.f32 %v353, %v487
    %489 = vdwg.mxu0
    %490 = vmatpush.msra.mxu0 %v183
    %491 = vmatpush.msra.mxu0 %v180
    %492 = vmatpush.msra.mxu0 %v177
    %493 = vmatpush.msra.mxu0 %v174
    %494 = vmatpush.msra.mxu0 %v171
    %495 = vmatpush.msra.mxu0 %v168
    %496 = vmatpush.msra.mxu0 %v165
    %497 = vmatpush.msra.mxu0 %v162
    %498 = vmatpush.msra.mxu0 %v159
    %499 = vmatpush.msra.mxu0 %v156
    %500 = vmatpush.msra.mxu0 %v153
    %501 = vmatpush.msra.mxu0 %v150
    %502 = vmatpush.msra.mxu0 %v147
    %503 = vmatpush.msra.mxu0 %v144
    %504 = vmatpush.msra.mxu0 %v141
    %505 = vmatpush.msra.mxu0 %v138
    %506 = vmatmul.f32.gmra.mxu0 %v465
    %v507 = vpop.f32.mrf.mxu0
    %v508 = vadd.f32 %v354, %v507
    %509 = vdwg.mxu0
    %510 = vmatpush.msra.mxu0 %v184
    %511 = vmatpush.msra.mxu0 %v181
    %512 = vmatpush.msra.mxu0 %v178
    %513 = vmatpush.msra.mxu0 %v175
    %514 = vmatpush.msra.mxu0 %v172
    %515 = vmatpush.msra.mxu0 %v169
    %516 = vmatpush.msra.mxu0 %v166
    %517 = vmatpush.msra.mxu0 %v163
    %518 = vmatpush.msra.mxu0 %v160
    %519 = vmatpush.msra.mxu0 %v157
    %520 = vmatpush.msra.mxu0 %v154
    %521 = vmatpush.msra.mxu0 %v151
    %522 = vmatpush.msra.mxu0 %v148
    %523 = vmatpush.msra.mxu0 %v145
    %524 = vmatpush.msra.mxu0 %v142
    %525 = vmatpush.msra.mxu0 %v139
    %526 = vmatmul.f32.gmra.mxu0 %v465
    %v527 = vpop.f32.mrf.mxu0
    %v528 = vadd.f32 %v355, %v527
    %529 = vdwg.mxu0
    %v530 = vadd.f32 %v467, %v488
    %v531 = vxor.u32 %v530, 2147483648
    %v532 = vmul.f32 %v531, 1.442695
    %v533 = vpow.pop %v532
    %v534 = vadd.f32 %v533, 1.0
    %v535 = vrcp.pop %v534
    %v536 = vmul.f32 %v534, %v535
    %v537 = vsub.f32 1.0, %v536
    %v538 = vmul.f32 %v535, %v537
    %v539 = vadd.f32 %v535, %v538
    %vm540 = vweird.f32 %v534
    %vm541 = vweird.f32 %v535
    %vm542 = vmor %vm540, %vm541
    %v543 = vsel %vm542, %v535, %v539
    %v544 = vand.u32 2147483647, %v534
    %vm545 = vcmp.eq.f32.partialorder %v544, 8.507059e+37
    %v546 = vand.u32 %v534, 2147483648
    %v547 = vor.u32 1.1754944e-38, %v546
    %v548 = vsel %vm545, %v547, %v543
    %v549 = vmul.f32 1.0, %v548
    %v550 = vadd.f32 %v468, %v508
    %v551 = vxor.u32 %v550, 2147483648
    %v552 = vmul.f32 %v551, 1.442695
    %v553 = vpow.pop %v552
    %v554 = vadd.f32 %v553, 1.0
    %v555 = vrcp.pop %v554
    %v556 = vmul.f32 %v554, %v555
    %v557 = vsub.f32 1.0, %v556
    %v558 = vmul.f32 %v555, %v557
    %v559 = vadd.f32 %v555, %v558
    %vm560 = vweird.f32 %v554
    %vm561 = vweird.f32 %v555
    %vm562 = vmor %vm560, %vm561
    %v563 = vsel %vm562, %v555, %v559
    %v564 = vand.u32 2147483647, %v554
    %vm565 = vcmp.eq.f32.partialorder %v564, 8.507059e+37
    %v566 = vand.u32 %v554, 2147483648
    %v567 = vor.u32 1.1754944e-38, %v566
    %v568 = vsel %vm565, %v567, %v563
    %v569 = vmul.f32 1.0, %v568
    %v570 = vmul.f32 %v549, %v528
    %v571 = vadd.f32 %v469, %v570
    %v572 = vtanh.pop %v571
    %v573 = vsub.f32 1.0, %v569
    %v574 = vmul.f32 %v573, %v572
    %v575 = vmul.f32 %v569, %v465
    %v576 = vadd.f32 %v574, %v575
    %577 = vst [vmem:[#allocation2 + $0x8] sm:$0xff] %v576
    %v578 = vld [vmem:[#allocation3 + $0x30] sm:$0xff]
    %v579 = vld [vmem:[#allocation3 + $0x38] sm:$0xff]
    %v580 = vld [vmem:[#allocation3 + $0x40] sm:$0xff]
    %581 = vmatpush.msra.mxu0 %v182
    %582 = vmatpush.msra.mxu0 %v179
    %583 = vmatpush.msra.mxu0 %v176
    %584 = vmatpush.msra.mxu0 %v173
    %585 = vmatpush.msra.mxu0 %v170
    %586 = vmatpush.msra.mxu0 %v167
    %587 = vmatpush.msra.mxu0 %v164
    %588 = vmatpush.msra.mxu0 %v161
    %589 = vmatpush.msra.mxu0 %v158
    %590 = vmatpush.msra.mxu0 %v155
    %591 = vmatpush.msra.mxu0 %v152
    %592 = vmatpush.msra.mxu0 %v149
    %593 = vmatpush.msra.mxu0 %v146
    %594 = vmatpush.msra.mxu0 %v143
    %595 = vmatpush.msra.mxu0 %v140
    %596 = vmatpush.msra.mxu0 %v137
    %597 = vmatmul.f32.gmra.mxu0 %v576
    %v598 = vpop.f32.mrf.mxu0
    %v599 = vadd.f32 %v353, %v598
    %600 = vdwg.mxu0
    %601 = vmatpush.msra.mxu0 %v183
    %602 = vmatpush.msra.mxu0 %v180
    %603 = vmatpush.msra.mxu0 %v177
    %604 = vmatpush.msra.mxu0 %v174
    %605 = vmatpush.msra.mxu0 %v171
    %606 = vmatpush.msra.mxu0 %v168
    %607 = vmatpush.msra.mxu0 %v165
    %608 = vmatpush.msra.mxu0 %v162
    %609 = vmatpush.msra.mxu0 %v159
    %610 = vmatpush.msra.mxu0 %v156
    %611 = vmatpush.msra.mxu0 %v153
    %612 = vmatpush.msra.mxu0 %v150
    %613 = vmatpush.msra.mxu0 %v147
    %614 = vmatpush.msra.mxu0 %v144
    %615 = vmatpush.msra.mxu0 %v141
    %616 = vmatpush.msra.mxu0 %v138
    %617 = vmatmul.f32.gmra.mxu0 %v576
    %v618 = vpop.f32.mrf.mxu0
    %v619 = vadd.f32 %v354, %v618
    %620 = vdwg.mxu0
    %621 = vmatpush.msra.mxu0 %v184
    %622 = vmatpush.msra.mxu0 %v181
    %623 = vmatpush.msra.mxu0 %v178
    %624 = vmatpush.msra.mxu0 %v175
    %625 = vmatpush.msra.mxu0 %v172
    %626 = vmatpush.msra.mxu0 %v169
    %627 = vmatpush.msra.mxu0 %v166
    %628 = vmatpush.msra.mxu0 %v163
    %629 = vmatpush.msra.mxu0 %v160
    %630 = vmatpush.msra.mxu0 %v157
    %631 = vmatpush.msra.mxu0 %v154
    %632 = vmatpush.msra.mxu0 %v151
    %633 = vmatpush.msra.mxu0 %v148
    %634 = vmatpush.msra.mxu0 %v145
    %635 = vmatpush.msra.mxu0 %v142
    %636 = vmatpush.msra.mxu0 %v139
    %637 = vmatmul.f32.gmra.mxu0 %v576
    %v638 = vpop.f32.mrf.mxu0
    %v639 = vadd.f32 %v355, %v638
    %640 = vdwg.mxu0
    %v641 = vadd.f32 %v578, %v599
    %v642 = vxor.u32 %v641, 2147483648
    %v643 = vmul.f32 %v642, 1.442695
    %v644 = vpow.pop %v643
    %v645 = vadd.f32 %v644, 1.0
    %v646 = vrcp.pop %v645
    %v647 = vmul.f32 %v645, %v646
    %v648 = vsub.f32 1.0, %v647
    %v649 = vmul.f32 %v646, %v648
    %v650 = vadd.f32 %v646, %v649
    %vm651 = vweird.f32 %v645
    %vm652 = vweird.f32 %v646
    %vm653 = vmor %vm651, %vm652
    %v654 = vsel %vm653, %v646, %v650
    %v655 = vand.u32 2147483647, %v645
    %vm656 = vcmp.eq.f32.partialorder %v655, 8.507059e+37
    %v657 = vand.u32 %v645, 2147483648
    %v658 = vor.u32 1.1754944e-38, %v657
    %v659 = vsel %vm656, %v658, %v654
    %v660 = vmul.f32 1.0, %v659
    %v661 = vadd.f32 %v579, %v619
    %v662 = vxor.u32 %v661, 2147483648
    %v663 = vmul.f32 %v662, 1.442695
    %v664 = vpow.pop %v663
    %v665 = vadd.f32 %v664, 1.0
    %v666 = vrcp.pop %v665
    %v667 = vmul.f32 %v665, %v666
    %v668 = vsub.f32 1.0, %v667
    %v669 = vmul.f32 %v666, %v668
    %v670 = vadd.f32 %v666, %v669
    %vm671 = vweird.f32 %v665
    %vm672 = vweird.f32 %v666
    %vm673 = vmor %vm671, %vm672
    %v674 = vsel %vm673, %v666, %v670
    %v675 = vand.u32 2147483647, %v665
    %vm676 = vcmp.eq.f32.partialorder %v675, 8.507059e+37
    %v677 = vand.u32 %v665, 2147483648
    %v678 = vor.u32 1.1754944e-38, %v677
    %v679 = vsel %vm676, %v678, %v674
    %v680 = vmul.f32 1.0, %v679
    %v681 = vmul.f32 %v660, %v639
    %v682 = vadd.f32 %v580, %v681
    %v683 = vtanh.pop %v682
    %v684 = vsub.f32 1.0, %v680
    %v685 = vmul.f32 %v684, %v683
    %v686 = vmul.f32 %v680, %v576
    %v687 = vadd.f32 %v685, %v686
    %688 = vst [vmem:[#allocation2 + $0x10] sm:$0xff] %v687
    %v689 = vld [vmem:[#allocation3 + $0x48] sm:$0xff]
    %v690 = vld [vmem:[#allocation3 + $0x50] sm:$0xff]
    %v691 = vld [vmem:[#allocation3 + $0x58] sm:$0xff]
    %692 = vmatpush.msra.mxu0 %v182
    %693 = vmatpush.msra.mxu0 %v179
    %694 = vmatpush.msra.mxu0 %v176
    %695 = vmatpush.msra.mxu0 %v173
    %696 = vmatpush.msra.mxu0 %v170
    %697 = vmatpush.msra.mxu0 %v167
    %698 = vmatpush.msra.mxu0 %v164
    %699 = vmatpush.msra.mxu0 %v161
    %700 = vmatpush.msra.mxu0 %v158
    %701 = vmatpush.msra.mxu0 %v155
    %702 = vmatpush.msra.mxu0 %v152
    %703 = vmatpush.msra.mxu0 %v149
    %704 = vmatpush.msra.mxu0 %v146
    %705 = vmatpush.msra.mxu0 %v143
    %706 = vmatpush.msra.mxu0 %v140
    %707 = vmatpush.msra.mxu0 %v137
    %708 = vmatmul.f32.gmra.mxu0 %v687
    %v709 = vpop.f32.mrf.mxu0
    %v710 = vadd.f32 %v353, %v709
    %711 = vdwg.mxu0
    %712 = vmatpush.msra.mxu0 %v183
    %713 = vmatpush.msra.mxu0 %v180
    %714 = vmatpush.msra.mxu0 %v177
    %715 = vmatpush.msra.mxu0 %v174
    %716 = vmatpush.msra.mxu0 %v171
    %717 = vmatpush.msra.mxu0 %v168
    %718 = vmatpush.msra.mxu0 %v165
    %719 = vmatpush.msra.mxu0 %v162
    %720 = vmatpush.msra.mxu0 %v159
    %721 = vmatpush.msra.mxu0 %v156
    %722 = vmatpush.msra.mxu0 %v153
    %723 = vmatpush.msra.mxu0 %v150
    %724 = vmatpush.msra.mxu0 %v147
    %725 = vmatpush.msra.mxu0 %v144
    %726 = vmatpush.msra.mxu0 %v141
    %727 = vmatpush.msra.mxu0 %v138
    %728 = vmatmul.f32.gmra.mxu0 %v687
    %v729 = vpop.f32.mrf.mxu0
    %v730 = vadd.f32 %v354, %v729
    %731 = vdwg.mxu0
    %732 = vmatpush.msra.mxu0 %v184
    %733 = vmatpush.msra.mxu0 %v181
    %734 = vmatpush.msra.mxu0 %v178
    %735 = vmatpush.msra.mxu0 %v175
    %736 = vmatpush.msra.mxu0 %v172
    %737 = vmatpush.msra.mxu0 %v169
    %738 = vmatpush.msra.mxu0 %v166
    %739 = vmatpush.msra.mxu0 %v163
    %740 = vmatpush.msra.mxu0 %v160
    %741 = vmatpush.msra.mxu0 %v157
    %742 = vmatpush.msra.mxu0 %v154
    %743 = vmatpush.msra.mxu0 %v151
    %744 = vmatpush.msra.mxu0 %v148
    %745 = vmatpush.msra.mxu0 %v145
    %746 = vmatpush.msra.mxu0 %v142
    %747 = vmatpush.msra.mxu0 %v139
    %748 = vmatmul.f32.gmra.mxu0 %v687
    %v749 = vpop.f32.mrf.mxu0
    %v750 = vadd.f32 %v355, %v749
    %751 = vdwg.mxu0
    %v752 = vadd.f32 %v689, %v710
    %v753 = vxor.u32 %v752, 2147483648
    %v754 = vmul.f32 %v753, 1.442695
    %v755 = vpow.pop %v754
    %v756 = vadd.f32 %v755, 1.0
    %v757 = vrcp.pop %v756
    %v758 = vmul.f32 %v756, %v757
    %v759 = vsub.f32 1.0, %v758
    %v760 = vmul.f32 %v757, %v759
    %v761 = vadd.f32 %v757, %v760
    %vm762 = vweird.f32 %v756
    %vm763 = vweird.f32 %v757
    %vm764 = vmor %vm762, %vm763
    %v765 = vsel %vm764, %v757, %v761
    %v766 = vand.u32 2147483647, %v756
    %vm767 = vcmp.eq.f32.partialorder %v766, 8.507059e+37
    %v768 = vand.u32 %v756, 2147483648
    %v769 = vor.u32 1.1754944e-38, %v768
    %v770 = vsel %vm767, %v769, %v765
    %v771 = vmul.f32 1.0, %v770
    %v772 = vadd.f32 %v690, %v730
    %v773 = vxor.u32 %v772, 2147483648
    %v774 = vmul.f32 %v773, 1.442695
    %v775 = vpow.pop %v774
    %v776 = vadd.f32 %v775, 1.0
    %v777 = vrcp.pop %v776
    %v778 = vmul.f32 %v776, %v777
    %v779 = vsub.f32 1.0, %v778
    %v780 = vmul.f32 %v777, %v779
    %v781 = vadd.f32 %v777, %v780
    %vm782 = vweird.f32 %v776
    %vm783 = vweird.f32 %v777
    %vm784 = vmor %vm782, %vm783
    %v785 = vsel %vm784, %v777, %v781
    %v786 = vand.u32 2147483647, %v776
    %vm787 = vcmp.eq.f32.partialorder %v786, 8.507059e+37
    %v788 = vand.u32 %v776, 2147483648
    %v789 = vor.u32 1.1754944e-38, %v788
    %v790 = vsel %vm787, %v789, %v785
    %v791 = vmul.f32 1.0, %v790
    %v792 = vmul.f32 %v771, %v750
    %v793 = vadd.f32 %v691, %v792
    %v794 = vtanh.pop %v793
    %v795 = vsub.f32 1.0, %v791
    %v796 = vmul.f32 %v795, %v794
    %v797 = vmul.f32 %v791, %v687
    %v798 = vadd.f32 %v796, %v797
    %799 = vst [vmem:[#allocation2 + $0x18] sm:$0xff] %v798
    %v800 = vld [vmem:[#allocation3 + $0x60] sm:$0xff]
    %v801 = vld [vmem:[#allocation3 + $0x68] sm:$0xff]
    %v802 = vld [vmem:[#allocation3 + $0x70] sm:$0xff]
    %803 = vmatpush.msra.mxu0 %v182
    %804 = vmatpush.msra.mxu0 %v179
    %805 = vmatpush.msra.mxu0 %v176
    %806 = vmatpush.msra.mxu0 %v173
    %807 = vmatpush.msra.mxu0 %v170
    %808 = vmatpush.msra.mxu0 %v167
    %809 = vmatpush.msra.mxu0 %v164
    %810 = vmatpush.msra.mxu0 %v161
    %811 = vmatpush.msra.mxu0 %v158
    %812 = vmatpush.msra.mxu0 %v155
    %813 = vmatpush.msra.mxu0 %v152
    %814 = vmatpush.msra.mxu0 %v149
    %815 = vmatpush.msra.mxu0 %v146
    %816 = vmatpush.msra.mxu0 %v143
    %817 = vmatpush.msra.mxu0 %v140
    %818 = vmatpush.msra.mxu0 %v137
    %819 = vmatmul.f32.gmra.mxu0 %v798
    %v820 = vpop.f32.mrf.mxu0
    %v821 = vadd.f32 %v353, %v820
    %822 = vdwg.mxu0
    %823 = vmatpush.msra.mxu0 %v183
    %824 = vmatpush.msra.mxu0 %v180
    %825 = vmatpush.msra.mxu0 %v177
    %826 = vmatpush.msra.mxu0 %v174
    %827 = vmatpush.msra.mxu0 %v171
    %828 = vmatpush.msra.mxu0 %v168
    %829 = vmatpush.msra.mxu0 %v165
    %830 = vmatpush.msra.mxu0 %v162
    %831 = vmatpush.msra.mxu0 %v159
    %832 = vmatpush.msra.mxu0 %v156
    %833 = vmatpush.msra.mxu0 %v153
    %834 = vmatpush.msra.mxu0 %v150
    %835 = vmatpush.msra.mxu0 %v147
    %836 = vmatpush.msra.mxu0 %v144
    %837 = vmatpush.msra.mxu0 %v141
    %838 = vmatpush.msra.mxu0 %v138
    %839 = vmatmul.f32.gmra.mxu0 %v798
    %v840 = vpop.f32.mrf.mxu0
    %v841 = vadd.f32 %v354, %v840
    %842 = vdwg.mxu0
    %843 = vmatpush.msra.mxu0 %v184
    %844 = vmatpush.msra.mxu0 %v181
    %845 = vmatpush.msra.mxu0 %v178
    %846 = vmatpush.msra.mxu0 %v175
    %847 = vmatpush.msra.mxu0 %v172
    %848 = vmatpush.msra.mxu0 %v169
    %849 = vmatpush.msra.mxu0 %v166
    %850 = vmatpush.msra.mxu0 %v163
    %851 = vmatpush.msra.mxu0 %v160
    %852 = vmatpush.msra.mxu0 %v157
    %853 = vmatpush.msra.mxu0 %v154
    %854 = vmatpush.msra.mxu0 %v151
    %855 = vmatpush.msra.mxu0 %v148
    %856 = vmatpush.msra.mxu0 %v145
    %857 = vmatpush.msra.mxu0 %v142
    %858 = vmatpush.msra.mxu0 %v139
    %859 = vmatmul.f32.gmra.mxu0 %v798
    %v860 = vpop.f32.mrf.mxu0
    %v861 = vadd.f32 %v355, %v860
    %862 = vdwg.mxu0
    %v863 = vadd.f32 %v800, %v821
    %v864 = vxor.u32 %v863, 2147483648
    %v865 = vmul.f32 %v864, 1.442695
    %v866 = vpow.pop %v865
    %v867 = vadd.f32 %v866, 1.0
    %v868 = vrcp.pop %v867
    %v869 = vmul.f32 %v867, %v868
    %v870 = vsub.f32 1.0, %v869
    %v871 = vmul.f32 %v868, %v870
    %v872 = vadd.f32 %v868, %v871
    %vm873 = vweird.f32 %v867
    %vm874 = vweird.f32 %v868
    %vm875 = vmor %vm873, %vm874
    %v876 = vsel %vm875, %v868, %v872
    %v877 = vand.u32 2147483647, %v867
    %vm878 = vcmp.eq.f32.partialorder %v877, 8.507059e+37
    %v879 = vand.u32 %v867, 2147483648
    %v880 = vor.u32 1.1754944e-38, %v879
    %v881 = vsel %vm878, %v880, %v876
    %v882 = vmul.f32 1.0, %v881
    %v883 = vadd.f32 %v801, %v841
    %v884 = vxor.u32 %v883, 2147483648
    %v885 = vmul.f32 %v884, 1.442695
    %v886 = vpow.pop %v885
    %v887 = vadd.f32 %v886, 1.0
    %v888 = vrcp.pop %v887
    %v889 = vmul.f32 %v887, %v888
    %v890 = vsub.f32 1.0, %v889
    %v891 = vmul.f32 %v888, %v890
    %v892 = vadd.f32 %v888, %v891
    %vm893 = vweird.f32 %v887
    %vm894 = vweird.f32 %v888
    %vm895 = vmor %vm893, %vm894
    %v896 = vsel %vm895, %v888, %v892
    %v897 = vand.u32 2147483647, %v887
    %vm898 = vcmp.eq.f32.partialorder %v897, 8.507059e+37
    %v899 = vand.u32 %v887, 2147483648
    %v900 = vor.u32 1.1754944e-38, %v899
    %v901 = vsel %vm898, %v900, %v896
    %v902 = vmul.f32 1.0, %v901
    %v903 = vmul.f32 %v882, %v861
    %v904 = vadd.f32 %v802, %v903
    %v905 = vtanh.pop %v904
    %v906 = vsub.f32 1.0, %v902
    %v907 = vmul.f32 %v906, %v905
    %v908 = vmul.f32 %v902, %v798
    %v909 = vadd.f32 %v907, %v908
    %910 = vst [vmem:[#allocation2 + $0x20] sm:$0xff] %v909
    %v911 = vld [vmem:[#allocation3 + $0x78] sm:$0xff]
    %v912 = vld [vmem:[#allocation3 + $0x80] sm:$0xff]
    %v913 = vld [vmem:[#allocation3 + $0x88] sm:$0xff]
    %914 = vmatpush.msra.mxu0 %v182
    %915 = vmatpush.msra.mxu0 %v179
    %916 = vmatpush.msra.mxu0 %v176
    %917 = vmatpush.msra.mxu0 %v173
    %918 = vmatpush.msra.mxu0 %v170
    %919 = vmatpush.msra.mxu0 %v167
    %920 = vmatpush.msra.mxu0 %v164
    %921 = vmatpush.msra.mxu0 %v161
    %922 = vmatpush.msra.mxu0 %v158
    %923 = vmatpush.msra.mxu0 %v155
    %924 = vmatpush.msra.mxu0 %v152
    %925 = vmatpush.msra.mxu0 %v149
    %926 = vmatpush.msra.mxu0 %v146
    %927 = vmatpush.msra.mxu0 %v143
    %928 = vmatpush.msra.mxu0 %v140
    %929 = vmatpush.msra.mxu0 %v137
    %930 = vmatmul.f32.gmra.mxu0 %v909
    %v931 = vpop.f32.mrf.mxu0
    %v932 = vadd.f32 %v353, %v931
    %933 = vdwg.mxu0
    %934 = vmatpush.msra.mxu0 %v183
    %935 = vmatpush.msra.mxu0 %v180
    %936 = vmatpush.msra.mxu0 %v177
    %937 = vmatpush.msra.mxu0 %v174
    %938 = vmatpush.msra.mxu0 %v171
    %939 = vmatpush.msra.mxu0 %v168
    %940 = vmatpush.msra.mxu0 %v165
    %941 = vmatpush.msra.mxu0 %v162
    %942 = vmatpush.msra.mxu0 %v159
    %943 = vmatpush.msra.mxu0 %v156
    %944 = vmatpush.msra.mxu0 %v153
    %945 = vmatpush.msra.mxu0 %v150
    %946 = vmatpush.msra.mxu0 %v147
    %947 = vmatpush.msra.mxu0 %v144
    %948 = vmatpush.msra.mxu0 %v141
    %949 = vmatpush.msra.mxu0 %v138
    %950 = vmatmul.f32.gmra.mxu0 %v909
    %v951 = vpop.f32.mrf.mxu0
    %v952 = vadd.f32 %v354, %v951
    %953 = vdwg.mxu0
    %954 = vmatpush.msra.mxu0 %v184
    %955 = vmatpush.msra.mxu0 %v181
    %956 = vmatpush.msra.mxu0 %v178
    %957 = vmatpush.msra.mxu0 %v175
    %958 = vmatpush.msra.mxu0 %v172
    %959 = vmatpush.msra.mxu0 %v169
    %960 = vmatpush.msra.mxu0 %v166
    %961 = vmatpush.msra.mxu0 %v163
    %962 = vmatpush.msra.mxu0 %v160
    %963 = vmatpush.msra.mxu0 %v157
    %964 = vmatpush.msra.mxu0 %v154
    %965 = vmatpush.msra.mxu0 %v151
    %966 = vmatpush.msra.mxu0 %v148
    %967 = vmatpush.msra.mxu0 %v145
    %968 = vmatpush.msra.mxu0 %v142
    %969 = vmatpush.msra.mxu0 %v139
    %970 = vmatmul.f32.gmra.mxu0 %v909
    %v971 = vpop.f32.mrf.mxu0
    %v972 = vadd.f32 %v355, %v971
    %973 = vdwg.mxu0
    %v974 = vadd.f32 %v911, %v932
    %v975 = vxor.u32 %v974, 2147483648
    %v976 = vmul.f32 %v975, 1.442695
    %v977 = vpow.pop %v976
    %v978 = vadd.f32 %v977, 1.0
    %v979 = vrcp.pop %v978
    %v980 = vmul.f32 %v978, %v979
    %v981 = vsub.f32 1.0, %v980
    %v982 = vmul.f32 %v979, %v981
    %v983 = vadd.f32 %v979, %v982
    %vm984 = vweird.f32 %v978
    %vm985 = vweird.f32 %v979
    %vm986 = vmor %vm984, %vm985
    %v987 = vsel %vm986, %v979, %v983
    %v988 = vand.u32 2147483647, %v978
    %vm989 = vcmp.eq.f32.partialorder %v988, 8.507059e+37
    %v990 = vand.u32 %v978, 2147483648
    %v991 = vor.u32 1.1754944e-38, %v990
    %v992 = vsel %vm989, %v991, %v987
    %v993 = vmul.f32 1.0, %v992
    %v994 = vadd.f32 %v912, %v952
    %v995 = vxor.u32 %v994, 2147483648
    %v996 = vmul.f32 %v995, 1.442695
    %v997 = vpow.pop %v996
    %v998 = vadd.f32 %v997, 1.0
    %v999 = vrcp.pop %v998
    %v1000 = vmul.f32 %v998, %v999
    %v1001 = vsub.f32 1.0, %v1000
    %v1002 = vmul.f32 %v999, %v1001
    %v1003 = vadd.f32 %v999, %v1002
    %vm1004 = vweird.f32 %v998
    %vm1005 = vweird.f32 %v999
    %vm1006 = vmor %vm1004, %vm1005
    %v1007 = vsel %vm1006, %v999, %v1003
    %v1008 = vand.u32 2147483647, %v998
    %vm1009 = vcmp.eq.f32.partialorder %v1008, 8.507059e+37
    %v1010 = vand.u32 %v998, 2147483648
    %v1011 = vor.u32 1.1754944e-38, %v1010
    %v1012 = vsel %vm1009, %v1011, %v1007
    %v1013 = vmul.f32 1.0, %v1012
    %v1014 = vmul.f32 %v993, %v972
    %v1015 = vadd.f32 %v913, %v1014
    %v1016 = vtanh.pop %v1015
    %v1017 = vsub.f32 1.0, %v1013
    %v1018 = vmul.f32 %v1017, %v1016
    %v1019 = vmul.f32 %v1013, %v909
    %v1020 = vadd.f32 %v1018, %v1019
    %1021 = vst [vmem:[#allocation2 + $0x28] sm:$0xff] %v1020
    %v1022 = vld [vmem:[#allocation3 + $0x90] sm:$0xff]
    %v1023 = vld [vmem:[#allocation3 + $0x98] sm:$0xff]
    %v1024 = vld [vmem:[#allocation3 + $0xa0] sm:$0xff]
    %1025 = vmatpush.msra.mxu0 %v182
    %1026 = vmatpush.msra.mxu0 %v179
    %1027 = vmatpush.msra.mxu0 %v176
    %1028 = vmatpush.msra.mxu0 %v173
    %1029 = vmatpush.msra.mxu0 %v170
    %1030 = vmatpush.msra.mxu0 %v167
    %1031 = vmatpush.msra.mxu0 %v164
    %1032 = vmatpush.msra.mxu0 %v161
    %1033 = vmatpush.msra.mxu0 %v158
    %1034 = vmatpush.msra.mxu0 %v155
    %1035 = vmatpush.msra.mxu0 %v152
    %1036 = vmatpush.msra.mxu0 %v149
    %1037 = vmatpush.msra.mxu0 %v146
    %1038 = vmatpush.msra.mxu0 %v143
    %1039 = vmatpush.msra.mxu0 %v140
    %1040 = vmatpush.msra.mxu0 %v137
    %1041 = vmatmul.f32.gmra.mxu0 %v1020
    %v1042 = vpop.f32.mrf.mxu0
    %v1043 = vadd.f32 %v353, %v1042
    %1044 = vdwg.mxu0
    %1045 = vmatpush.msra.mxu0 %v183
    %1046 = vmatpush.msra.mxu0 %v180
    %1047 = vmatpush.msra.mxu0 %v177
    %1048 = vmatpush.msra.mxu0 %v174
    %1049 = vmatpush.msra.mxu0 %v171
    %1050 = vmatpush.msra.mxu0 %v168
    %1051 = vmatpush.msra.mxu0 %v165
    %1052 = vmatpush.msra.mxu0 %v162
    %1053 = vmatpush.msra.mxu0 %v159
    %1054 = vmatpush.msra.mxu0 %v156
    %1055 = vmatpush.msra.mxu0 %v153
    %1056 = vmatpush.msra.mxu0 %v150
    %1057 = vmatpush.msra.mxu0 %v147
    %1058 = vmatpush.msra.mxu0 %v144
    %1059 = vmatpush.msra.mxu0 %v141
    %1060 = vmatpush.msra.mxu0 %v138
    %1061 = vmatmul.f32.gmra.mxu0 %v1020
    %v1062 = vpop.f32.mrf.mxu0
    %v1063 = vadd.f32 %v354, %v1062
    %1064 = vdwg.mxu0
    %1065 = vmatpush.msra.mxu0 %v184
    %1066 = vmatpush.msra.mxu0 %v181
    %1067 = vmatpush.msra.mxu0 %v178
    %1068 = vmatpush.msra.mxu0 %v175
    %1069 = vmatpush.msra.mxu0 %v172
    %1070 = vmatpush.msra.mxu0 %v169
    %1071 = vmatpush.msra.mxu0 %v166
    %1072 = vmatpush.msra.mxu0 %v163
    %1073 = vmatpush.msra.mxu0 %v160
    %1074 = vmatpush.msra.mxu0 %v157
    %1075 = vmatpush.msra.mxu0 %v154
    %1076 = vmatpush.msra.mxu0 %v151
    %1077 = vmatpush.msra.mxu0 %v148
    %1078 = vmatpush.msra.mxu0 %v145
    %1079 = vmatpush.msra.mxu0 %v142
    %1080 = vmatpush.msra.mxu0 %v139
    %1081 = vmatmul.f32.gmra.mxu0 %v1020
    %v1082 = vpop.f32.mrf.mxu0
    %v1083 = vadd.f32 %v355, %v1082
    %1084 = vdwg.mxu0
    %v1085 = vadd.f32 %v1022, %v1043
    %v1086 = vxor.u32 %v1085, 2147483648
    %v1087 = vmul.f32 %v1086, 1.442695
    %v1088 = vpow.pop %v1087
    %v1089 = vadd.f32 %v1088, 1.0
    %v1090 = vrcp.pop %v1089
    %v1091 = vmul.f32 %v1089, %v1090
    %v1092 = vsub.f32 1.0, %v1091
    %v1093 = vmul.f32 %v1090, %v1092
    %v1094 = vadd.f32 %v1090, %v1093
    %vm1095 = vweird.f32 %v1089
    %vm1096 = vweird.f32 %v1090
    %vm1097 = vmor %vm1095, %vm1096
    %v1098 = vsel %vm1097, %v1090, %v1094
    %v1099 = vand.u32 2147483647, %v1089
    %vm1100 = vcmp.eq.f32.partialorder %v1099, 8.507059e+37
    %v1101 = vand.u32 %v1089, 2147483648
    %v1102 = vor.u32 1.1754944e-38, %v1101
    %v1103 = vsel %vm1100, %v1102, %v1098
    %v1104 = vmul.f32 1.0, %v1103
    %v1105 = vadd.f32 %v1023, %v1063
    %v1106 = vxor.u32 %v1105, 2147483648
    %v1107 = vmul.f32 %v1106, 1.442695
    %v1108 = vpow.pop %v1107
    %v1109 = vadd.f32 %v1108, 1.0
    %v1110 = vrcp.pop %v1109
    %v1111 = vmul.f32 %v1109, %v1110
    %v1112 = vsub.f32 1.0, %v1111
    %v1113 = vmul.f32 %v1110, %v1112
    %v1114 = vadd.f32 %v1110, %v1113
    %vm1115 = vweird.f32 %v1109
    %vm1116 = vweird.f32 %v1110
    %vm1117 = vmor %vm1115, %vm1116
    %v1118 = vsel %vm1117, %v1110, %v1114
    %v1119 = vand.u32 2147483647, %v1109
    %vm1120 = vcmp.eq.f32.partialorder %v1119, 8.507059e+37
    %v1121 = vand.u32 %v1109, 2147483648
    %v1122 = vor.u32 1.1754944e-38, %v1121
    %v1123 = vsel %vm1120, %v1122, %v1118
    %v1124 = vmul.f32 1.0, %v1123
    %v1125 = vmul.f32 %v1104, %v1083
    %v1126 = vadd.f32 %v1024, %v1125
    %v1127 = vtanh.pop %v1126
    %v1128 = vsub.f32 1.0, %v1124
    %v1129 = vmul.f32 %v1128, %v1127
    %v1130 = vmul.f32 %v1124, %v1020
    %v1131 = vadd.f32 %v1129, %v1130
    %1132 = vst [vmem:[#allocation2 + $0x30] sm:$0xff] %v1131
    %v1133 = vld [vmem:[#allocation3 + $0xa8] sm:$0xff]
    %v1134 = vld [vmem:[#allocation3 + $0xb0] sm:$0xff]
    %v1135 = vld [vmem:[#allocation3 + $0xb8] sm:$0xff]
    %1136 = vmatpush.msra.mxu0 %v182
    %1137 = vmatpush.msra.mxu0 %v179
    %1138 = vmatpush.msra.mxu0 %v176
    %1139 = vmatpush.msra.mxu0 %v173
    %1140 = vmatpush.msra.mxu0 %v170
    %1141 = vmatpush.msra.mxu0 %v167
    %1142 = vmatpush.msra.mxu0 %v164
    %1143 = vmatpush.msra.mxu0 %v161
    %1144 = vmatpush.msra.mxu0 %v158
    %1145 = vmatpush.msra.mxu0 %v155
    %1146 = vmatpush.msra.mxu0 %v152
    %1147 = vmatpush.msra.mxu0 %v149
    %1148 = vmatpush.msra.mxu0 %v146
    %1149 = vmatpush.msra.mxu0 %v143
    %1150 = vmatpush.msra.mxu0 %v140
    %1151 = vmatpush.msra.mxu0 %v137
    %1152 = vmatmul.f32.gmra.mxu0 %v1131
    %v1153 = vpop.f32.mrf.mxu0
    %v1154 = vadd.f32 %v353, %v1153
    %1155 = vdwg.mxu0
    %1156 = vmatpush.msra.mxu0 %v183
    %1157 = vmatpush.msra.mxu0 %v180
    %1158 = vmatpush.msra.mxu0 %v177
    %1159 = vmatpush.msra.mxu0 %v174
    %1160 = vmatpush.msra.mxu0 %v171
    %1161 = vmatpush.msra.mxu0 %v168
    %1162 = vmatpush.msra.mxu0 %v165
    %1163 = vmatpush.msra.mxu0 %v162
    %1164 = vmatpush.msra.mxu0 %v159
    %1165 = vmatpush.msra.mxu0 %v156
    %1166 = vmatpush.msra.mxu0 %v153
    %1167 = vmatpush.msra.mxu0 %v150
    %1168 = vmatpush.msra.mxu0 %v147
    %1169 = vmatpush.msra.mxu0 %v144
    %1170 = vmatpush.msra.mxu0 %v141
    %1171 = vmatpush.msra.mxu0 %v138
    %1172 = vmatmul.f32.gmra.mxu0 %v1131
    %v1173 = vpop.f32.mrf.mxu0
    %v1174 = vadd.f32 %v354, %v1173
    %1175 = vdwg.mxu0
    %1176 = vmatpush.msra.mxu0 %v184
    %1177 = vmatpush.msra.mxu0 %v181
    %1178 = vmatpush.msra.mxu0 %v178
    %1179 = vmatpush.msra.mxu0 %v175
    %1180 = vmatpush.msra.mxu0 %v172
    %1181 = vmatpush.msra.mxu0 %v169
    %1182 = vmatpush.msra.mxu0 %v166
    %1183 = vmatpush.msra.mxu0 %v163
    %1184 = vmatpush.msra.mxu0 %v160
    %1185 = vmatpush.msra.mxu0 %v157
    %1186 = vmatpush.msra.mxu0 %v154
    %1187 = vmatpush.msra.mxu0 %v151
    %1188 = vmatpush.msra.mxu0 %v148
    %1189 = vmatpush.msra.mxu0 %v145
    %1190 = vmatpush.msra.mxu0 %v142
    %1191 = vmatpush.msra.mxu0 %v139
    %1192 = vmatmul.f32.gmra.mxu0 %v1131
    %v1193 = vpop.f32.mrf.mxu0
    %v1194 = vadd.f32 %v355, %v1193
    %1195 = vdwg.mxu0
    %v1196 = vadd.f32 %v1133, %v1154
    %v1197 = vxor.u32 %v1196, 2147483648
    %v1198 = vmul.f32 %v1197, 1.442695
    %v1199 = vpow.pop %v1198
    %v1200 = vadd.f32 %v1199, 1.0
    %v1201 = vrcp.pop %v1200
    %v1202 = vmul.f32 %v1200, %v1201
    %v1203 = vsub.f32 1.0, %v1202
    %v1204 = vmul.f32 %v1201, %v1203
    %v1205 = vadd.f32 %v1201, %v1204
    %vm1206 = vweird.f32 %v1200
    %vm1207 = vweird.f32 %v1201
    %vm1208 = vmor %vm1206, %vm1207
    %v1209 = vsel %vm1208, %v1201, %v1205
    %v1210 = vand.u32 2147483647, %v1200
    %vm1211 = vcmp.eq.f32.partialorder %v1210, 8.507059e+37
    %v1212 = vand.u32 %v1200, 2147483648
    %v1213 = vor.u32 1.1754944e-38, %v1212
    %v1214 = vsel %vm1211, %v1213, %v1209
    %v1215 = vmul.f32 1.0, %v1214
    %v1216 = vadd.f32 %v1134, %v1174
    %v1217 = vxor.u32 %v1216, 2147483648
    %v1218 = vmul.f32 %v1217, 1.442695
    %v1219 = vpow.pop %v1218
    %v1220 = vadd.f32 %v1219, 1.0
    %v1221 = vrcp.pop %v1220
    %v1222 = vmul.f32 %v1220, %v1221
    %v1223 = vsub.f32 1.0, %v1222
    %v1224 = vmul.f32 %v1221, %v1223
    %v1225 = vadd.f32 %v1221, %v1224
    %vm1226 = vweird.f32 %v1220
    %vm1227 = vweird.f32 %v1221
    %vm1228 = vmor %vm1226, %vm1227
    %v1229 = vsel %vm1228, %v1221, %v1225
    %v1230 = vand.u32 2147483647, %v1220
    %vm1231 = vcmp.eq.f32.partialorder %v1230, 8.507059e+37
    %v1232 = vand.u32 %v1220, 2147483648
    %v1233 = vor.u32 1.1754944e-38, %v1232
    %v1234 = vsel %vm1231, %v1233, %v1229
    %v1235 = vmul.f32 1.0, %v1234
    %v1236 = vmul.f32 %v1215, %v1194
    %v1237 = vadd.f32 %v1135, %v1236
    %v1238 = vtanh.pop %v1237
    %v1239 = vsub.f32 1.0, %v1235
    %v1240 = vmul.f32 %v1239, %v1238
    %v1241 = vmul.f32 %v1235, %v1131
    %v1242 = vadd.f32 %v1240, %v1241
    %1243 = vst [vmem:[#allocation2 + $0x38] sm:$0xff] %v1242
    %v1244 = vld [vmem:[#allocation6] sm:$0xff]
    %v1245 = vld [vmem:[#allocation6 + $0x8] sm:$0xff]
    %v1246 = vld [vmem:[#allocation6 + $0x10] sm:$0xff]
    %v1247 = vld [vmem:[#allocation6 + $0x18] sm:$0xff]
    %v1248 = vld [vmem:[#allocation6 + $0x20] sm:$0xff]
    %v1249 = vld [vmem:[#allocation6 + $0x28] sm:$0xff]
    %v1250 = vld [vmem:[#allocation6 + $0x30] sm:$0xff]
    %v1251 = vld [vmem:[#allocation6 + $0x38] sm:$0xff]
    %v1252 = vld [vmem:[#allocation6 + $0x40] sm:$0xff]
    %v1253 = vld [vmem:[#allocation6 + $0x48] sm:$0xff]
    %v1254 = vld [vmem:[#allocation6 + $0x50] sm:$0xff]
    %v1255 = vld [vmem:[#allocation6 + $0x58] sm:$0xff]
    %v1256 = vld [vmem:[#allocation6 + $0x60] sm:$0xff]
    %v1257 = vld [vmem:[#allocation6 + $0x68] sm:$0xff]
    %v1258 = vld [vmem:[#allocation6 + $0x70] sm:$0xff]
    %v1259 = vld [vmem:[#allocation6 + $0x78] sm:$0xff]
    %v1260 = vld [vmem:[#allocation6 + $0x80] sm:$0xff]
    %v1261 = vld [vmem:[#allocation6 + $0x88] sm:$0xff]
    %v1262 = vld [vmem:[#allocation6 + $0x90] sm:$0xff]
    %v1263 = vld [vmem:[#allocation6 + $0x98] sm:$0xff]
    %v1264 = vld [vmem:[#allocation6 + $0xa0] sm:$0xff]
    %v1265 = vld [vmem:[#allocation6 + $0xa8] sm:$0xff]
    %v1266 = vld [vmem:[#allocation6 + $0xb0] sm:$0xff]
    %v1267 = vld [vmem:[#allocation6 + $0xb8] sm:$0xff]
    %v1268 = vld [vmem:[#allocation6 + $0xc0] sm:$0xff]
    %v1269 = vld [vmem:[#allocation6 + $0xc8] sm:$0xff]
    %v1270 = vld [vmem:[#allocation6 + $0xd0] sm:$0xff]
    %v1271 = vld [vmem:[#allocation6 + $0xd8] sm:$0xff]
    %v1272 = vld [vmem:[#allocation6 + $0xe0] sm:$0xff]
    %v1273 = vld [vmem:[#allocation6 + $0xe8] sm:$0xff]
    %v1274 = vld [vmem:[#allocation6 + $0xf0] sm:$0xff]
    %v1275 = vld [vmem:[#allocation6 + $0xf8] sm:$0xff]
    %v1276 = vld [vmem:[#allocation6 + $0x100] sm:$0xff]
    %v1277 = vld [vmem:[#allocation6 + $0x108] sm:$0xff]
    %v1278 = vld [vmem:[#allocation6 + $0x110] sm:$0xff]
    %v1279 = vld [vmem:[#allocation6 + $0x118] sm:$0xff]
    %v1280 = vld [vmem:[#allocation6 + $0x120] sm:$0xff]
    %v1281 = vld [vmem:[#allocation6 + $0x128] sm:$0xff]
    %v1282 = vld [vmem:[#allocation6 + $0x130] sm:$0xff]
    %v1283 = vld [vmem:[#allocation6 + $0x138] sm:$0xff]
    %v1284 = vld [vmem:[#allocation6 + $0x140] sm:$0xff]
    %v1285 = vld [vmem:[#allocation6 + $0x148] sm:$0xff]
    %v1286 = vld [vmem:[#allocation6 + $0x150] sm:$0xff]
    %v1287 = vld [vmem:[#allocation6 + $0x158] sm:$0xff]
    %v1288 = vld [vmem:[#allocation6 + $0x160] sm:$0xff]
    %v1289 = vld [vmem:[#allocation6 + $0x168] sm:$0xff]
    %v1290 = vld [vmem:[#allocation6 + $0x170] sm:$0xff]
    %v1291 = vld [vmem:[#allocation6 + $0x178] sm:$0xff]
    %v1292 = vld [vmem:[#allocation8] sm:$0xff]
    %v1293 = vld [vmem:[#allocation8 + $0x8] sm:$0xff]
    %v1294 = vld [vmem:[#allocation8 + $0x10] sm:$0xff]
    %v1295 = vld [vmem:[#allocation8 + $0x18] sm:$0xff]
    %v1296 = vld [vmem:[#allocation8 + $0x20] sm:$0xff]
    %v1297 = vld [vmem:[#allocation8 + $0x28] sm:$0xff]
    %v1298 = vld [vmem:[#allocation8 + $0x30] sm:$0xff]
    %v1299 = vld [vmem:[#allocation8 + $0x38] sm:$0xff]
    %v1300 = vld [vmem:[#allocation8 + $0x40] sm:$0xff]
    %v1301 = vld [vmem:[#allocation8 + $0x48] sm:$0xff]
    %v1302 = vld [vmem:[#allocation8 + $0x50] sm:$0xff]
    %v1303 = vld [vmem:[#allocation8 + $0x58] sm:$0xff]
    %v1304 = vld [vmem:[#allocation8 + $0x60] sm:$0xff]
    %v1305 = vld [vmem:[#allocation8 + $0x68] sm:$0xff]
    %v1306 = vld [vmem:[#allocation8 + $0x70] sm:$0xff]
    %v1307 = vld [vmem:[#allocation8 + $0x78] sm:$0xff]
    %v1308 = vld [vmem:[#allocation8 + $0x80] sm:$0xff]
    %v1309 = vld [vmem:[#allocation8 + $0x88] sm:$0xff]
    %v1310 = vld [vmem:[#allocation8 + $0x90] sm:$0xff]
    %v1311 = vld [vmem:[#allocation8 + $0x98] sm:$0xff]
    %v1312 = vld [vmem:[#allocation8 + $0xa0] sm:$0xff]
    %v1313 = vld [vmem:[#allocation8 + $0xa8] sm:$0xff]
    %v1314 = vld [vmem:[#allocation8 + $0xb0] sm:$0xff]
    %v1315 = vld [vmem:[#allocation8 + $0xb8] sm:$0xff]
    %v1316 = vld [vmem:[#allocation8 + $0xc0] sm:$0xff]
    %v1317 = vld [vmem:[#allocation8 + $0xc8] sm:$0xff]
    %v1318 = vld [vmem:[#allocation8 + $0xd0] sm:$0xff]
    %v1319 = vld [vmem:[#allocation8 + $0xd8] sm:$0xff]
    %v1320 = vld [vmem:[#allocation8 + $0xe0] sm:$0xff]
    %v1321 = vld [vmem:[#allocation8 + $0xe8] sm:$0xff]
    %v1322 = vld [vmem:[#allocation8 + $0xf0] sm:$0xff]
    %v1323 = vld [vmem:[#allocation8 + $0xf8] sm:$0xff]
    %v1324 = vld [vmem:[#allocation8 + $0x100] sm:$0xff]
    %v1325 = vld [vmem:[#allocation8 + $0x108] sm:$0xff]
    %v1326 = vld [vmem:[#allocation8 + $0x110] sm:$0xff]
    %v1327 = vld [vmem:[#allocation8 + $0x118] sm:$0xff]
    %v1328 = vld [vmem:[#allocation8 + $0x120] sm:$0xff]
    %v1329 = vld [vmem:[#allocation8 + $0x128] sm:$0xff]
    %v1330 = vld [vmem:[#allocation8 + $0x130] sm:$0xff]
    %v1331 = vld [vmem:[#allocation8 + $0x138] sm:$0xff]
    %v1332 = vld [vmem:[#allocation8 + $0x140] sm:$0xff]
    %v1333 = vld [vmem:[#allocation8 + $0x148] sm:$0xff]
    %v1334 = vld [vmem:[#allocation8 + $0x150] sm:$0xff]
    %v1335 = vld [vmem:[#allocation8 + $0x158] sm:$0xff]
    %v1336 = vld [vmem:[#allocation8 + $0x160] sm:$0xff]
    %v1337 = vld [vmem:[#allocation8 + $0x168] sm:$0xff]
    %v1338 = vld [vmem:[#allocation8 + $0x170] sm:$0xff]
    %v1339 = vld [vmem:[#allocation8 + $0x178] sm:$0xff]
    %v1340 = vld [vmem:[%s8] sm:$0x7]
    %v1341 = vld [vmem:[%s9] sm:$0x7]
    %v1342 = vld [vmem:[#allocation2] sm:$0xff]
    %v1343 = vld [vmem:[#allocation2 + $0x8] sm:$0xff]
    %v1344 = vld [vmem:[#allocation2 + $0x10] sm:$0xff]
    %v1345 = vld [vmem:[#allocation2 + $0x18] sm:$0xff]
    %v1346 = vld [vmem:[#allocation2 + $0x20] sm:$0xff]
    %v1347 = vld [vmem:[#allocation2 + $0x28] sm:$0xff]
    %v1348 = vld [vmem:[#allocation2 + $0x30] sm:$0xff]
    %v1349 = vld [vmem:[#allocation2 + $0x38] sm:$0xff]
    %v1351 = vperm.slane %v1340, 0
    %v1352 = vperm.slane %v1340, 1
    %v1353 = vperm.slane %v1340, 2
    %1357 = vmatpush.msra.mxu0 %v1289
    %1358 = vmatpush.msra.mxu0 %v1286
    %1359 = vmatpush.msra.mxu0 %v1283
    %1360 = vmatpush.msra.mxu0 %v1280
    %1361 = vmatpush.msra.mxu0 %v1277
    %1362 = vmatpush.msra.mxu0 %v1274
    %1363 = vmatpush.msra.mxu0 %v1271
    %1364 = vmatpush.msra.mxu0 %v1268
    %1365 = vmatpush.msra.mxu0 %v1265
    %1366 = vmatpush.msra.mxu0 %v1262
    %1367 = vmatpush.msra.mxu0 %v1259
    %1368 = vmatpush.msra.mxu0 %v1256
    %1369 = vmatpush.msra.mxu0 %v1253
    %1370 = vmatpush.msra.mxu0 %v1250
    %1371 = vmatpush.msra.mxu0 %v1247
    %1372 = vmatpush.msra.mxu0 %v1244
    %1373 = vmatmul.f32.gmra.mxu0 %v1342
    %v1374 = vpop.f32.mrf.mxu0
    %v1375 = vadd.f32 %v1351, %v1374
    %1376 = vmatmul.f32.gmra.mxu0 %v1343
    %v1377 = vpop.f32.mrf.mxu0
    %v1378 = vadd.f32 %v1351, %v1377
    %1379 = vmatmul.f32.gmra.mxu0 %v1344
    %v1380 = vpop.f32.mrf.mxu0
    %v1381 = vadd.f32 %v1351, %v1380
    %1382 = vmatmul.f32.gmra.mxu0 %v1345
    %v1383 = vpop.f32.mrf.mxu0
    %v1384 = vadd.f32 %v1351, %v1383
    %1385 = vmatmul.f32.gmra.mxu0 %v1346
    %v1386 = vpop.f32.mrf.mxu0
    %v1387 = vadd.f32 %v1351, %v1386
    %1388 = vmatmul.f32.gmra.mxu0 %v1347
    %v1389 = vpop.f32.mrf.mxu0
    %v1390 = vadd.f32 %v1351, %v1389
    %1391 = vmatmul.f32.gmra.mxu0 %v1348
    %v1392 = vpop.f32.mrf.mxu0
    %v1393 = vadd.f32 %v1351, %v1392
    %1394 = vmatmul.f32.gmra.mxu0 %v1349
    %v1395 = vpop.f32.mrf.mxu0
    %v1396 = vadd.f32 %v1351, %v1395
    %1397 = vdwg.mxu0
    %1398 = vmatpush.msra.mxu0 %v1290
    %1399 = vmatpush.msra.mxu0 %v1287
    %1400 = vmatpush.msra.mxu0 %v1284
    %1401 = vmatpush.msra.mxu0 %v1281
    %1402 = vmatpush.msra.mxu0 %v1278
    %1403 = vmatpush.msra.mxu0 %v1275
    %1404 = vmatpush.msra.mxu0 %v1272
    %1405 = vmatpush.msra.mxu0 %v1269
    %1406 = vmatpush.msra.mxu0 %v1266
    %1407 = vmatpush.msra.mxu0 %v1263
    %1408 = vmatpush.msra.mxu0 %v1260
    %1409 = vmatpush.msra.mxu0 %v1257
    %1410 = vmatpush.msra.mxu0 %v1254
    %1411 = vmatpush.msra.mxu0 %v1251
    %1412 = vmatpush.msra.mxu0 %v1248
    %1413 = vmatpush.msra.mxu0 %v1245
    %1414 = vmatmul.f32.gmra.mxu0 %v1342
    %v1415 = vpop.f32.mrf.mxu0
    %v1416 = vadd.f32 %v1352, %v1415
    %1417 = vmatmul.f32.gmra.mxu0 %v1343
    %v1418 = vpop.f32.mrf.mxu0
    %v1419 = vadd.f32 %v1352, %v1418
    %1420 = vmatmul.f32.gmra.mxu0 %v1344
    %v1421 = vpop.f32.mrf.mxu0
    %v1422 = vadd.f32 %v1352, %v1421
    %1423 = vmatmul.f32.gmra.mxu0 %v1345
    %v1424 = vpop.f32.mrf.mxu0
    %v1425 = vadd.f32 %v1352, %v1424
    %1426 = vmatmul.f32.gmra.mxu0 %v1346
    %v1427 = vpop.f32.mrf.mxu0
    %v1428 = vadd.f32 %v1352, %v1427
    %1429 = vmatmul.f32.gmra.mxu0 %v1347
    %v1430 = vpop.f32.mrf.mxu0
    %v1431 = vadd.f32 %v1352, %v1430
    %1432 = vmatmul.f32.gmra.mxu0 %v1348
    %v1433 = vpop.f32.mrf.mxu0
    %v1434 = vadd.f32 %v1352, %v1433
    %1435 = vmatmul.f32.gmra.mxu0 %v1349
    %v1436 = vpop.f32.mrf.mxu0
    %v1437 = vadd.f32 %v1352, %v1436
    %1438 = vdwg.mxu0
    %1439 = vmatpush.msra.mxu0 %v1291
    %1440 = vmatpush.msra.mxu0 %v1288
    %1441 = vmatpush.msra.mxu0 %v1285
    %1442 = vmatpush.msra.mxu0 %v1282
    %1443 = vmatpush.msra.mxu0 %v1279
    %1444 = vmatpush.msra.mxu0 %v1276
    %1445 = vmatpush.msra.mxu0 %v1273
    %1446 = vmatpush.msra.mxu0 %v1270
    %1447 = vmatpush.msra.mxu0 %v1267
    %1448 = vmatpush.msra.mxu0 %v1264
    %1449 = vmatpush.msra.mxu0 %v1261
    %1450 = vmatpush.msra.mxu0 %v1258
    %1451 = vmatpush.msra.mxu0 %v1255
    %1452 = vmatpush.msra.mxu0 %v1252
    %1453 = vmatpush.msra.mxu0 %v1249
    %1454 = vmatpush.msra.mxu0 %v1246
    %1455 = vmatmul.f32.gmra.mxu0 %v1342
    %v1456 = vpop.f32.mrf.mxu0
    %v1457 = vadd.f32 %v1353, %v1456
    %1458 = vmatmul.f32.gmra.mxu0 %v1343
    %v1459 = vpop.f32.mrf.mxu0
    %v1460 = vadd.f32 %v1353, %v1459
    %1461 = vmatmul.f32.gmra.mxu0 %v1344
    %v1462 = vpop.f32.mrf.mxu0
    %v1463 = vadd.f32 %v1353, %v1462
    %1464 = vmatmul.f32.gmra.mxu0 %v1345
    %v1465 = vpop.f32.mrf.mxu0
    %v1466 = vadd.f32 %v1353, %v1465
    %1467 = vmatmul.f32.gmra.mxu0 %v1346
    %v1468 = vpop.f32.mrf.mxu0
    %v1469 = vadd.f32 %v1353, %v1468
    %1470 = vmatmul.f32.gmra.mxu0 %v1347
    %v1471 = vpop.f32.mrf.mxu0
    %v1472 = vadd.f32 %v1353, %v1471
    %1473 = vmatmul.f32.gmra.mxu0 %v1348
    %v1474 = vpop.f32.mrf.mxu0
    %v1475 = vadd.f32 %v1353, %v1474
    %1476 = vmatmul.f32.gmra.mxu0 %v1349
    %v1477 = vpop.f32.mrf.mxu0
    %v1478 = vadd.f32 %v1353, %v1477
    %1479 = vdwg.mxu0
    %1480 = vst [vmem:[#allocation3] sm:$0xff] %v1375
    %1481 = vst [vmem:[#allocation3 + $0x8] sm:$0xff] %v1416
    %1482 = vst [vmem:[#allocation3 + $0x10] sm:$0xff] %v1457
    %1483 = vst [vmem:[#allocation3 + $0x18] sm:$0xff] %v1378
    %1484 = vst [vmem:[#allocation3 + $0x20] sm:$0xff] %v1419
    %1485 = vst [vmem:[#allocation3 + $0x28] sm:$0xff] %v1460
    %1486 = vst [vmem:[#allocation3 + $0x30] sm:$0xff] %v1381
    %1487 = vst [vmem:[#allocation3 + $0x38] sm:$0xff] %v1422
    %1488 = vst [vmem:[#allocation3 + $0x40] sm:$0xff] %v1463
    %1489 = vst [vmem:[#allocation3 + $0x48] sm:$0xff] %v1384
    %1490 = vst [vmem:[#allocation3 + $0x50] sm:$0xff] %v1425
    %1491 = vst [vmem:[#allocation3 + $0x58] sm:$0xff] %v1466
    %1492 = vst [vmem:[#allocation3 + $0x60] sm:$0xff] %v1387
    %1493 = vst [vmem:[#allocation3 + $0x68] sm:$0xff] %v1428
    %1494 = vst [vmem:[#allocation3 + $0x70] sm:$0xff] %v1469
    %1495 = vst [vmem:[#allocation3 + $0x78] sm:$0xff] %v1390
    %1496 = vst [vmem:[#allocation3 + $0x80] sm:$0xff] %v1431
    %1497 = vst [vmem:[#allocation3 + $0x88] sm:$0xff] %v1472
    %1498 = vst [vmem:[#allocation3 + $0x90] sm:$0xff] %v1393
    %1499 = vst [vmem:[#allocation3 + $0x98] sm:$0xff] %v1434
    %1500 = vst [vmem:[#allocation3 + $0xa0] sm:$0xff] %v1475
    %1501 = vst [vmem:[#allocation3 + $0xa8] sm:$0xff] %v1396
    %1502 = vst [vmem:[#allocation3 + $0xb0] sm:$0xff] %v1437
    %1503 = vst [vmem:[#allocation3 + $0xb8] sm:$0xff] %v1478
    %v1504 = vld [vmem:[#allocation3] sm:$0xff]
    %v1505 = vld [vmem:[#allocation3 + $0x8] sm:$0xff]
    %v1506 = vld [vmem:[#allocation3 + $0x10] sm:$0xff]
    %v1508 = vperm.slane %v1341, 0
    %v1509 = vperm.slane %v1341, 1
    %v1510 = vperm.slane %v1341, 2
    %1514 = vmatpush.msra.mxu0 %v1337
    %1515 = vmatpush.msra.mxu0 %v1334
    %1516 = vmatpush.msra.mxu0 %v1331
    %1517 = vmatpush.msra.mxu0 %v1328
    %1518 = vmatpush.msra.mxu0 %v1325
    %1519 = vmatpush.msra.mxu0 %v1322
    %1520 = vmatpush.msra.mxu0 %v1319
    %1521 = vmatpush.msra.mxu0 %v1316
    %1522 = vmatpush.msra.mxu0 %v1313
    %1523 = vmatpush.msra.mxu0 %v1310
    %1524 = vmatpush.msra.mxu0 %v1307
    %1525 = vmatpush.msra.mxu0 %v1304
    %1526 = vmatpush.msra.mxu0 %v1301
    %1527 = vmatpush.msra.mxu0 %v1298
    %1528 = vmatpush.msra.mxu0 %v1295
    %1529 = vmatpush.msra.mxu0 %v1292
    %1530 = vmatmul.f32.gmra.mxu0 0.0
    %v1531 = vpop.f32.mrf.mxu0
    %v1532 = vadd.f32 %v1508, %v1531
    %1533 = vdwg.mxu0
    %1534 = vmatpush.msra.mxu0 %v1338
    %1535 = vmatpush.msra.mxu0 %v1335
    %1536 = vmatpush.msra.mxu0 %v1332
    %1537 = vmatpush.msra.mxu0 %v1329
    %1538 = vmatpush.msra.mxu0 %v1326
    %1539 = vmatpush.msra.mxu0 %v1323
    %1540 = vmatpush.msra.mxu0 %v1320
    %1541 = vmatpush.msra.mxu0 %v1317
    %1542 = vmatpush.msra.mxu0 %v1314
    %1543 = vmatpush.msra.mxu0 %v1311
    %1544 = vmatpush.msra.mxu0 %v1308
    %1545 = vmatpush.msra.mxu0 %v1305
    %1546 = vmatpush.msra.mxu0 %v1302
    %1547 = vmatpush.msra.mxu0 %v1299
    %1548 = vmatpush.msra.mxu0 %v1296
    %1549 = vmatpush.msra.mxu0 %v1293
    %1550 = vmatmul.f32.gmra.mxu0 0.0
    %v1551 = vpop.f32.mrf.mxu0
    %v1552 = vadd.f32 %v1509, %v1551
    %1553 = vdwg.mxu0
    %1554 = vmatpush.msra.mxu0 %v1339
    %1555 = vmatpush.msra.mxu0 %v1336
    %1556 = vmatpush.msra.mxu0 %v1333
    %1557 = vmatpush.msra.mxu0 %v1330
    %1558 = vmatpush.msra.mxu0 %v1327
    %1559 = vmatpush.msra.mxu0 %v1324
    %1560 = vmatpush.msra.mxu0 %v1321
    %1561 = vmatpush.msra.mxu0 %v1318
    %1562 = vmatpush.msra.mxu0 %v1315
    %1563 = vmatpush.msra.mxu0 %v1312
    %1564 = vmatpush.msra.mxu0 %v1309
    %1565 = vmatpush.msra.mxu0 %v1306
    %1566 = vmatpush.msra.mxu0 %v1303
    %1567 = vmatpush.msra.mxu0 %v1300
    %1568 = vmatpush.msra.mxu0 %v1297
    %1569 = vmatpush.msra.mxu0 %v1294
    %1570 = vmatmul.f32.gmra.mxu0 0.0
    %v1571 = vpop.f32.mrf.mxu0
    %v1572 = vadd.f32 %v1510, %v1571
    %1573 = vdwg.mxu0
    %v1574 = vadd.f32 %v1504, %v1532
    %v1575 = vxor.u32 %v1574, 2147483648
    %v1576 = vmul.f32 %v1575, 1.442695
    %v1577 = vpow.pop %v1576
    %v1578 = vadd.f32 %v1577, 1.0
    %v1579 = vrcp.pop %v1578
    %v1580 = vmul.f32 %v1578, %v1579
    %v1581 = vsub.f32 1.0, %v1580
    %v1582 = vmul.f32 %v1579, %v1581
    %v1583 = vadd.f32 %v1579, %v1582
    %vm1584 = vweird.f32 %v1578
    %vm1585 = vweird.f32 %v1579
    %vm1586 = vmor %vm1584, %vm1585
    %v1587 = vsel %vm1586, %v1579, %v1583
    %v1588 = vand.u32 2147483647, %v1578
    %vm1589 = vcmp.eq.f32.partialorder %v1588, 8.507059e+37
    %v1590 = vand.u32 %v1578, 2147483648
    %v1591 = vor.u32 1.1754944e-38, %v1590
    %v1592 = vsel %vm1589, %v1591, %v1587
    %v1593 = vmul.f32 1.0, %v1592
    %v1594 = vadd.f32 %v1505, %v1552
    %v1595 = vxor.u32 %v1594, 2147483648
    %v1596 = vmul.f32 %v1595, 1.442695
    %v1597 = vpow.pop %v1596
    %v1598 = vadd.f32 %v1597, 1.0
    %v1599 = vrcp.pop %v1598
    %v1600 = vmul.f32 %v1598, %v1599
    %v1601 = vsub.f32 1.0, %v1600
    %v1602 = vmul.f32 %v1599, %v1601
    %v1603 = vadd.f32 %v1599, %v1602
    %vm1604 = vweird.f32 %v1598
    %vm1605 = vweird.f32 %v1599
    %vm1606 = vmor %vm1604, %vm1605
    %v1607 = vsel %vm1606, %v1599, %v1603
    %v1608 = vand.u32 2147483647, %v1598
    %vm1609 = vcmp.eq.f32.partialorder %v1608, 8.507059e+37
    %v1610 = vand.u32 %v1598, 2147483648
    %v1611 = vor.u32 1.1754944e-38, %v1610
    %v1612 = vsel %vm1609, %v1611, %v1607
    %v1613 = vmul.f32 1.0, %v1612
    %v1614 = vmul.f32 %v1593, %v1572
    %v1615 = vadd.f32 %v1506, %v1614
    %v1616 = vtanh.pop %v1615
    %v1617 = vsub.f32 1.0, %v1613
    %v1618 = vmul.f32 %v1617, %v1616
    %v1619 = vmul.f32 %v1613, 0.0
    %v1620 = vadd.f32 %v1618, %v1619
    %vm1621 = vcmp.eq.s32.totalorder %v88, 1
    %v1622 = vsel %vm1621, 1, 0
    %1623 = vset.pattern.permute.xlu0 0
    %1624 = vperm.xlu0 %1623, %v1622
    %v1625 = vpop.permute.xlu0 %1624
    %vm1626 = vcmp.eq.s32.totalorder %v1625, 1
    %v1627 = vsel %vm1626, %v1620, 0.0
    %v1628 = vld [vmem:[#allocation3 + $0x18] sm:$0xff]
    %v1629 = vld [vmem:[#allocation3 + $0x20] sm:$0xff]
    %v1630 = vld [vmem:[#allocation3 + $0x28] sm:$0xff]
    %1631 = vmatpush.msra.mxu0 %v1337
    %1632 = vmatpush.msra.mxu0 %v1334
    %1633 = vmatpush.msra.mxu0 %v1331
    %1634 = vmatpush.msra.mxu0 %v1328
    %1635 = vmatpush.msra.mxu0 %v1325
    %1636 = vmatpush.msra.mxu0 %v1322
    %1637 = vmatpush.msra.mxu0 %v1319
    %1638 = vmatpush.msra.mxu0 %v1316
    %1639 = vmatpush.msra.mxu0 %v1313
    %1640 = vmatpush.msra.mxu0 %v1310
    %1641 = vmatpush.msra.mxu0 %v1307
    %1642 = vmatpush.msra.mxu0 %v1304
    %1643 = vmatpush.msra.mxu0 %v1301
    %1644 = vmatpush.msra.mxu0 %v1298
    %1645 = vmatpush.msra.mxu0 %v1295
    %1646 = vmatpush.msra.mxu0 %v1292
    %1647 = vmatmul.f32.gmra.mxu0 %v1620
    %v1648 = vpop.f32.mrf.mxu0
    %v1649 = vadd.f32 %v1508, %v1648
    %1650 = vdwg.mxu0
    %1651 = vmatpush.msra.mxu0 %v1338
    %1652 = vmatpush.msra.mxu0 %v1335
    %1653 = vmatpush.msra.mxu0 %v1332
    %1654 = vmatpush.msra.mxu0 %v1329
    %1655 = vmatpush.msra.mxu0 %v1326
    %1656 = vmatpush.msra.mxu0 %v1323
    %1657 = vmatpush.msra.mxu0 %v1320
    %1658 = vmatpush.msra.mxu0 %v1317
    %1659 = vmatpush.msra.mxu0 %v1314
    %1660 = vmatpush.msra.mxu0 %v1311
    %1661 = vmatpush.msra.mxu0 %v1308
    %1662 = vmatpush.msra.mxu0 %v1305
    %1663 = vmatpush.msra.mxu0 %v1302
    %1664 = vmatpush.msra.mxu0 %v1299
    %1665 = vmatpush.msra.mxu0 %v1296
    %1666 = vmatpush.msra.mxu0 %v1293
    %1667 = vmatmul.f32.gmra.mxu0 %v1620
    %v1668 = vpop.f32.mrf.mxu0
    %v1669 = vadd.f32 %v1509, %v1668
    %1670 = vdwg.mxu0
    %1671 = vmatpush.msra.mxu0 %v1339
    %1672 = vmatpush.msra.mxu0 %v1336
    %1673 = vmatpush.msra.mxu0 %v1333
    %1674 = vmatpush.msra.mxu0 %v1330
    %1675 = vmatpush.msra.mxu0 %v1327
    %1676 = vmatpush.msra.mxu0 %v1324
    %1677 = vmatpush.msra.mxu0 %v1321
    %1678 = vmatpush.msra.mxu0 %v1318
    %1679 = vmatpush.msra.mxu0 %v1315
    %1680 = vmatpush.msra.mxu0 %v1312
    %1681 = vmatpush.msra.mxu0 %v1309
    %1682 = vmatpush.msra.mxu0 %v1306
    %1683 = vmatpush.msra.mxu0 %v1303
    %1684 = vmatpush.msra.mxu0 %v1300
    %1685 = vmatpush.msra.mxu0 %v1297
    %1686 = vmatpush.msra.mxu0 %v1294
    %1687 = vmatmul.f32.gmra.mxu0 %v1620
    %v1688 = vpop.f32.mrf.mxu0
    %v1689 = vadd.f32 %v1510, %v1688
    %1690 = vdwg.mxu0
    %v1691 = vadd.f32 %v1628, %v1649
    %v1692 = vxor.u32 %v1691, 2147483648
    %v1693 = vmul.f32 %v1692, 1.442695
    %v1694 = vpow.pop %v1693
    %v1695 = vadd.f32 %v1694, 1.0
    %v1696 = vrcp.pop %v1695
    %v1697 = vmul.f32 %v1695, %v1696
    %v1698 = vsub.f32 1.0, %v1697
    %v1699 = vmul.f32 %v1696, %v1698
    %v1700 = vadd.f32 %v1696, %v1699
    %vm1701 = vweird.f32 %v1695
    %vm1702 = vweird.f32 %v1696
    %vm1703 = vmor %vm1701, %vm1702
    %v1704 = vsel %vm1703, %v1696, %v1700
    %v1705 = vand.u32 2147483647, %v1695
    %vm1706 = vcmp.eq.f32.partialorder %v1705, 8.507059e+37
    %v1707 = vand.u32 %v1695, 2147483648
    %v1708 = vor.u32 1.1754944e-38, %v1707
    %v1709 = vsel %vm1706, %v1708, %v1704
    %v1710 = vmul.f32 1.0, %v1709
    %v1711 = vadd.f32 %v1629, %v1669
    %v1712 = vxor.u32 %v1711, 2147483648
    %v1713 = vmul.f32 %v1712, 1.442695
    %v1714 = vpow.pop %v1713
    %v1715 = vadd.f32 %v1714, 1.0
    %v1716 = vrcp.pop %v1715
    %v1717 = vmul.f32 %v1715, %v1716
    %v1718 = vsub.f32 1.0, %v1717
    %v1719 = vmul.f32 %v1716, %v1718
    %v1720 = vadd.f32 %v1716, %v1719
    %vm1721 = vweird.f32 %v1715
    %vm1722 = vweird.f32 %v1716
    %vm1723 = vmor %vm1721, %vm1722
    %v1724 = vsel %vm1723, %v1716, %v1720
    %v1725 = vand.u32 2147483647, %v1715
    %vm1726 = vcmp.eq.f32.partialorder %v1725, 8.507059e+37
    %v1727 = vand.u32 %v1715, 2147483648
    %v1728 = vor.u32 1.1754944e-38, %v1727
    %v1729 = vsel %vm1726, %v1728, %v1724
    %v1730 = vmul.f32 1.0, %v1729
    %v1731 = vmul.f32 %v1710, %v1689
    %v1732 = vadd.f32 %v1630, %v1731
    %v1733 = vtanh.pop %v1732
    %v1734 = vsub.f32 1.0, %v1730
    %v1735 = vmul.f32 %v1734, %v1733
    %v1736 = vmul.f32 %v1730, %v1620
    %v1737 = vadd.f32 %v1735, %v1736
    %vm1738 = vcmp.eq.s32.totalorder %v88, 2
    %v1739 = vsel %vm1738, 1, 0
    %1740 = vset.pattern.permute.xlu0 0
    %1741 = vperm.xlu0 %1740, %v1739
    %v1742 = vpop.permute.xlu0 %1741
    %vm1743 = vcmp.eq.s32.totalorder %v1742, 1
    %v1744 = vsel %vm1743, %v1737, %v1627
    %v1745 = vld [vmem:[#allocation3 + $0x30] sm:$0xff]
    %v1746 = vld [vmem:[#allocation3 + $0x38] sm:$0xff]
    %v1747 = vld [vmem:[#allocation3 + $0x40] sm:$0xff]
    %1748 = vmatpush.msra.mxu0 %v1337
    %1749 = vmatpush.msra.mxu0 %v1334
    %1750 = vmatpush.msra.mxu0 %v1331
    %1751 = vmatpush.msra.mxu0 %v1328
    %1752 = vmatpush.msra.mxu0 %v1325
    %1753 = vmatpush.msra.mxu0 %v1322
    %1754 = vmatpush.msra.mxu0 %v1319
    %1755 = vmatpush.msra.mxu0 %v1316
    %1756 = vmatpush.msra.mxu0 %v1313
    %1757 = vmatpush.msra.mxu0 %v1310
    %1758 = vmatpush.msra.mxu0 %v1307
    %1759 = vmatpush.msra.mxu0 %v1304
    %1760 = vmatpush.msra.mxu0 %v1301
    %1761 = vmatpush.msra.mxu0 %v1298
    %1762 = vmatpush.msra.mxu0 %v1295
    %1763 = vmatpush.msra.mxu0 %v1292
    %1764 = vmatmul.f32.gmra.mxu0 %v1737
    %v1765 = vpop.f32.mrf.mxu0
    %v1766 = vadd.f32 %v1508, %v1765
    %1767 = vdwg.mxu0
    %1768 = vmatpush.msra.mxu0 %v1338
    %1769 = vmatpush.msra.mxu0 %v1335
    %1770 = vmatpush.msra.mxu0 %v1332
    %1771 = vmatpush.msra.mxu0 %v1329
    %1772 = vmatpush.msra.mxu0 %v1326
    %1773 = vmatpush.msra.mxu0 %v1323
    %1774 = vmatpush.msra.mxu0 %v1320
    %1775 = vmatpush.msra.mxu0 %v1317
    %1776 = vmatpush.msra.mxu0 %v1314
    %1777 = vmatpush.msra.mxu0 %v1311
    %1778 = vmatpush.msra.mxu0 %v1308
    %1779 = vmatpush.msra.mxu0 %v1305
    %1780 = vmatpush.msra.mxu0 %v1302
    %1781 = vmatpush.msra.mxu0 %v1299
    %1782 = vmatpush.msra.mxu0 %v1296
    %1783 = vmatpush.msra.mxu0 %v1293
    %1784 = vmatmul.f32.gmra.mxu0 %v1737
    %v1785 = vpop.f32.mrf.mxu0
    %v1786 = vadd.f32 %v1509, %v1785
    %1787 = vdwg.mxu0
    %1788 = vmatpush.msra.mxu0 %v1339
    %1789 = vmatpush.msra.mxu0 %v1336
    %1790 = vmatpush.msra.mxu0 %v1333
    %1791 = vmatpush.msra.mxu0 %v1330
    %1792 = vmatpush.msra.mxu0 %v1327
    %1793 = vmatpush.msra.mxu0 %v1324
    %1794 = vmatpush.msra.mxu0 %v1321
    %1795 = vmatpush.msra.mxu0 %v1318
    %1796 = vmatpush.msra.mxu0 %v1315
    %1797 = vmatpush.msra.mxu0 %v1312
    %1798 = vmatpush.msra.mxu0 %v1309
    %1799 = vmatpush.msra.mxu0 %v1306
    %1800 = vmatpush.msra.mxu0 %v1303
    %1801 = vmatpush.msra.mxu0 %v1300
    %1802 = vmatpush.msra.mxu0 %v1297
    %1803 = vmatpush.msra.mxu0 %v1294
    %1804 = vmatmul.f32.gmra.mxu0 %v1737
    %v1805 = vpop.f32.mrf.mxu0
    %v1806 = vadd.f32 %v1510, %v1805
    %1807 = vdwg.mxu0
    %v1808 = vadd.f32 %v1745, %v1766
    %v1809 = vxor.u32 %v1808, 2147483648
    %v1810 = vmul.f32 %v1809, 1.442695
    %v1811 = vpow.pop %v1810
    %v1812 = vadd.f32 %v1811, 1.0
    %v1813 = vrcp.pop %v1812
    %v1814 = vmul.f32 %v1812, %v1813
    %v1815 = vsub.f32 1.0, %v1814
    %v1816 = vmul.f32 %v1813, %v1815
    %v1817 = vadd.f32 %v1813, %v1816
    %vm1818 = vweird.f32 %v1812
    %vm1819 = vweird.f32 %v1813
    %vm1820 = vmor %vm1818, %vm1819
    %v1821 = vsel %vm1820, %v1813, %v1817
    %v1822 = vand.u32 2147483647, %v1812
    %vm1823 = vcmp.eq.f32.partialorder %v1822, 8.507059e+37
    %v1824 = vand.u32 %v1812, 2147483648
    %v1825 = vor.u32 1.1754944e-38, %v1824
    %v1826 = vsel %vm1823, %v1825, %v1821
    %v1827 = vmul.f32 1.0, %v1826
    %v1828 = vadd.f32 %v1746, %v1786
    %v1829 = vxor.u32 %v1828, 2147483648
    %v1830 = vmul.f32 %v1829, 1.442695
    %v1831 = vpow.pop %v1830
    %v1832 = vadd.f32 %v1831, 1.0
    %v1833 = vrcp.pop %v1832
    %v1834 = vmul.f32 %v1832, %v1833
    %v1835 = vsub.f32 1.0, %v1834
    %v1836 = vmul.f32 %v1833, %v1835
    %v1837 = vadd.f32 %v1833, %v1836
    %vm1838 = vweird.f32 %v1832
    %vm1839 = vweird.f32 %v1833
    %vm1840 = vmor %vm1838, %vm1839
    %v1841 = vsel %vm1840, %v1833, %v1837
    %v1842 = vand.u32 2147483647, %v1832
    %vm1843 = vcmp.eq.f32.partialorder %v1842, 8.507059e+37
    %v1844 = vand.u32 %v1832, 2147483648
    %v1845 = vor.u32 1.1754944e-38, %v1844
    %v1846 = vsel %vm1843, %v1845, %v1841
    %v1847 = vmul.f32 1.0, %v1846
    %v1848 = vmul.f32 %v1827, %v1806
    %v1849 = vadd.f32 %v1747, %v1848
    %v1850 = vtanh.pop %v1849
    %v1851 = vsub.f32 1.0, %v1847
    %v1852 = vmul.f32 %v1851, %v1850
    %v1853 = vmul.f32 %v1847, %v1737
    %v1854 = vadd.f32 %v1852, %v1853
    %vm1855 = vcmp.eq.s32.totalorder %v88, 3
    %v1856 = vsel %vm1855, 1, 0
    %1857 = vset.pattern.permute.xlu0 0
    %1858 = vperm.xlu0 %1857, %v1856
    %v1859 = vpop.permute.xlu0 %1858
    %vm1860 = vcmp.eq.s32.totalorder %v1859, 1
    %v1861 = vsel %vm1860, %v1854, %v1744
    %v1862 = vld [vmem:[#allocation3 + $0x48] sm:$0xff]
    %v1863 = vld [vmem:[#allocation3 + $0x50] sm:$0xff]
    %v1864 = vld [vmem:[#allocation3 + $0x58] sm:$0xff]
    %1865 = vmatpush.msra.mxu0 %v1337
    %1866 = vmatpush.msra.mxu0 %v1334
    %1867 = vmatpush.msra.mxu0 %v1331
    %1868 = vmatpush.msra.mxu0 %v1328
    %1869 = vmatpush.msra.mxu0 %v1325
    %1870 = vmatpush.msra.mxu0 %v1322
    %1871 = vmatpush.msra.mxu0 %v1319
    %1872 = vmatpush.msra.mxu0 %v1316
    %1873 = vmatpush.msra.mxu0 %v1313
    %1874 = vmatpush.msra.mxu0 %v1310
    %1875 = vmatpush.msra.mxu0 %v1307
    %1876 = vmatpush.msra.mxu0 %v1304
    %1877 = vmatpush.msra.mxu0 %v1301
    %1878 = vmatpush.msra.mxu0 %v1298
    %1879 = vmatpush.msra.mxu0 %v1295
    %1880 = vmatpush.msra.mxu0 %v1292
    %1881 = vmatmul.f32.gmra.mxu0 %v1854
    %v1882 = vpop.f32.mrf.mxu0
    %v1883 = vadd.f32 %v1508, %v1882
    %1884 = vdwg.mxu0
    %1885 = vmatpush.msra.mxu0 %v1338
    %1886 = vmatpush.msra.mxu0 %v1335
    %1887 = vmatpush.msra.mxu0 %v1332
    %1888 = vmatpush.msra.mxu0 %v1329
    %1889 = vmatpush.msra.mxu0 %v1326
    %1890 = vmatpush.msra.mxu0 %v1323
    %1891 = vmatpush.msra.mxu0 %v1320
    %1892 = vmatpush.msra.mxu0 %v1317
    %1893 = vmatpush.msra.mxu0 %v1314
    %1894 = vmatpush.msra.mxu0 %v1311
    %1895 = vmatpush.msra.mxu0 %v1308
    %1896 = vmatpush.msra.mxu0 %v1305
    %1897 = vmatpush.msra.mxu0 %v1302
    %1898 = vmatpush.msra.mxu0 %v1299
    %1899 = vmatpush.msra.mxu0 %v1296
    %1900 = vmatpush.msra.mxu0 %v1293
    %1901 = vmatmul.f32.gmra.mxu0 %v1854
    %v1902 = vpop.f32.mrf.mxu0
    %v1903 = vadd.f32 %v1509, %v1902
    %1904 = vdwg.mxu0
    %1905 = vmatpush.msra.mxu0 %v1339
    %1906 = vmatpush.msra.mxu0 %v1336
    %1907 = vmatpush.msra.mxu0 %v1333
    %1908 = vmatpush.msra.mxu0 %v1330
    %1909 = vmatpush.msra.mxu0 %v1327
    %1910 = vmatpush.msra.mxu0 %v1324
    %1911 = vmatpush.msra.mxu0 %v1321
    %1912 = vmatpush.msra.mxu0 %v1318
    %1913 = vmatpush.msra.mxu0 %v1315
    %1914 = vmatpush.msra.mxu0 %v1312
    %1915 = vmatpush.msra.mxu0 %v1309
    %1916 = vmatpush.msra.mxu0 %v1306
    %1917 = vmatpush.msra.mxu0 %v1303
    %1918 = vmatpush.msra.mxu0 %v1300
    %1919 = vmatpush.msra.mxu0 %v1297
    %1920 = vmatpush.msra.mxu0 %v1294
    %1921 = vmatmul.f32.gmra.mxu0 %v1854
    %v1922 = vpop.f32.mrf.mxu0
    %v1923 = vadd.f32 %v1510, %v1922
    %1924 = vdwg.mxu0
    %v1925 = vadd.f32 %v1862, %v1883
    %v1926 = vxor.u32 %v1925, 2147483648
    %v1927 = vmul.f32 %v1926, 1.442695
    %v1928 = vpow.pop %v1927
    %v1929 = vadd.f32 %v1928, 1.0
    %v1930 = vrcp.pop %v1929
    %v1931 = vmul.f32 %v1929, %v1930
    %v1932 = vsub.f32 1.0, %v1931
    %v1933 = vmul.f32 %v1930, %v1932
    %v1934 = vadd.f32 %v1930, %v1933
    %vm1935 = vweird.f32 %v1929
    %vm1936 = vweird.f32 %v1930
    %vm1937 = vmor %vm1935, %vm1936
    %v1938 = vsel %vm1937, %v1930, %v1934
    %v1939 = vand.u32 2147483647, %v1929
    %vm1940 = vcmp.eq.f32.partialorder %v1939, 8.507059e+37
    %v1941 = vand.u32 %v1929, 2147483648
    %v1942 = vor.u32 1.1754944e-38, %v1941
    %v1943 = vsel %vm1940, %v1942, %v1938
    %v1944 = vmul.f32 1.0, %v1943
    %v1945 = vadd.f32 %v1863, %v1903
    %v1946 = vxor.u32 %v1945, 2147483648
    %v1947 = vmul.f32 %v1946, 1.442695
    %v1948 = vpow.pop %v1947
    %v1949 = vadd.f32 %v1948, 1.0
    %v1950 = vrcp.pop %v1949
    %v1951 = vmul.f32 %v1949, %v1950
    %v1952 = vsub.f32 1.0, %v1951
    %v1953 = vmul.f32 %v1950, %v1952
    %v1954 = vadd.f32 %v1950, %v1953
    %vm1955 = vweird.f32 %v1949
    %vm1956 = vweird.f32 %v1950
    %vm1957 = vmor %vm1955, %vm1956
    %v1958 = vsel %vm1957, %v1950, %v1954
    %v1959 = vand.u32 2147483647, %v1949
    %vm1960 = vcmp.eq.f32.partialorder %v1959, 8.507059e+37
    %v1961 = vand.u32 %v1949, 2147483648
    %v1962 = vor.u32 1.1754944e-38, %v1961
    %v1963 = vsel %vm1960, %v1962, %v1958
    %v1964 = vmul.f32 1.0, %v1963
    %v1965 = vmul.f32 %v1944, %v1923
    %v1966 = vadd.f32 %v1864, %v1965
    %v1967 = vtanh.pop %v1966
    %v1968 = vsub.f32 1.0, %v1964
    %v1969 = vmul.f32 %v1968, %v1967
    %v1970 = vmul.f32 %v1964, %v1854
    %v1971 = vadd.f32 %v1969, %v1970
    %vm1972 = vcmp.eq.s32.totalorder %v88, 4
    %v1973 = vsel %vm1972, 1, 0
    %1974 = vset.pattern.permute.xlu0 0
    %1975 = vperm.xlu0 %1974, %v1973
    %v1976 = vpop.permute.xlu0 %1975
    %vm1977 = vcmp.eq.s32.totalorder %v1976, 1
    %v1978 = vsel %vm1977, %v1971, %v1861
    %v1979 = vld [vmem:[#allocation3 + $0x60] sm:$0xff]
    %v1980 = vld [vmem:[#allocation3 + $0x68] sm:$0xff]
    %v1981 = vld [vmem:[#allocation3 + $0x70] sm:$0xff]
    %1982 = vmatpush.msra.mxu0 %v1337
    %1983 = vmatpush.msra.mxu0 %v1334
    %1984 = vmatpush.msra.mxu0 %v1331
    %1985 = vmatpush.msra.mxu0 %v1328
    %1986 = vmatpush.msra.mxu0 %v1325
    %1987 = vmatpush.msra.mxu0 %v1322
    %1988 = vmatpush.msra.mxu0 %v1319
    %1989 = vmatpush.msra.mxu0 %v1316
    %1990 = vmatpush.msra.mxu0 %v1313
    %1991 = vmatpush.msra.mxu0 %v1310
    %1992 = vmatpush.msra.mxu0 %v1307
    %1993 = vmatpush.msra.mxu0 %v1304
    %1994 = vmatpush.msra.mxu0 %v1301
    %1995 = vmatpush.msra.mxu0 %v1298
    %1996 = vmatpush.msra.mxu0 %v1295
    %1997 = vmatpush.msra.mxu0 %v1292
    %1998 = vmatmul.f32.gmra.mxu0 %v1971
    %v1999 = vpop.f32.mrf.mxu0
    %v2000 = vadd.f32 %v1508, %v1999
    %2001 = vdwg.mxu0
    %2002 = vmatpush.msra.mxu0 %v1338
    %2003 = vmatpush.msra.mxu0 %v1335
    %2004 = vmatpush.msra.mxu0 %v1332
    %2005 = vmatpush.msra.mxu0 %v1329
    %2006 = vmatpush.msra.mxu0 %v1326
    %2007 = vmatpush.msra.mxu0 %v1323
    %2008 = vmatpush.msra.mxu0 %v1320
    %2009 = vmatpush.msra.mxu0 %v1317
    %2010 = vmatpush.msra.mxu0 %v1314
    %2011 = vmatpush.msra.mxu0 %v1311
    %2012 = vmatpush.msra.mxu0 %v1308
    %2013 = vmatpush.msra.mxu0 %v1305
    %2014 = vmatpush.msra.mxu0 %v1302
    %2015 = vmatpush.msra.mxu0 %v1299
    %2016 = vmatpush.msra.mxu0 %v1296
    %2017 = vmatpush.msra.mxu0 %v1293
    %2018 = vmatmul.f32.gmra.mxu0 %v1971
    %v2019 = vpop.f32.mrf.mxu0
    %v2020 = vadd.f32 %v1509, %v2019
    %2021 = vdwg.mxu0
    %2022 = vmatpush.msra.mxu0 %v1339
    %2023 = vmatpush.msra.mxu0 %v1336
    %2024 = vmatpush.msra.mxu0 %v1333
    %2025 = vmatpush.msra.mxu0 %v1330
    %2026 = vmatpush.msra.mxu0 %v1327
    %2027 = vmatpush.msra.mxu0 %v1324
    %2028 = vmatpush.msra.mxu0 %v1321
    %2029 = vmatpush.msra.mxu0 %v1318
    %2030 = vmatpush.msra.mxu0 %v1315
    %2031 = vmatpush.msra.mxu0 %v1312
    %2032 = vmatpush.msra.mxu0 %v1309
    %2033 = vmatpush.msra.mxu0 %v1306
    %2034 = vmatpush.msra.mxu0 %v1303
    %2035 = vmatpush.msra.mxu0 %v1300
    %2036 = vmatpush.msra.mxu0 %v1297
    %2037 = vmatpush.msra.mxu0 %v1294
    %2038 = vmatmul.f32.gmra.mxu0 %v1971
    %v2039 = vpop.f32.mrf.mxu0
    %v2040 = vadd.f32 %v1510, %v2039
    %2041 = vdwg.mxu0
    %v2042 = vadd.f32 %v1979, %v2000
    %v2043 = vxor.u32 %v2042, 2147483648
    %v2044 = vmul.f32 %v2043, 1.442695
    %v2045 = vpow.pop %v2044
    %v2046 = vadd.f32 %v2045, 1.0
    %v2047 = vrcp.pop %v2046
    %v2048 = vmul.f32 %v2046, %v2047
    %v2049 = vsub.f32 1.0, %v2048
    %v2050 = vmul.f32 %v2047, %v2049
    %v2051 = vadd.f32 %v2047, %v2050
    %vm2052 = vweird.f32 %v2046
    %vm2053 = vweird.f32 %v2047
    %vm2054 = vmor %vm2052, %vm2053
    %v2055 = vsel %vm2054, %v2047, %v2051
    %v2056 = vand.u32 2147483647, %v2046
    %vm2057 = vcmp.eq.f32.partialorder %v2056, 8.507059e+37
    %v2058 = vand.u32 %v2046, 2147483648
    %v2059 = vor.u32 1.1754944e-38, %v2058
    %v2060 = vsel %vm2057, %v2059, %v2055
    %v2061 = vmul.f32 1.0, %v2060
    %v2062 = vadd.f32 %v1980, %v2020
    %v2063 = vxor.u32 %v2062, 2147483648
    %v2064 = vmul.f32 %v2063, 1.442695
    %v2065 = vpow.pop %v2064
    %v2066 = vadd.f32 %v2065, 1.0
    %v2067 = vrcp.pop %v2066
    %v2068 = vmul.f32 %v2066, %v2067
    %v2069 = vsub.f32 1.0, %v2068
    %v2070 = vmul.f32 %v2067, %v2069
    %v2071 = vadd.f32 %v2067, %v2070
    %vm2072 = vweird.f32 %v2066
    %vm2073 = vweird.f32 %v2067
    %vm2074 = vmor %vm2072, %vm2073
    %v2075 = vsel %vm2074, %v2067, %v2071
    %v2076 = vand.u32 2147483647, %v2066
    %vm2077 = vcmp.eq.f32.partialorder %v2076, 8.507059e+37
    %v2078 = vand.u32 %v2066, 2147483648
    %v2079 = vor.u32 1.1754944e-38, %v2078
    %v2080 = vsel %vm2077, %v2079, %v2075
    %v2081 = vmul.f32 1.0, %v2080
    %v2082 = vmul.f32 %v2061, %v2040
    %v2083 = vadd.f32 %v1981, %v2082
    %v2084 = vtanh.pop %v2083
    %v2085 = vsub.f32 1.0, %v2081
    %v2086 = vmul.f32 %v2085, %v2084
    %v2087 = vmul.f32 %v2081, %v1971
    %v2088 = vadd.f32 %v2086, %v2087
    %vm2089 = vcmp.eq.s32.totalorder %v88, 5
    %v2090 = vsel %vm2089, 1, 0
    %2091 = vset.pattern.permute.xlu0 0
    %2092 = vperm.xlu0 %2091, %v2090
    %v2093 = vpop.permute.xlu0 %2092
    %vm2094 = vcmp.eq.s32.totalorder %v2093, 1
    %v2095 = vsel %vm2094, %v2088, %v1978
    %v2096 = vld [vmem:[#allocation3 + $0x78] sm:$0xff]
    %v2097 = vld [vmem:[#allocation3 + $0x80] sm:$0xff]
    %v2098 = vld [vmem:[#allocation3 + $0x88] sm:$0xff]
    %2099 = vmatpush.msra.mxu0 %v1337
    %2100 = vmatpush.msra.mxu0 %v1334
    %2101 = vmatpush.msra.mxu0 %v1331
    %2102 = vmatpush.msra.mxu0 %v1328
    %2103 = vmatpush.msra.mxu0 %v1325
    %2104 = vmatpush.msra.mxu0 %v1322
    %2105 = vmatpush.msra.mxu0 %v1319
    %2106 = vmatpush.msra.mxu0 %v1316
    %2107 = vmatpush.msra.mxu0 %v1313
    %2108 = vmatpush.msra.mxu0 %v1310
    %2109 = vmatpush.msra.mxu0 %v1307
    %2110 = vmatpush.msra.mxu0 %v1304
    %2111 = vmatpush.msra.mxu0 %v1301
    %2112 = vmatpush.msra.mxu0 %v1298
    %2113 = vmatpush.msra.mxu0 %v1295
    %2114 = vmatpush.msra.mxu0 %v1292
    %2115 = vmatmul.f32.gmra.mxu0 %v2088
    %v2116 = vpop.f32.mrf.mxu0
    %v2117 = vadd.f32 %v1508, %v2116
    %2118 = vdwg.mxu0
    %2119 = vmatpush.msra.mxu0 %v1338
    %2120 = vmatpush.msra.mxu0 %v1335
    %2121 = vmatpush.msra.mxu0 %v1332
    %2122 = vmatpush.msra.mxu0 %v1329
    %2123 = vmatpush.msra.mxu0 %v1326
    %2124 = vmatpush.msra.mxu0 %v1323
    %2125 = vmatpush.msra.mxu0 %v1320
    %2126 = vmatpush.msra.mxu0 %v1317
    %2127 = vmatpush.msra.mxu0 %v1314
    %2128 = vmatpush.msra.mxu0 %v1311
    %2129 = vmatpush.msra.mxu0 %v1308
    %2130 = vmatpush.msra.mxu0 %v1305
    %2131 = vmatpush.msra.mxu0 %v1302
    %2132 = vmatpush.msra.mxu0 %v1299
    %2133 = vmatpush.msra.mxu0 %v1296
    %2134 = vmatpush.msra.mxu0 %v1293
    %2135 = vmatmul.f32.gmra.mxu0 %v2088
    %v2136 = vpop.f32.mrf.mxu0
    %v2137 = vadd.f32 %v1509, %v2136
    %2138 = vdwg.mxu0
    %2139 = vmatpush.msra.mxu0 %v1339
    %2140 = vmatpush.msra.mxu0 %v1336
    %2141 = vmatpush.msra.mxu0 %v1333
    %2142 = vmatpush.msra.mxu0 %v1330
    %2143 = vmatpush.msra.mxu0 %v1327
    %2144 = vmatpush.msra.mxu0 %v1324
    %2145 = vmatpush.msra.mxu0 %v1321
    %2146 = vmatpush.msra.mxu0 %v1318
    %2147 = vmatpush.msra.mxu0 %v1315
    %2148 = vmatpush.msra.mxu0 %v1312
    %2149 = vmatpush.msra.mxu0 %v1309
    %2150 = vmatpush.msra.mxu0 %v1306
    %2151 = vmatpush.msra.mxu0 %v1303
    %2152 = vmatpush.msra.mxu0 %v1300
    %2153 = vmatpush.msra.mxu0 %v1297
    %2154 = vmatpush.msra.mxu0 %v1294
    %2155 = vmatmul.f32.gmra.mxu0 %v2088
    %v2156 = vpop.f32.mrf.mxu0
    %v2157 = vadd.f32 %v1510, %v2156
    %2158 = vdwg.mxu0
    %v2159 = vadd.f32 %v2096, %v2117
    %v2160 = vxor.u32 %v2159, 2147483648
    %v2161 = vmul.f32 %v2160, 1.442695
    %v2162 = vpow.pop %v2161
    %v2163 = vadd.f32 %v2162, 1.0
    %v2164 = vrcp.pop %v2163
    %v2165 = vmul.f32 %v2163, %v2164
    %v2166 = vsub.f32 1.0, %v2165
    %v2167 = vmul.f32 %v2164, %v2166
    %v2168 = vadd.f32 %v2164, %v2167
    %vm2169 = vweird.f32 %v2163
    %vm2170 = vweird.f32 %v2164
    %vm2171 = vmor %vm2169, %vm2170
    %v2172 = vsel %vm2171, %v2164, %v2168
    %v2173 = vand.u32 2147483647, %v2163
    %vm2174 = vcmp.eq.f32.partialorder %v2173, 8.507059e+37
    %v2175 = vand.u32 %v2163, 2147483648
    %v2176 = vor.u32 1.1754944e-38, %v2175
    %v2177 = vsel %vm2174, %v2176, %v2172
    %v2178 = vmul.f32 1.0, %v2177
    %v2179 = vadd.f32 %v2097, %v2137
    %v2180 = vxor.u32 %v2179, 2147483648
    %v2181 = vmul.f32 %v2180, 1.442695
    %v2182 = vpow.pop %v2181
    %v2183 = vadd.f32 %v2182, 1.0
    %v2184 = vrcp.pop %v2183
    %v2185 = vmul.f32 %v2183, %v2184
    %v2186 = vsub.f32 1.0, %v2185
    %v2187 = vmul.f32 %v2184, %v2186
    %v2188 = vadd.f32 %v2184, %v2187
    %vm2189 = vweird.f32 %v2183
    %vm2190 = vweird.f32 %v2184
    %vm2191 = vmor %vm2189, %vm2190
    %v2192 = vsel %vm2191, %v2184, %v2188
    %v2193 = vand.u32 2147483647, %v2183
    %vm2194 = vcmp.eq.f32.partialorder %v2193, 8.507059e+37
    %v2195 = vand.u32 %v2183, 2147483648
    %v2196 = vor.u32 1.1754944e-38, %v2195
    %v2197 = vsel %vm2194, %v2196, %v2192
    %v2198 = vmul.f32 1.0, %v2197
    %v2199 = vmul.f32 %v2178, %v2157
    %v2200 = vadd.f32 %v2098, %v2199
    %v2201 = vtanh.pop %v2200
    %v2202 = vsub.f32 1.0, %v2198
    %v2203 = vmul.f32 %v2202, %v2201
    %v2204 = vmul.f32 %v2198, %v2088
    %v2205 = vadd.f32 %v2203, %v2204
    %vm2206 = vcmp.eq.s32.totalorder %v88, 6
    %v2207 = vsel %vm2206, 1, 0
    %2208 = vset.pattern.permute.xlu0 0
    %2209 = vperm.xlu0 %2208, %v2207
    %v2210 = vpop.permute.xlu0 %2209
    %vm2211 = vcmp.eq.s32.totalorder %v2210, 1
    %v2212 = vsel %vm2211, %v2205, %v2095
    %v2213 = vld [vmem:[#allocation3 + $0x90] sm:$0xff]
    %v2214 = vld [vmem:[#allocation3 + $0x98] sm:$0xff]
    %v2215 = vld [vmem:[#allocation3 + $0xa0] sm:$0xff]
    %2216 = vmatpush.msra.mxu0 %v1337
    %2217 = vmatpush.msra.mxu0 %v1334
    %2218 = vmatpush.msra.mxu0 %v1331
    %2219 = vmatpush.msra.mxu0 %v1328
    %2220 = vmatpush.msra.mxu0 %v1325
    %2221 = vmatpush.msra.mxu0 %v1322
    %2222 = vmatpush.msra.mxu0 %v1319
    %2223 = vmatpush.msra.mxu0 %v1316
    %2224 = vmatpush.msra.mxu0 %v1313
    %2225 = vmatpush.msra.mxu0 %v1310
    %2226 = vmatpush.msra.mxu0 %v1307
    %2227 = vmatpush.msra.mxu0 %v1304
    %2228 = vmatpush.msra.mxu0 %v1301
    %2229 = vmatpush.msra.mxu0 %v1298
    %2230 = vmatpush.msra.mxu0 %v1295
    %2231 = vmatpush.msra.mxu0 %v1292
    %2232 = vmatmul.f32.gmra.mxu0 %v2205
    %v2233 = vpop.f32.mrf.mxu0
    %v2234 = vadd.f32 %v1508, %v2233
    %2235 = vdwg.mxu0
    %2236 = vmatpush.msra.mxu0 %v1338
    %2237 = vmatpush.msra.mxu0 %v1335
    %2238 = vmatpush.msra.mxu0 %v1332
    %2239 = vmatpush.msra.mxu0 %v1329
    %2240 = vmatpush.msra.mxu0 %v1326
    %2241 = vmatpush.msra.mxu0 %v1323
    %2242 = vmatpush.msra.mxu0 %v1320
    %2243 = vmatpush.msra.mxu0 %v1317
    %2244 = vmatpush.msra.mxu0 %v1314
    %2245 = vmatpush.msra.mxu0 %v1311
    %2246 = vmatpush.msra.mxu0 %v1308
    %2247 = vmatpush.msra.mxu0 %v1305
    %2248 = vmatpush.msra.mxu0 %v1302
    %2249 = vmatpush.msra.mxu0 %v1299
    %2250 = vmatpush.msra.mxu0 %v1296
    %2251 = vmatpush.msra.mxu0 %v1293
    %2252 = vmatmul.f32.gmra.mxu0 %v2205
    %v2253 = vpop.f32.mrf.mxu0
    %v2254 = vadd.f32 %v1509, %v2253
    %2255 = vdwg.mxu0
    %2256 = vmatpush.msra.mxu0 %v1339
    %2257 = vmatpush.msra.mxu0 %v1336
    %2258 = vmatpush.msra.mxu0 %v1333
    %2259 = vmatpush.msra.mxu0 %v1330
    %2260 = vmatpush.msra.mxu0 %v1327
    %2261 = vmatpush.msra.mxu0 %v1324
    %2262 = vmatpush.msra.mxu0 %v1321
    %2263 = vmatpush.msra.mxu0 %v1318
    %2264 = vmatpush.msra.mxu0 %v1315
    %2265 = vmatpush.msra.mxu0 %v1312
    %2266 = vmatpush.msra.mxu0 %v1309
    %2267 = vmatpush.msra.mxu0 %v1306
    %2268 = vmatpush.msra.mxu0 %v1303
    %2269 = vmatpush.msra.mxu0 %v1300
    %2270 = vmatpush.msra.mxu0 %v1297
    %2271 = vmatpush.msra.mxu0 %v1294
    %2272 = vmatmul.f32.gmra.mxu0 %v2205
    %v2273 = vpop.f32.mrf.mxu0
    %v2274 = vadd.f32 %v1510, %v2273
    %2275 = vdwg.mxu0
    %v2276 = vadd.f32 %v2213, %v2234
    %v2277 = vxor.u32 %v2276, 2147483648
    %v2278 = vmul.f32 %v2277, 1.442695
    %v2279 = vpow.pop %v2278
    %v2280 = vadd.f32 %v2279, 1.0
    %v2281 = vrcp.pop %v2280
    %v2282 = vmul.f32 %v2280, %v2281
    %v2283 = vsub.f32 1.0, %v2282
    %v2284 = vmul.f32 %v2281, %v2283
    %v2285 = vadd.f32 %v2281, %v2284
    %vm2286 = vweird.f32 %v2280
    %vm2287 = vweird.f32 %v2281
    %vm2288 = vmor %vm2286, %vm2287
    %v2289 = vsel %vm2288, %v2281, %v2285
    %v2290 = vand.u32 2147483647, %v2280
    %vm2291 = vcmp.eq.f32.partialorder %v2290, 8.507059e+37
    %v2292 = vand.u32 %v2280, 2147483648
    %v2293 = vor.u32 1.1754944e-38, %v2292
    %v2294 = vsel %vm2291, %v2293, %v2289
    %v2295 = vmul.f32 1.0, %v2294
    %v2296 = vadd.f32 %v2214, %v2254
    %v2297 = vxor.u32 %v2296, 2147483648
    %v2298 = vmul.f32 %v2297, 1.442695
    %v2299 = vpow.pop %v2298
    %v2300 = vadd.f32 %v2299, 1.0
    %v2301 = vrcp.pop %v2300
    %v2302 = vmul.f32 %v2300, %v2301
    %v2303 = vsub.f32 1.0, %v2302
    %v2304 = vmul.f32 %v2301, %v2303
    %v2305 = vadd.f32 %v2301, %v2304
    %vm2306 = vweird.f32 %v2300
    %vm2307 = vweird.f32 %v2301
    %vm2308 = vmor %vm2306, %vm2307
    %v2309 = vsel %vm2308, %v2301, %v2305
    %v2310 = vand.u32 2147483647, %v2300
    %vm2311 = vcmp.eq.f32.partialorder %v2310, 8.507059e+37
    %v2312 = vand.u32 %v2300, 2147483648
    %v2313 = vor.u32 1.1754944e-38, %v2312
    %v2314 = vsel %vm2311, %v2313, %v2309
    %v2315 = vmul.f32 1.0, %v2314
    %v2316 = vmul.f32 %v2295, %v2274
    %v2317 = vadd.f32 %v2215, %v2316
    %v2318 = vtanh.pop %v2317
    %v2319 = vsub.f32 1.0, %v2315
    %v2320 = vmul.f32 %v2319, %v2318
    %v2321 = vmul.f32 %v2315, %v2205
    %v2322 = vadd.f32 %v2320, %v2321
    %vm2323 = vcmp.eq.s32.totalorder %v88, 7
    %v2324 = vsel %vm2323, 1, 0
    %2325 = vset.pattern.permute.xlu0 0
    %2326 = vperm.xlu0 %2325, %v2324
    %v2327 = vpop.permute.xlu0 %2326
    %vm2328 = vcmp.eq.s32.totalorder %v2327, 1
    %v2329 = vsel %vm2328, %v2322, %v2212
    %v2330 = vld [vmem:[#allocation3 + $0xa8] sm:$0xff]
    %v2331 = vld [vmem:[#allocation3 + $0xb0] sm:$0xff]
    %v2332 = vld [vmem:[#allocation3 + $0xb8] sm:$0xff]
    %2333 = vmatpush.msra.mxu0 %v1337
    %2334 = vmatpush.msra.mxu0 %v1334
    %2335 = vmatpush.msra.mxu0 %v1331
    %2336 = vmatpush.msra.mxu0 %v1328
    %2337 = vmatpush.msra.mxu0 %v1325
    %2338 = vmatpush.msra.mxu0 %v1322
    %2339 = vmatpush.msra.mxu0 %v1319
    %2340 = vmatpush.msra.mxu0 %v1316
    %2341 = vmatpush.msra.mxu0 %v1313
    %2342 = vmatpush.msra.mxu0 %v1310
    %2343 = vmatpush.msra.mxu0 %v1307
    %2344 = vmatpush.msra.mxu0 %v1304
    %2345 = vmatpush.msra.mxu0 %v1301
    %2346 = vmatpush.msra.mxu0 %v1298
    %2347 = vmatpush.msra.mxu0 %v1295
    %2348 = vmatpush.msra.mxu0 %v1292
    %2349 = vmatmul.f32.gmra.mxu0 %v2322
    %v2350 = vpop.f32.mrf.mxu0
    %v2351 = vadd.f32 %v1508, %v2350
    %2352 = vdwg.mxu0
    %2353 = vmatpush.msra.mxu0 %v1338
    %2354 = vmatpush.msra.mxu0 %v1335
    %2355 = vmatpush.msra.mxu0 %v1332
    %2356 = vmatpush.msra.mxu0 %v1329
    %2357 = vmatpush.msra.mxu0 %v1326
    %2358 = vmatpush.msra.mxu0 %v1323
    %2359 = vmatpush.msra.mxu0 %v1320
    %2360 = vmatpush.msra.mxu0 %v1317
    %2361 = vmatpush.msra.mxu0 %v1314
    %2362 = vmatpush.msra.mxu0 %v1311
    %2363 = vmatpush.msra.mxu0 %v1308
    %2364 = vmatpush.msra.mxu0 %v1305
    %2365 = vmatpush.msra.mxu0 %v1302
    %2366 = vmatpush.msra.mxu0 %v1299
    %2367 = vmatpush.msra.mxu0 %v1296
    %2368 = vmatpush.msra.mxu0 %v1293
    %2369 = vmatmul.f32.gmra.mxu0 %v2322
    %v2370 = vpop.f32.mrf.mxu0
    %v2371 = vadd.f32 %v1509, %v2370
    %2372 = vdwg.mxu0
    %2373 = vmatpush.msra.mxu0 %v1339
    %2374 = vmatpush.msra.mxu0 %v1336
    %2375 = vmatpush.msra.mxu0 %v1333
    %2376 = vmatpush.msra.mxu0 %v1330
    %2377 = vmatpush.msra.mxu0 %v1327
    %2378 = vmatpush.msra.mxu0 %v1324
    %2379 = vmatpush.msra.mxu0 %v1321
    %2380 = vmatpush.msra.mxu0 %v1318
    %2381 = vmatpush.msra.mxu0 %v1315
    %2382 = vmatpush.msra.mxu0 %v1312
    %2383 = vmatpush.msra.mxu0 %v1309
    %2384 = vmatpush.msra.mxu0 %v1306
    %2385 = vmatpush.msra.mxu0 %v1303
    %2386 = vmatpush.msra.mxu0 %v1300
    %2387 = vmatpush.msra.mxu0 %v1297
    %2388 = vmatpush.msra.mxu0 %v1294
    %2389 = vmatmul.f32.gmra.mxu0 %v2322
    %v2390 = vpop.f32.mrf.mxu0
    %v2391 = vadd.f32 %v1510, %v2390
    %2392 = vdwg.mxu0
    %v2393 = vadd.f32 %v2330, %v2351
    %v2394 = vxor.u32 %v2393, 2147483648
    %v2395 = vmul.f32 %v2394, 1.442695
    %v2396 = vpow.pop %v2395
    %v2397 = vadd.f32 %v2396, 1.0
    %v2398 = vrcp.pop %v2397
    %v2399 = vmul.f32 %v2397, %v2398
    %v2400 = vsub.f32 1.0, %v2399
    %v2401 = vmul.f32 %v2398, %v2400
    %v2402 = vadd.f32 %v2398, %v2401
    %vm2403 = vweird.f32 %v2397
    %vm2404 = vweird.f32 %v2398
    %vm2405 = vmor %vm2403, %vm2404
    %v2406 = vsel %vm2405, %v2398, %v2402
    %v2407 = vand.u32 2147483647, %v2397
    %vm2408 = vcmp.eq.f32.partialorder %v2407, 8.507059e+37
    %v2409 = vand.u32 %v2397, 2147483648
    %v2410 = vor.u32 1.1754944e-38, %v2409
    %v2411 = vsel %vm2408, %v2410, %v2406
    %v2412 = vmul.f32 1.0, %v2411
    %v2413 = vadd.f32 %v2331, %v2371
    %v2414 = vxor.u32 %v2413, 2147483648
    %v2415 = vmul.f32 %v2414, 1.442695
    %v2416 = vpow.pop %v2415
    %v2417 = vadd.f32 %v2416, 1.0
    %v2418 = vrcp.pop %v2417
    %v2419 = vmul.f32 %v2417, %v2418
    %v2420 = vsub.f32 1.0, %v2419
    %v2421 = vmul.f32 %v2418, %v2420
    %v2422 = vadd.f32 %v2418, %v2421
    %vm2423 = vweird.f32 %v2417
    %vm2424 = vweird.f32 %v2418
    %vm2425 = vmor %vm2423, %vm2424
    %v2426 = vsel %vm2425, %v2418, %v2422
    %v2427 = vand.u32 2147483647, %v2417
    %vm2428 = vcmp.eq.f32.partialorder %v2427, 8.507059e+37
    %v2429 = vand.u32 %v2417, 2147483648
    %v2430 = vor.u32 1.1754944e-38, %v2429
    %v2431 = vsel %vm2428, %v2430, %v2426
    %v2432 = vmul.f32 1.0, %v2431
    %v2433 = vmul.f32 %v2412, %v2391
    %v2434 = vadd.f32 %v2332, %v2433
    %v2435 = vtanh.pop %v2434
    %v2436 = vsub.f32 1.0, %v2432
    %v2437 = vmul.f32 %v2436, %v2435
    %v2438 = vmul.f32 %v2432, %v2322
    %v2439 = vadd.f32 %v2437, %v2438
    %vm2440 = vcmp.eq.s32.totalorder %v88, 8
    %v2441 = vsel %vm2440, 1, 0
    %2442 = vset.pattern.permute.xlu0 0
    %2443 = vperm.xlu0 %2442, %v2441
    %v2444 = vpop.permute.xlu0 %2443
    %vm2445 = vcmp.eq.s32.totalorder %v2444, 1
    %v2446 = vsel %vm2445, %v2439, %v2329
    %v2447 = vmul.f32 %v2446, %v2446
    %2448 = vadd.xlane.f32.xlu0 %v2447
    %v2449 = vpop.xlane.xlu0 %2448
    %v2450 = vadd.f32 %v2449, 1e-12
    %v2451 = vrsqrt.pop %v2450
    %v2452 = vmul.f32 %v2451, %v2450
    %v2453 = vmul.f32 %v2452, %v2451
    %v2454 = vmul.f32 0.5, %v2453
    %v2455 = vsub.f32 1.5, %v2454
    %v2456 = vmul.f32 %v2451, %v2455
    %vm2457 = vweird.f32 %v2450
    %vm2458 = vweird.f32 %v2451
    %vm2459 = vmor %vm2457, %vm2458
    %v2460 = vsel %vm2459, %v2451, %v2456
    %v2461 = vmul.f32 %v2446, %v2460
    %v2462 = vld [vmem:[%s10] sm:$0xff]
    %v2463 = vld [vmem:[%s10 + $0x8] sm:$0xff]
    %v2464 = vld [vmem:[%s10 + $0x10] sm:$0xff]
    %v2465 = vld [vmem:[%s10 + $0x18] sm:$0xff]
    %v2466 = vld [vmem:[%s10 + $0x20] sm:$0xff]
    %v2467 = vld [vmem:[%s10 + $0x28] sm:$0xff]
    %v2468 = vld [vmem:[%s10 + $0x30] sm:$0xff]
    %v2469 = vld [vmem:[%s10 + $0x38] sm:$0xff]
    %v2470 = vld [vmem:[%s10 + $0x40] sm:$0xff]
    %v2471 = vld [vmem:[%s10 + $0x48] sm:$0xff]
    %v2472 = vld [vmem:[%s10 + $0x50] sm:$0xff]
    %v2473 = vld [vmem:[%s10 + $0x58] sm:$0xff]
    %v2474 = vld [vmem:[%s10 + $0x60] sm:$0xff]
    %v2475 = vld [vmem:[%s10 + $0x68] sm:$0xff]
    %v2476 = vld [vmem:[%s10 + $0x70] sm:$0xff]
    %v2477 = vld [vmem:[%s10 + $0x78] sm:$0xff]
    %v2478 = vld [vmem:[%s11] sm:$0x1]
    %v2480 = vperm.slane %v2478, 0
    %2482 = vmatpush.msra.mxu0 %v2477
    %2483 = vmatpush.msra.mxu0 %v2476
    %2484 = vmatpush.msra.mxu0 %v2475
    %2485 = vmatpush.msra.mxu0 %v2474
    %2486 = vmatpush.msra.mxu0 %v2473
    %2487 = vmatpush.msra.mxu0 %v2472
    %2488 = vmatpush.msra.mxu0 %v2471
    %2489 = vmatpush.msra.mxu0 %v2470
    %2490 = vmatpush.msra.mxu0 %v2469
    %2491 = vmatpush.msra.mxu0 %v2468
    %2492 = vmatpush.msra.mxu0 %v2467
    %2493 = vmatpush.msra.mxu0 %v2466
    %2494 = vmatpush.msra.mxu0 %v2465
    %2495 = vmatpush.msra.mxu0 %v2464
    %2496 = vmatpush.msra.mxu0 %v2463
    %2497 = vmatpush.msra.mxu0 %v2462
    %2498 = vmatmul.f32.gmra.mxu0 %v2461
    %v2499 = vpop.f32.mrf.mxu0
    %v2500 = vadd.f32 %v2480, %v2499
    %2501 = vdwg.mxu0
    %2502 = vst [vmem:[%s12] sm:$0xff] %v2500
    // Predicated region
    $region62: #{text_encoder_forward.1} parent=1 // pred_check
      _
    $region63: #{text_encoder_forward.1} parent=1 // pred_check_branch
      %2504 = sbr.rel (0) target = $region65
    $region64: #{text_encoder_forward.1} parent=1 // pred_region
      _
    $region65: #{text_encoder_forward.1} parent=1 // pred_fallthru
      _
    // Predicated region
    $region66: #{text_encoder_forward.1} parent=1 // pred_check
      _
    $region67: #{text_encoder_forward.1} parent=1 // pred_check_branch
      %2506 = sbr.rel (0) target = $region69
    $region68: #{text_encoder_forward.1} parent=1 // pred_region
      _
    $region69: #{text_encoder_forward.1} parent=1 // pred_fallthru
      _
    %2507 = vsyncpa [#allocation5], 1
    %2508 = vsyncpa [#allocation7], 1

</llo_original>
